<compile_context>
chip_gen: v5e
topology: v5e:2x2
jax: 0.10.0
libtpu: 0.0.40
codegen_flags: <defaults>
</compile_context>

<pallas_src>
import functools
import numpy as np
import jax
import jax.numpy as jnp
from jax import lax
from jax.experimental import pallas as pl
from jax.experimental.pallas import tpu as pltpu

CP = 128  # all true channel counts here are <= 48; pad to one full lane width


def _round_up(x, m):
    return (x + m - 1) // m * m


def _m_tile(M, cap=512):
    """Largest M-tile <= cap that divides M (multiple of 8), else full M."""
    if M <= cap:
        return M
    t = cap - (cap % 8)
    while t >= 8:
        if M % t == 0:
            return t
        t -= 8
    return M


# ---------------------------------------------------------------------------
# Pallas kernels
# ---------------------------------------------------------------------------

def _fused_conv_kernel(*refs, prologue, relu_out, has_res):
    """[BN+ReLU prologue] -> single deep-K bf16 MXU matmul (f32 acc)
       -> [+channel-append residual] -> [folded BN epilogue] -> [ReLU].

    Operand order (matches fused_conv wrapper):
      x (Mt, K)  f32 (prologue) or bf16,
      w (K, Co)  bf16,
      [sin (1, K), bin (1, K)]   if prologue,
      sout (1, Co), bout (1, Co),
      [res (Mt, Co) f32]         if has_res,
      out (Mt, Co)
    """
    idx = 0
    x_ref = refs[idx]; idx += 1
    w_ref = refs[idx]; idx += 1
    if prologue:
        sin_ref = refs[idx]
        bin_ref = refs[idx + 1]
        idx += 2
    sout_ref = refs[idx]
    bout_ref = refs[idx + 1]
    idx += 2
    if has_res:
        res_ref = refs[idx]
        idx += 1
    o_ref = refs[idx]

    a = x_ref[...]
    if prologue:                                   # folded BatchNorm + ReLU on inputs (f32)
        a = jnp.maximum(a * sin_ref[...] + bin_ref[...], 0.0)
    if a.dtype != jnp.bfloat16:                    # single cast per tile (not per tap)
        a = a.astype(jnp.bfloat16)
    acc = jnp.dot(a, w_ref[...],                   # one deep-K MXU matmul, f32 accumulation
                  preferred_element_type=jnp.float32)
    if has_res:
        acc = acc + res_ref[...]                   # fused DenseNet channel-append
    y = acc * sout_ref[...] + bout_ref[...]        # folded BatchNorm (or identity)
    if relu_out:
        y = jnp.maximum(y, 0.0)
    o_ref[...] = y.astype(o_ref.dtype)


def fused_conv(x, w, sout, bout, *, sin=None, bin_=None, residual=None,
               relu_out, out_dtype=jnp.float32, alias_residual=False):
    """x: (M, K) deep-K operand; w: (K, Co) bf16.  Returns (M, Co) out_dtype."""
    M, K = x.shape
    Co = w.shape[-1]
    prologue = sin is not None
    has_res = residual is not None
    Mt = _m_tile(M)
    grid = (M // Mt,)

    operands = [x, w]
    specs = [pl.BlockSpec((Mt, K), lambda m: (m, 0)),
             pl.BlockSpec((K, Co), lambda m: (0, 0))]
    if prologue:
        operands += [sin, bin_]
        specs += [pl.BlockSpec((1, K), lambda m: (0, 0)),
                  pl.BlockSpec((1, K), lambda m: (0, 0))]
    operands += [sout, bout]
    specs += [pl.BlockSpec((1, Co), lambda m: (0, 0)),
              pl.BlockSpec((1, Co), lambda m: (0, 0))]
    io_aliases = {}
    if has_res:
        if alias_residual and residual.dtype == jnp.dtype(out_dtype):
            io_aliases = {len(operands): 0}        # update the feature slab in place
        operands.append(residual)
        specs.append(pl.BlockSpec((Mt, Co), lambda m: (m, 0)))

    bytes_accessed = int(sum(int(np.prod(o.shape)) * jnp.dtype(o.dtype).itemsize
                             for o in operands)
                         + M * Co * jnp.dtype(out_dtype).itemsize)
    cost = pl.CostEstimate(flops=2 * M * K * Co, transcendentals=0,
                           bytes_accessed=bytes_accessed)

    kernel = functools.partial(_fused_conv_kernel, prologue=prologue,
                               relu_out=relu_out, has_res=has_res)
    return pl.pallas_call(
        kernel,
        out_shape=jax.ShapeDtypeStruct((M, Co), out_dtype),
        grid_spec=pltpu.PrefetchScalarGridSpec(
            num_scalar_prefetch=0,
            grid=grid,
            in_specs=specs,
            out_specs=pl.BlockSpec((Mt, Co), lambda m: (m, 0))),
        compiler_params=pltpu.CompilerParams(
            dimension_semantics=("parallel",),
            vmem_limit_bytes=32 * 1024 * 1024),
        input_output_aliases=io_aliases,
        cost_estimate=cost,
    )(*operands)


def _pool_kernel(w_ref, o_ref, *, op):
    nw = w_ref.shape[0]
    acc = w_ref[0]
    for t in range(1, nw):                          # static unroll over pool taps
        acc = jnp.maximum(acc, w_ref[t]) if op == "max" else acc + w_ref[t]
    if op == "avg":
        acc = acc * (1.0 / nw)
    o_ref[...] = acc


def pallas_pool(windows, op):
    """Reduce stacked pooling windows (KW, M, C) over axis 0 -> (M, C)."""
    KW, M, C = windows.shape
    Mt = _m_tile(M)
    return pl.pallas_call(
        functools.partial(_pool_kernel, op=op),
        out_shape=jax.ShapeDtypeStruct((M, C), jnp.float32),
        grid_spec=pltpu.PrefetchScalarGridSpec(
            num_scalar_prefetch=0,
            grid=(M // Mt,),
            in_specs=[pl.BlockSpec((KW, Mt, C), lambda m: (0, m, 0))],
            out_specs=pl.BlockSpec((Mt, C), lambda m: (m, 0))),
        compiler_params=pltpu.CompilerParams(
            dimension_semantics=("parallel",),
            vmem_limit_bytes=32 * 1024 * 1024),
    )(windows)


# ---------------------------------------------------------------------------
# Parameter packing (done once, outside jit): fold BN, pad channels to 128,
# pre-cast weights to bf16, build deep-K weight matrices, place append-outputs
# at their destination channel offsets.
# NOTE: all padding below MUST be zero (see invariant at top of file).
# ---------------------------------------------------------------------------

def _fold_bn(bn, cp=CP):
    gamma, beta, mean, var = bn
    s = gamma / jnp.sqrt(var + 1e-5)
    b = beta - mean * s
    c = s.shape[0]
    s = jnp.pad(s, (0, cp - c)).reshape(1, cp).astype(jnp.float32)
    b = jnp.pad(b, (0, cp - c)).reshape(1, cp).astype(jnp.float32)
    return s, b


def _pack_w_1x1(w_hwio, out_offset=0, cp=CP):
    _, _, cin, cout = w_hwio.shape
    full = jnp.zeros((cp, cp), jnp.float32)
    full = full.at[:cin, out_offset:out_offset + cout].set(w_hwio.reshape(cin, cout))
    return full.astype(jnp.bfloat16)                       # (cp, cp)


def _pack_w_3x3_deepk(w_hwio, out_offset, cp=CP):
    """3x3 conv as one deep-K matrix: rows = tap-major (kh,kw) x real cin."""
    kh, kw, cin, cout = w_hwio.shape
    kreal = kh * kw * cin
    kpad = _round_up(kreal, 128)
    full = jnp.zeros((kpad, cp), jnp.float32)
    full = full.at[:kreal, out_offset:out_offset + cout].set(
        w_hwio.reshape(kreal, cout))
    return full.astype(jnp.bfloat16)                       # (kpad, cp)


def _pack_w_im2col(w_hwio, kp, cp=CP):
    kh, kw, cin, cout = w_hwio.shape
    full = jnp.zeros((kp, cp), jnp.float32)
    full = full.at[:kh * kw * cin, :cout].set(w_hwio.reshape(kh * kw * cin, cout))
    return full.astype(jnp.bfloat16)                       # (kp, cp)


def pack_params(raw, *, growth_rate, block_config, num_init_features, bn_size):
    ones = jnp.ones((1, CP), jnp.float32)
    zeros = jnp.zeros((1, CP), jnp.float32)
    P = {}
    k0 = _round_up(7 * 7 * raw["conv0"].shape[2], 128)
    P["conv0_w"] = _pack_w_im2col(raw["conv0"], k0)
    P["norm0"] = _fold_bn(raw["norm0"])
    nf = num_init_features
    nblocks = len(block_config)
    for i, nl in enumerate(block_config):
        for l in range(nl):
            rp = raw[f"block{i}_layer{l}"]
            cin = nf + l * growth_rate
            last = (i == nblocks - 1) and (l == nl - 1)
            s1, b1 = _fold_bn(rp["norm1"])
            s2, b2 = _fold_bn(rp["norm2"])
            # norm5 (no ReLU) is fused into the very last conv2+append epilogue.
            so, bo = _fold_bn(raw["norm5"]) if last else (ones, zeros)
            P[f"block{i}_layer{l}"] = dict(
                w1=_pack_w_1x1(rp["conv1"]),                    # bottleneck 1x1
                s1=s1, b1=b1, s2=s2, b2=b2,
                w2=_pack_w_3x3_deepk(rp["conv2"], out_offset=cin),  # deep-K 3x3 @ append offset
                so=so, bo=bo)
        nf += nl * growth_rate
        if i != nblocks - 1:
            rp = raw[f"trans{i}"]
            s, b = _fold_bn(rp["norm"])
            P[f"trans{i}"] = dict(w=_pack_w_1x1(rp["conv"]), s=s, b=b,
                                  so=ones, bo=zeros)
            nf //= 2
    return P


# ---------------------------------------------------------------------------
# DenseNet forward (Pallas path).  Wrapper-side ops are only pads / shifted
# slices / concats / reshapes of small bf16/f32 slabs; all FLOPs and BN/ReLU
# run inside the Pallas kernels.
# ---------------------------------------------------------------------------

def densenet_forward(x_nchw, packed, *, block_config, growth_rate,
                     num_init_features, bn_size, small=0):
    N = x_nchw.shape[0]
    x = jnp.transpose(x_nchw, (0, 2, 3, 1)).astype(jnp.float32)      # NCHW -> NHWC
    H, W, Cin = x.shape[1], x.shape[2], x.shape[3]

    # conv0 (7x7, s2, p3) + norm0 + ReLU fused; deep-K bf16 im2col patches.
    Ho, Wo = (H + 6 - 7) // 2 + 1, (W + 6 - 7) // 2 + 1
    xp = jnp.pad(x, ((0, 0), (3, 3), (3, 3), (0, 0)))
    cols = [xp[:, i:i + 2 * Ho:2, j:j + 2 * Wo:2, :]
            for i in range(7) for j in range(7)]
    patches = (jnp.concatenate(cols, axis=-1)
               .reshape(N * Ho * Wo, 7 * 7 * Cin).astype(jnp.bfloat16))
    k0 = packed["conv0_w"].shape[0]
    patches = jnp.pad(patches, ((0, 0), (0, k0 - patches.shape[1])))
    s0, b0 = packed["norm0"]
    x = fused_conv(patches, packed["conv0_w"], s0, b0, relu_out=True)
    H, W = Ho, Wo

    # MaxPool 3x3 s2 p1 (f32 feature slab).
    Ho, Wo = (H + 2 - 3) // 2 + 1, (W + 2 - 3) // 2 + 1
    x4 = x.reshape(N, H, W, CP)
    xpad = jnp.pad(x4, ((0, 0), (1, 1), (1, 1), (0, 0)),
                   constant_values=-jnp.inf)
    wins = jnp.stack([xpad[:, i:i + 2 * Ho:2, j:j + 2 * Wo:2, :].reshape(N * Ho * Wo, CP)
                      for i in range(3) for j in range(3)], axis=0)
    x = pallas_pool(wins, "max")
    H, W = Ho, Wo

    C2 = bn_size * growth_rate                    # real bottleneck width (static)
    for bi, nl in enumerate(block_config):
        for li in range(nl):
            p = packed[f"block{bi}_layer{li}"]
            M = N * H * W
            # norm1+relu -> conv1(1x1) -> norm2+relu   (one fused kernel, bf16 out)
            y1 = fused_conv(x, p["w1"], p["s2"], p["b2"],
                            sin=p["s1"], bin_=p["b1"], relu_out=True,
                            out_dtype=jnp.bfloat16)
            # conv2(3x3, p1) + channel-append (+ norm5 on the final layer):
            # deep-K bf16 taps built from the REAL bottleneck channels only.
            y1p = jnp.pad(y1[:, :C2].reshape(N, H, W, C2),
                          ((0, 0), (1, 1), (1, 1), (0, 0)))
            taps = jnp.concatenate([y1p[:, i:i + H, j:j + W, :].reshape(M, C2)
                                    for i in range(3) for j in range(3)], axis=-1)
            k2 = p["w2"].shape[0]
            taps = jnp.pad(taps, ((0, 0), (0, k2 - taps.shape[1])))
            x = fused_conv(taps, p["w2"], p["so"], p["bo"],
                           residual=x, relu_out=False, alias_residual=True)
        if bi != len(block_config) - 1:
            p = packed[f"trans{bi}"]
            # transition: norm+relu -> conv(1x1)   (one fused kernel)
            x = fused_conv(x, p["w"], p["so"], p["bo"],
                           sin=p["s"], bin_=p["b"], relu_out=False)
            if not (small and bi > 0):
                Ho, Wo = H // 2, W // 2
                x4 = x.reshape(N, H, W, CP)
                wins = jnp.stack(
                    [x4[:, i:2 * Ho:2, j:2 * Wo:2, :].reshape(N * Ho * Wo, CP)
                     for i in range(2) for j in range(2)], axis=0)
                x = pallas_pool(wins, "avg")
                H, W = Ho, Wo

    nf = num_init_features
    for bi, nl in enumerate(block_config):
        nf += nl * growth_rate
        if bi != len(block_config) - 1:
            nf //= 2
    out = x.reshape(N, H, W, CP)[..., :nf]
    return jnp.transpose(out, (0, 3, 1, 2))              # NHWC -> NCHW


# ---------------------------------------------------------------------------
# Pure-JAX (lax) reference.  Same math as the Pallas path: bf16 matmul
# operands, f32 accumulation, f32 BN/ReLU/pool.
# ---------------------------------------------------------------------------

def _ref_conv(x, w, stride, pad):
    return lax.conv_general_dilated(
        x.astype(jnp.bfloat16), w.astype(jnp.bfloat16),
        window_strides=(stride, stride),
        padding=[(pad, pad), (pad, pad)],
        dimension_numbers=("NHWC", "HWIO", "NHWC"),
        preferred_element_type=jnp.float32)


def _ref_bn(x, bnp, relu):
    gamma, beta, mean, var = bnp
    y = (x - mean) / jnp.sqrt(var + 1e-5) * gamma + beta
    return jnp.maximum(y, 0.0) if relu else y


def densenet_reference(x_nchw, params, *, block_config, small=0):
    x = jnp.transpose(x_nchw, (0, 2, 3, 1)).astype(jnp.float32)
    x = _ref_conv(x, params["conv0"], 2, 3)
    x = _ref_bn(x, params["norm0"], True)
    x = lax.reduce_window(x, -jnp.inf, lax.max, (1, 3, 3, 1), (1, 2, 2, 1),
                          [(0, 0), (1, 1), (1, 1), (0, 0)])
    for i, num_layers in enumerate(block_config):
        for l in range(num_layers):
            p = params[f"block{i}_layer{l}"]
            y = _ref_bn(x, p["norm1"], True)
            y = _ref_conv(y, p["conv1"], 1, 0)
            y = _ref_bn(y, p["norm2"], True)
            y = _ref_conv(y, p["conv2"], 1, 1)
            x = jnp.concatenate([x, y], axis=-1)
        if i != len(block_config) - 1:
            p = params[f"trans{i}"]
            x = _ref_bn(x, p["norm"], True)
            x = _ref_conv(x, p["conv"], 1, 0)
            if not (small and i > 0):
                x = lax.reduce_window(x, 0.0, lax.add, (1, 2, 2, 1),
                                      (1, 2, 2, 1), "VALID") / 4.0
    x = _ref_bn(x, params["norm5"], False)
    return jnp.transpose(x, (0, 3, 1, 2))


# ---------------------------------------------------------------------------
# Deterministic parameter init (shapes follow the module's __init__)
# ---------------------------------------------------------------------------

def init_params(key, *, growth_rate, block_config, num_init_features, bn_size):
    keys = iter(jax.random.split(key, 4096))

    def conv_w(kh, kw, cin, cout):
        fan_in = kh * kw * cin
        return (jax.random.normal(next(keys), (kh, kw, cin, cout), jnp.float32)
                * (2.0 / fan_in) ** 0.5)

    def bn_p(c):
        gamma = jax.random.uniform(next(keys), (c,), jnp.float32, 0.5, 1.5)
        beta = jax.random.normal(next(keys), (c,), jnp.float32) * 0.1
        mean = jax.random.normal(next(keys), (c,), jnp.float32) * 0.1
        var = jax.random.uniform(next(keys), (c,), jnp.float32, 0.5, 1.5)
        return (gamma, beta, mean, var)

    params = {"conv0": conv_w(7, 7, 3, num_init_features),
              "norm0": bn_p(num_init_features)}
    nf = num_init_features
    for i, num_layers in enumerate(block_config):
        for l in range(num_layers):
            cin = nf + l * growth_rate
            params[f"block{i}_layer{l}"] = {
                "norm1": bn_p(cin),
                "conv1": conv_w(1, 1, cin, bn_size * growth_rate),
                "norm2": bn_p(bn_size * growth_rate),
                "conv2": conv_w(3, 3, bn_size * growth_rate, growth_rate),
            }
        nf = nf + num_layers * growth_rate
        if i != len(block_config) - 1:
            params[f"trans{i}"] = {"norm": bn_p(nf),
                                   "conv": conv_w(1, 1, nf, nf // 2)}
            nf = nf // 2
    params["norm5"] = bn_p(nf)
    # TODO(synk): self.classifier (Linear) is dead code in forward(); not materialized.
    return params


# ---------------------------------------------------------------------------
# Main
# ---------------------------------------------------------------------------

if __name__ == "__main__":
    growth_rate = 8
    block_config = (2, 2)
    num_init_features = 16
    bn_size = 2
    small = 0

    key = jax.random.PRNGKey(0)
    kx, kp = jax.random.split(key)
    x = jax.random.normal(kx, (2, 3, 32, 32), jnp.float32)   # NCHW, like PyTorch
    raw = init_params(kp, growth_rate=growth_rate, block_config=block_config,
                      num_init_features=num_init_features, bn_size=bn_size)
    packed = pack_params(raw, growth_rate=growth_rate, block_config=block_config,
                         num_init_features=num_init_features, bn_size=bn_size)

    fwd = jax.jit(functools.partial(
        densenet_forward, block_config=block_config, growth_rate=growth_rate,
        num_init_features=num_init_features, bn_size=bn_size, small=small))
    out = jax.block_until_ready(fwd(x, packed))

    ref = jax.block_until_ready(
        densenet_reference(x, raw, block_config=block_config, small=small))

    assert out.shape == ref.shape == (2, 32, 4, 4)
    np.testing.assert_allclose(np.asarray(out), np.asarray(ref),
                               rtol=2e-2, atol=2e-2)
    print("KERNEL_OK")
</pallas_src>

<mosaic_0001>
module attributes {stable_mosaic.version = 11 : i64} {
  func.func @_fused_conv_kernel(%arg0: i32, %arg1: memref<512x256xbf16, #tpu.memory_space<vmem>>, %arg2: memref<256x128xbf16, #tpu.memory_space<vmem>>, %arg3: memref<1x128xf32, #tpu.memory_space<vmem>>, %arg4: memref<1x128xf32, #tpu.memory_space<vmem>>, %arg5: memref<512x128xf32, #tpu.memory_space<vmem>>) attributes {dimension_semantics = [#tpu.dimension_semantics<parallel>], iteration_bounds = array<i64: 1>, scalar_prefetch = 0 : i64, scratch_operands = 0 : i64, tpu.core_type = #tpu.core_type<tc>, window_params = [{transform_indices = @transform_0, window_bounds = array<i64: 512, 256>}, {pipeline_mode = #tpu.pipeline_mode<synchronous>, transform_indices = @transform_1, window_bounds = array<i64: 256, 128>}, {pipeline_mode = #tpu.pipeline_mode<synchronous>, transform_indices = @transform_2, window_bounds = array<i64: 1, 128>}, {pipeline_mode = #tpu.pipeline_mode<synchronous>, transform_indices = @transform_3, window_bounds = array<i64: 1, 128>}, {transform_indices = @transform_4, window_bounds = array<i64: 512, 128>}]} {
    %c0 = arith.constant 0 : index
    %c0_0 = arith.constant 0 : index
    %0 = vector.load %arg1[%c0, %c0_0] : memref<512x256xbf16, #tpu.memory_space<vmem>>, vector<512x256xbf16>
    %c0_1 = arith.constant 0 : index
    %c0_2 = arith.constant 0 : index
    %1 = vector.load %arg2[%c0_1, %c0_2] : memref<256x128xbf16, #tpu.memory_space<vmem>>, vector<256x128xbf16>
    %cst = arith.constant dense<0.000000e+00> : vector<512x128xf32>
    %2 = tpu.matmul %0, %1, %cst {dimension_numbers = #tpu.dot_dimension_numbers<[1], [0], [0], [1], [0, 0, 1, 1], [], []>} : vector<512x256xbf16>, vector<256x128xbf16>, vector<512x128xf32> -> vector<512x128xf32>
    %c0_3 = arith.constant 0 : index
    %c0_4 = arith.constant 0 : index
    %3 = vector.load %arg3[%c0_3, %c0_4] : memref<1x128xf32, #tpu.memory_space<vmem>>, vector<1x128xf32>
    %4 = vector.broadcast %3 : vector<1x128xf32> to vector<512x128xf32>
    %5 = arith.mulf %2, %4 : vector<512x128xf32>
    %c0_5 = arith.constant 0 : index
    %c0_6 = arith.constant 0 : index
    %6 = vector.load %arg4[%c0_5, %c0_6] : memref<1x128xf32, #tpu.memory_space<vmem>>, vector<1x128xf32>
    %7 = vector.broadcast %6 : vector<1x128xf32> to vector<512x128xf32>
    %8 = arith.addf %5, %7 : vector<512x128xf32>
    %cst_7 = arith.constant 0.000000e+00 : f32
    %9 = vector.broadcast %cst_7 : f32 to vector<512x128xf32>
    %10 = arith.maximumf %8, %9 : vector<512x128xf32>
    %c0_8 = arith.constant 0 : index
    %c0_9 = arith.constant 0 : index
    %11 = vector.load %arg5[%c0_8, %c0_9] : memref<512x128xf32, #tpu.memory_space<vmem>>, vector<512x128xf32>
    tpu.vector_store %arg5[%c0_8, %c0_9], %10 {strides = array<i32>} : memref<512x128xf32, #tpu.memory_space<vmem>>, vector<512x128xf32>,
    return
  }
  func.func @transform_0(%arg0: i32) -> (i32, i32) {
    %c0_i32 = arith.constant 0 : i32
    %c0_i32_0 = arith.constant 0 : i32
    return %arg0, %c0_i32 : i32, i32
  }
  func.func @transform_1(%arg0: i32) -> (i32, i32) {
    %c0_i32 = arith.constant 0 : i32
    %c0_i32_0 = arith.constant 0 : i32
    %c0_i32_1 = arith.constant 0 : i32
    return %c0_i32, %c0_i32_0 : i32, i32
  }
  func.func @transform_2(%arg0: i32) -> (i32, i32) {
    %c0_i32 = arith.constant 0 : i32
    %c0_i32_0 = arith.constant 0 : i32
    %c0_i32_1 = arith.constant 0 : i32
    return %c0_i32, %c0_i32_0 : i32, i32
  }
  func.func @transform_3(%arg0: i32) -> (i32, i32) {
    %c0_i32 = arith.constant 0 : i32
    %c0_i32_0 = arith.constant 0 : i32
    %c0_i32_1 = arith.constant 0 : i32
    return %c0_i32, %c0_i32_0 : i32, i32
  }
  func.func @transform_4(%arg0: i32) -> (i32, i32) {
    %c0_i32 = arith.constant 0 : i32
    %c0_i32_0 = arith.constant 0 : i32
    return %arg0, %c0_i32 : i32, i32
  }
}

module attributes {stable_mosaic.version = 11 : i64} {
  func.func @_fused_conv_kernel(%arg0: i32, %arg1: memref<128x128xf32, #tpu.memory_space<vmem>>, %arg2: memref<128x128xbf16, #tpu.memory_space<vmem>>, %arg3: memref<1x128xf32, #tpu.memory_space<vmem>>, %arg4: memref<1x128xf32, #tpu.memory_space<vmem>>, %arg5: memref<1x128xf32, #tpu.memory_space<vmem>>, %arg6: memref<1x128xf32, #tpu.memory_space<vmem>>, %arg7: memref<128x128xbf16, #tpu.memory_space<vmem>>) attributes {dimension_semantics = [#tpu.dimension_semantics<parallel>], iteration_bounds = array<i64: 1>, scalar_prefetch = 0 : i64, scratch_operands = 0 : i64, tpu.core_type = #tpu.core_type<tc>, window_params = [{transform_indices = @transform_0, window_bounds = array<i64: 128, 128>}, {pipeline_mode = #tpu.pipeline_mode<synchronous>, transform_indices = @transform_1, window_bounds = array<i64: 128, 128>}, {pipeline_mode = #tpu.pipeline_mode<synchronous>, transform_indices = @transform_2, window_bounds = array<i64: 1, 128>}, {pipeline_mode = #tpu.pipeline_mode<synchronous>, transform_indices = @transform_3, window_bounds = array<i64: 1, 128>}, {pipeline_mode = #tpu.pipeline_mode<synchronous>, transform_indices = @transform_4, window_bounds = array<i64: 1, 128>}, {pipeline_mode = #tpu.pipeline_mode<synchronous>, transform_indices = @transform_5, window_bounds = array<i64: 1, 128>}, {transform_indices = @transform_6, window_bounds = array<i64: 128, 128>}]} {
    %c0 = arith.constant 0 : index
    %c0_0 = arith.constant 0 : index
    %0 = vector.load %arg1[%c0, %c0_0] : memref<128x128xf32, #tpu.memory_space<vmem>>, vector<128x128xf32>
    %c0_1 = arith.constant 0 : index
    %c0_2 = arith.constant 0 : index
    %1 = vector.load %arg3[%c0_1, %c0_2] : memref<1x128xf32, #tpu.memory_space<vmem>>, vector<1x128xf32>
    %2 = vector.broadcast %1 : vector<1x128xf32> to vector<128x128xf32>
    %3 = arith.mulf %0, %2 : vector<128x128xf32>
    %c0_3 = arith.constant 0 : index
    %c0_4 = arith.constant 0 : index
    %4 = vector.load %arg4[%c0_3, %c0_4] : memref<1x128xf32, #tpu.memory_space<vmem>>, vector<1x128xf32>
    %5 = vector.broadcast %4 : vector<1x128xf32> to vector<128x128xf32>
    %6 = arith.addf %3, %5 : vector<128x128xf32>
    %cst = arith.constant 0.000000e+00 : f32
    %7 = vector.broadcast %cst : f32 to vector<128x128xf32>
    %8 = arith.maximumf %6, %7 : vector<128x128xf32>
    %9 = arith.truncf %8 : vector<128x128xf32> to vector<128x128xbf16>
    %c0_5 = arith.constant 0 : index
    %c0_6 = arith.constant 0 : index
    %10 = vector.load %arg2[%c0_5, %c0_6] : memref<128x128xbf16, #tpu.memory_space<vmem>>, vector<128x128xbf16>
    %cst_7 = arith.constant dense<0.000000e+00> : vector<128x128xf32>
    %11 = tpu.matmul %9, %10, %cst_7 {dimension_numbers = #tpu.dot_dimension_numbers<[1], [0], [0], [1], [0, 0, 1, 1], [], []>} : vector<128x128xbf16>, vector<128x128xbf16>, vector<128x128xf32> -> vector<128x128xf32>
    %c0_8 = arith.constant 0 : index
    %c0_9 = arith.constant 0 : index
    %12 = vector.load %arg5[%c0_8, %c0_9] : memref<1x128xf32, #tpu.memory_space<vmem>>, vector<1x128xf32>
    %13 = vector.broadcast %12 : vector<1x128xf32> to vector<128x128xf32>
    %14 = arith.mulf %11, %13 : vector<128x128xf32>
    %c0_10 = arith.constant 0 : index
    %c0_11 = arith.constant 0 : index
    %15 = vector.load %arg6[%c0_10, %c0_11] : memref<1x128xf32, #tpu.memory_space<vmem>>, vector<1x128xf32>
    %16 = vector.broadcast %15 : vector<1x128xf32> to vector<128x128xf32>
    %17 = arith.addf %14, %16 : vector<128x128xf32>
    %cst_12 = arith.constant 0.000000e+00 : f32
    %18 = vector.broadcast %cst_12 : f32 to vector<128x128xf32>
    %19 = arith.maximumf %17, %18 : vector<128x128xf32>
    %20 = arith.truncf %19 : vector<128x128xf32> to vector<128x128xbf16>
    %c0_13 = arith.constant 0 : index
    %c0_14 = arith.constant 0 : index
    %21 = vector.load %arg7[%c0_13, %c0_14] : memref<128x128xbf16, #tpu.memory_space<vmem>>, vector<128x128xbf16>
    tpu.vector_store %arg7[%c0_13, %c0_14], %20 {strides = array<i32>} : memref<128x128xbf16, #tpu.memory_space<vmem>>, vector<128x128xbf16>,
    return
  }
  func.func @transform_0(%arg0: i32) -> (i32, i32) {
    %c0_i32 = arith.constant 0 : i32
    %c0_i32_0 = arith.constant 0 : i32
    return %arg0, %c0_i32 : i32, i32
  }
  func.func @transform_1(%arg0: i32) -> (i32, i32) {
    %c0_i32 = arith.constant 0 : i32
    %c0_i32_0 = arith.constant 0 : i32
    %c0_i32_1 = arith.constant 0 : i32
    return %c0_i32, %c0_i32_0 : i32, i32
  }
  func.func @transform_2(%arg0: i32) -> (i32, i32) {
    %c0_i32 = arith.constant 0 : i32
    %c0_i32_0 = arith.constant 0 : i32
    %c0_i32_1 = arith.constant 0 : i32
    return %c0_i32, %c0_i32_0 : i32, i32
  }
  func.func @transform_3(%arg0: i32) -> (i32, i32) {
    %c0_i32 = arith.constant 0 : i32
    %c0_i32_0 = arith.constant 0 : i32
    %c0_i32_1 = arith.constant 0 : i32
    return %c0_i32, %c0_i32_0 : i32, i32
  }
  func.func @transform_4(%arg0: i32) -> (i32, i32) {
    %c0_i32 = arith.constant 0 : i32
    %c0_i32_0 = arith.constant 0 : i32
    %c0_i32_1 = arith.constant 0 : i32
    return %c0_i32, %c0_i32_0 : i32, i32
  }
  func.func @transform_5(%arg0: i32) -> (i32, i32) {
    %c0_i32 = arith.constant 0 : i32
    %c0_i32_0 = arith.constant 0 : i32
    %c0_i32_1 = arith.constant 0 : i32
    return %c0_i32, %c0_i32_0 : i32, i32
  }
  func.func @transform_6(%arg0: i32) -> (i32, i32) {
    %c0_i32 = arith.constant 0 : i32
    %c0_i32_0 = arith.constant 0 : i32
    return %arg0, %c0_i32 : i32, i32
  }
}

module attributes {stable_mosaic.version = 11 : i64} {
  func.func @_pool_kernel(%arg0: i32, %arg1: memref<9x128x128xf32, #tpu.memory_space<vmem>>, %arg2: memref<128x128xf32, #tpu.memory_space<vmem>>) attributes {dimension_semantics = [#tpu.dimension_semantics<parallel>], iteration_bounds = array<i64: 1>, scalar_prefetch = 0 : i64, scratch_operands = 0 : i64, tpu.core_type = #tpu.core_type<tc>, window_params = [{transform_indices = @transform_0, window_bounds = array<i64: 9, 128, 128>}, {transform_indices = @transform_1, window_bounds = array<i64: 128, 128>}]} {
    %c0 = arith.constant 0 : index
    %c0_0 = arith.constant 0 : index
    %c0_1 = arith.constant 0 : index
    %0 = vector.load %arg1[%c0, %c0_0, %c0_1] : memref<9x128x128xf32, #tpu.memory_space<vmem>>, vector<1x128x128xf32>
    %1 = vector.shape_cast %0 : vector<1x128x128xf32> to vector<128x128xf32>
    %c1 = arith.constant 1 : index
    %c0_2 = arith.constant 0 : index
    %c0_3 = arith.constant 0 : index
    %2 = vector.load %arg1[%c1, %c0_2, %c0_3] : memref<9x128x128xf32, #tpu.memory_space<vmem>>, vector<1x128x128xf32>
    %3 = vector.shape_cast %2 : vector<1x128x128xf32> to vector<128x128xf32>
    %4 = arith.maximumf %1, %3 : vector<128x128xf32>
    %c2 = arith.constant 2 : index
    %c0_4 = arith.constant 0 : index
    %c0_5 = arith.constant 0 : index
    %5 = vector.load %arg1[%c2, %c0_4, %c0_5] : memref<9x128x128xf32, #tpu.memory_space<vmem>>, vector<1x128x128xf32>
    %6 = vector.shape_cast %5 : vector<1x128x128xf32> to vector<128x128xf32>
    %7 = arith.maximumf %4, %6 : vector<128x128xf32>
    %c3 = arith.constant 3 : index
    %c0_6 = arith.constant 0 : index
    %c0_7 = arith.constant 0 : index
    %8 = vector.load %arg1[%c3, %c0_6, %c0_7] : memref<9x128x128xf32, #tpu.memory_space<vmem>>, vector<1x128x128xf32>
    %9 = vector.shape_cast %8 : vector<1x128x128xf32> to vector<128x128xf32>
    %10 = arith.maximumf %7, %9 : vector<128x128xf32>
    %c4 = arith.constant 4 : index
    %c0_8 = arith.constant 0 : index
    %c0_9 = arith.constant 0 : index
    %11 = vector.load %arg1[%c4, %c0_8, %c0_9] : memref<9x128x128xf32, #tpu.memory_space<vmem>>, vector<1x128x128xf32>
    %12 = vector.shape_cast %11 : vector<1x128x128xf32> to vector<128x128xf32>
    %13 = arith.maximumf %10, %12 : vector<128x128xf32>
    %c5 = arith.constant 5 : index
    %c0_10 = arith.constant 0 : index
    %c0_11 = arith.constant 0 : index
    %14 = vector.load %arg1[%c5, %c0_10, %c0_11] : memref<9x128x128xf32, #tpu.memory_space<vmem>>, vector<1x128x128xf32>
    %15 = vector.shape_cast %14 : vector<1x128x128xf32> to vector<128x128xf32>
    %16 = arith.maximumf %13, %15 : vector<128x128xf32>
    %c6 = arith.constant 6 : index
    %c0_12 = arith.constant 0 : index
    %c0_13 = arith.constant 0 : index
    %17 = vector.load %arg1[%c6, %c0_12, %c0_13] : memref<9x128x128xf32, #tpu.memory_space<vmem>>, vector<1x128x128xf32>
    %18 = vector.shape_cast %17 : vector<1x128x128xf32> to vector<128x128xf32>
    %19 = arith.maximumf %16, %18 : vector<128x128xf32>
    %c7 = arith.constant 7 : index
    %c0_14 = arith.constant 0 : index
    %c0_15 = arith.constant 0 : index
    %20 = vector.load %arg1[%c7, %c0_14, %c0_15] : memref<9x128x128xf32, #tpu.memory_space<vmem>>, vector<1x128x128xf32>
    %21 = vector.shape_cast %20 : vector<1x128x128xf32> to vector<128x128xf32>
    %22 = arith.maximumf %19, %21 : vector<128x128xf32>
    %c8 = arith.constant 8 : index
    %c0_16 = arith.constant 0 : index
    %c0_17 = arith.constant 0 : index
    %23 = vector.load %arg1[%c8, %c0_16, %c0_17] : memref<9x128x128xf32, #tpu.memory_space<vmem>>, vector<1x128x128xf32>
    %24 = vector.shape_cast %23 : vector<1x128x128xf32> to vector<128x128xf32>
    %25 = arith.maximumf %22, %24 : vector<128x128xf32>
    %c0_18 = arith.constant 0 : index
    %c0_19 = arith.constant 0 : index
    %26 = vector.load %arg2[%c0_18, %c0_19] : memref<128x128xf32, #tpu.memory_space<vmem>>, vector<128x128xf32>
    tpu.vector_store %arg2[%c0_18, %c0_19], %25 {strides = array<i32>} : memref<128x128xf32, #tpu.memory_space<vmem>>, vector<128x128xf32>,
    return
  }
  func.func @transform_0(%arg0: i32) -> (i32, i32, i32) {
    %c0_i32 = arith.constant 0 : i32
    %c0_i32_0 = arith.constant 0 : i32
    %c0_i32_1 = arith.constant 0 : i32
    return %c0_i32, %arg0, %c0_i32_0 : i32, i32, i32
  }
  func.func @transform_1(%arg0: i32) -> (i32, i32) {
    %c0_i32 = arith.constant 0 : i32
    %c0_i32_0 = arith.constant 0 : i32
    return %arg0, %c0_i32 : i32, i32
  }
}

module attributes {stable_mosaic.version = 11 : i64} {
  func.func @_fused_conv_kernel(%arg0: i32, %arg1: memref<128x256xbf16, #tpu.memory_space<vmem>>, %arg2: memref<256x128xbf16, #tpu.memory_space<vmem>>, %arg3: memref<1x128xf32, #tpu.memory_space<vmem>>, %arg4: memref<1x128xf32, #tpu.memory_space<vmem>>, %arg5: memref<128x128xf32, #tpu.memory_space<vmem>>, %arg6: memref<128x128xf32, #tpu.memory_space<vmem>>) attributes {dimension_semantics = [#tpu.dimension_semantics<parallel>], iteration_bounds = array<i64: 1>, scalar_prefetch = 0 : i64, scratch_operands = 0 : i64, tpu.core_type = #tpu.core_type<tc>, window_params = [{transform_indices = @transform_0, window_bounds = array<i64: 128, 256>}, {pipeline_mode = #tpu.pipeline_mode<synchronous>, transform_indices = @transform_1, window_bounds = array<i64: 256, 128>}, {pipeline_mode = #tpu.pipeline_mode<synchronous>, transform_indices = @transform_2, window_bounds = array<i64: 1, 128>}, {pipeline_mode = #tpu.pipeline_mode<synchronous>, transform_indices = @transform_3, window_bounds = array<i64: 1, 128>}, {transform_indices = @transform_4, window_bounds = array<i64: 128, 128>}, {transform_indices = @transform_5, window_bounds = array<i64: 128, 128>}]} {
    %c0 = arith.constant 0 : index
    %c0_0 = arith.constant 0 : index
    %0 = vector.load %arg1[%c0, %c0_0] : memref<128x256xbf16, #tpu.memory_space<vmem>>, vector<128x256xbf16>
    %c0_1 = arith.constant 0 : index
    %c0_2 = arith.constant 0 : index
    %1 = vector.load %arg2[%c0_1, %c0_2] : memref<256x128xbf16, #tpu.memory_space<vmem>>, vector<256x128xbf16>
    %cst = arith.constant dense<0.000000e+00> : vector<128x128xf32>
    %2 = tpu.matmul %0, %1, %cst {dimension_numbers = #tpu.dot_dimension_numbers<[1], [0], [0], [1], [0, 0, 1, 1], [], []>} : vector<128x256xbf16>, vector<256x128xbf16>, vector<128x128xf32> -> vector<128x128xf32>
    %c0_3 = arith.constant 0 : index
    %c0_4 = arith.constant 0 : index
    %3 = vector.load %arg5[%c0_3, %c0_4] : memref<128x128xf32, #tpu.memory_space<vmem>>, vector<128x128xf32>
    %4 = arith.addf %2, %3 : vector<128x128xf32>
    %c0_5 = arith.constant 0 : index
    %c0_6 = arith.constant 0 : index
    %5 = vector.load %arg3[%c0_5, %c0_6] : memref<1x128xf32, #tpu.memory_space<vmem>>, vector<1x128xf32>
    %6 = vector.broadcast %5 : vector<1x128xf32> to vector<128x128xf32>
    %7 = arith.mulf %4, %6 : vector<128x128xf32>
    %c0_7 = arith.constant 0 : index
    %c0_8 = arith.constant 0 : index
    %8 = vector.load %arg4[%c0_7, %c0_8] : memref<1x128xf32, #tpu.memory_space<vmem>>, vector<1x128xf32>
    %9 = vector.broadcast %8 : vector<1x128xf32> to vector<128x128xf32>
    %10 = arith.addf %7, %9 : vector<128x128xf32>
    %c0_9 = arith.constant 0 : index
    %c0_10 = arith.constant 0 : index
    %11 = vector.load %arg6[%c0_9, %c0_10] : memref<128x128xf32, #tpu.memory_space<vmem>>, vector<128x128xf32>
    tpu.vector_store %arg6[%c0_9, %c0_10], %10 {strides = array<i32>} : memref<128x128xf32, #tpu.memory_space<vmem>>, vector<128x128xf32>,
    return
  }
  func.func @transform_0(%arg0: i32) -> (i32, i32) {
    %c0_i32 = arith.constant 0 : i32
    %c0_i32_0 = arith.constant 0 : i32
    return %arg0, %c0_i32 : i32, i32
  }
  func.func @transform_1(%arg0: i32) -> (i32, i32) {
    %c0_i32 = arith.constant 0 : i32
    %c0_i32_0 = arith.constant 0 : i32
    %c0_i32_1 = arith.constant 0 : i32
    return %c0_i32, %c0_i32_0 : i32, i32
  }
  func.func @transform_2(%arg0: i32) -> (i32, i32) {
    %c0_i32 = arith.constant 0 : i32
    %c0_i32_0 = arith.constant 0 : i32
    %c0_i32_1 = arith.constant 0 : i32
    return %c0_i32, %c0_i32_0 : i32, i32
  }
  func.func @transform_3(%arg0: i32) -> (i32, i32) {
    %c0_i32 = arith.constant 0 : i32
    %c0_i32_0 = arith.constant 0 : i32
    %c0_i32_1 = arith.constant 0 : i32
    return %c0_i32, %c0_i32_0 : i32, i32
  }
  func.func @transform_4(%arg0: i32) -> (i32, i32) {
    %c0_i32 = arith.constant 0 : i32
    %c0_i32_0 = arith.constant 0 : i32
    return %arg0, %c0_i32 : i32, i32
  }
  func.func @transform_5(%arg0: i32) -> (i32, i32) {
    %c0_i32 = arith.constant 0 : i32
    %c0_i32_0 = arith.constant 0 : i32
    return %arg0, %c0_i32 : i32, i32
  }
}

module attributes {stable_mosaic.version = 11 : i64} {
  func.func @_fused_conv_kernel(%arg0: i32, %arg1: memref<128x128xf32, #tpu.memory_space<vmem>>, %arg2: memref<128x128xbf16, #tpu.memory_space<vmem>>, %arg3: memref<1x128xf32, #tpu.memory_space<vmem>>, %arg4: memref<1x128xf32, #tpu.memory_space<vmem>>, %arg5: memref<1x128xf32, #tpu.memory_space<vmem>>, %arg6: memref<1x128xf32, #tpu.memory_space<vmem>>, %arg7: memref<128x128xf32, #tpu.memory_space<vmem>>) attributes {dimension_semantics = [#tpu.dimension_semantics<parallel>], iteration_bounds = array<i64: 1>, scalar_prefetch = 0 : i64, scratch_operands = 0 : i64, tpu.core_type = #tpu.core_type<tc>, window_params = [{transform_indices = @transform_0, window_bounds = array<i64: 128, 128>}, {pipeline_mode = #tpu.pipeline_mode<synchronous>, transform_indices = @transform_1, window_bounds = array<i64: 128, 128>}, {pipeline_mode = #tpu.pipeline_mode<synchronous>, transform_indices = @transform_2, window_bounds = array<i64: 1, 128>}, {pipeline_mode = #tpu.pipeline_mode<synchronous>, transform_indices = @transform_3, window_bounds = array<i64: 1, 128>}, {pipeline_mode = #tpu.pipeline_mode<synchronous>, transform_indices = @transform_4, window_bounds = array<i64: 1, 128>}, {pipeline_mode = #tpu.pipeline_mode<synchronous>, transform_indices = @transform_5, window_bounds = array<i64: 1, 128>}, {transform_indices = @transform_6, window_bounds = array<i64: 128, 128>}]} {
    %c0 = arith.constant 0 : index
    %c0_0 = arith.constant 0 : index
    %0 = vector.load %arg1[%c0, %c0_0] : memref<128x128xf32, #tpu.memory_space<vmem>>, vector<128x128xf32>
    %c0_1 = arith.constant 0 : index
    %c0_2 = arith.constant 0 : index
    %1 = vector.load %arg3[%c0_1, %c0_2] : memref<1x128xf32, #tpu.memory_space<vmem>>, vector<1x128xf32>
    %2 = vector.broadcast %1 : vector<1x128xf32> to vector<128x128xf32>
    %3 = arith.mulf %0, %2 : vector<128x128xf32>
    %c0_3 = arith.constant 0 : index
    %c0_4 = arith.constant 0 : index
    %4 = vector.load %arg4[%c0_3, %c0_4] : memref<1x128xf32, #tpu.memory_space<vmem>>, vector<1x128xf32>
    %5 = vector.broadcast %4 : vector<1x128xf32> to vector<128x128xf32>
    %6 = arith.addf %3, %5 : vector<128x128xf32>
    %cst = arith.constant 0.000000e+00 : f32
    %7 = vector.broadcast %cst : f32 to vector<128x128xf32>
    %8 = arith.maximumf %6, %7 : vector<128x128xf32>
    %9 = arith.truncf %8 : vector<128x128xf32> to vector<128x128xbf16>
    %c0_5 = arith.constant 0 : index
    %c0_6 = arith.constant 0 : index
    %10 = vector.load %arg2[%c0_5, %c0_6] : memref<128x128xbf16, #tpu.memory_space<vmem>>, vector<128x128xbf16>
    %cst_7 = arith.constant dense<0.000000e+00> : vector<128x128xf32>
    %11 = tpu.matmul %9, %10, %cst_7 {dimension_numbers = #tpu.dot_dimension_numbers<[1], [0], [0], [1], [0, 0, 1, 1], [], []>} : vector<128x128xbf16>, vector<128x128xbf16>, vector<128x128xf32> -> vector<128x128xf32>
    %c0_8 = arith.constant 0 : index
    %c0_9 = arith.constant 0 : index
    %12 = vector.load %arg5[%c0_8, %c0_9] : memref<1x128xf32, #tpu.memory_space<vmem>>, vector<1x128xf32>
    %13 = vector.broadcast %12 : vector<1x128xf32> to vector<128x128xf32>
    %14 = arith.mulf %11, %13 : vector<128x128xf32>
    %c0_10 = arith.constant 0 : index
    %c0_11 = arith.constant 0 : index
    %15 = vector.load %arg6[%c0_10, %c0_11] : memref<1x128xf32, #tpu.memory_space<vmem>>, vector<1x128xf32>
    %16 = vector.broadcast %15 : vector<1x128xf32> to vector<128x128xf32>
    %17 = arith.addf %14, %16 : vector<128x128xf32>
    %c0_12 = arith.constant 0 : index
    %c0_13 = arith.constant 0 : index
    %18 = vector.load %arg7[%c0_12, %c0_13] : memref<128x128xf32, #tpu.memory_space<vmem>>, vector<128x128xf32>
    tpu.vector_store %arg7[%c0_12, %c0_13], %17 {strides = array<i32>} : memref<128x128xf32, #tpu.memory_space<vmem>>, vector<128x128xf32>,
    return
  }
  func.func @transform_0(%arg0: i32) -> (i32, i32) {
    %c0_i32 = arith.constant 0 : i32
    %c0_i32_0 = arith.constant 0 : i32
    return %arg0, %c0_i32 : i32, i32
  }
  func.func @transform_1(%arg0: i32) -> (i32, i32) {
    %c0_i32 = arith.constant 0 : i32
    %c0_i32_0 = arith.constant 0 : i32
    %c0_i32_1 = arith.constant 0 : i32
    return %c0_i32, %c0_i32_0 : i32, i32
  }
  func.func @transform_2(%arg0: i32) -> (i32, i32) {
    %c0_i32 = arith.constant 0 : i32
    %c0_i32_0 = arith.constant 0 : i32
    %c0_i32_1 = arith.constant 0 : i32
    return %c0_i32, %c0_i32_0 : i32, i32
  }
  func.func @transform_3(%arg0: i32) -> (i32, i32) {
    %c0_i32 = arith.constant 0 : i32
    %c0_i32_0 = arith.constant 0 : i32
    %c0_i32_1 = arith.constant 0 : i32
    return %c0_i32, %c0_i32_0 : i32, i32
  }
  func.func @transform_4(%arg0: i32) -> (i32, i32) {
    %c0_i32 = arith.constant 0 : i32
    %c0_i32_0 = arith.constant 0 : i32
    %c0_i32_1 = arith.constant 0 : i32
    return %c0_i32, %c0_i32_0 : i32, i32
  }
  func.func @transform_5(%arg0: i32) -> (i32, i32) {
    %c0_i32 = arith.constant 0 : i32
    %c0_i32_0 = arith.constant 0 : i32
    %c0_i32_1 = arith.constant 0 : i32
    return %c0_i32, %c0_i32_0 : i32, i32
  }
  func.func @transform_6(%arg0: i32) -> (i32, i32) {
    %c0_i32 = arith.constant 0 : i32
    %c0_i32_0 = arith.constant 0 : i32
    return %arg0, %c0_i32 : i32, i32
  }
}

module attributes {stable_mosaic.version = 11 : i64} {
  func.func @_fused_conv_kernel(%arg0: i32, %arg1: memref<32x128xf32, #tpu.memory_space<vmem>>, %arg2: memref<128x128xbf16, #tpu.memory_space<vmem>>, %arg3: memref<1x128xf32, #tpu.memory_space<vmem>>, %arg4: memref<1x128xf32, #tpu.memory_space<vmem>>, %arg5: memref<1x128xf32, #tpu.memory_space<vmem>>, %arg6: memref<1x128xf32, #tpu.memory_space<vmem>>, %arg7: memref<32x128xbf16, #tpu.memory_space<vmem>>) attributes {dimension_semantics = [#tpu.dimension_semantics<parallel>], iteration_bounds = array<i64: 1>, scalar_prefetch = 0 : i64, scratch_operands = 0 : i64, tpu.core_type = #tpu.core_type<tc>, window_params = [{transform_indices = @transform_0, window_bounds = array<i64: 32, 128>}, {pipeline_mode = #tpu.pipeline_mode<synchronous>, transform_indices = @transform_1, window_bounds = array<i64: 128, 128>}, {pipeline_mode = #tpu.pipeline_mode<synchronous>, transform_indices = @transform_2, window_bounds = array<i64: 1, 128>}, {pipeline_mode = #tpu.pipeline_mode<synchronous>, transform_indices = @transform_3, window_bounds = array<i64: 1, 128>}, {pipeline_mode = #tpu.pipeline_mode<synchronous>, transform_indices = @transform_4, window_bounds = array<i64: 1, 128>}, {pipeline_mode = #tpu.pipeline_mode<synchronous>, transform_indices = @transform_5, window_bounds = array<i64: 1, 128>}, {transform_indices = @transform_6, window_bounds = array<i64: 32, 128>}]} {
    %c0 = arith.constant 0 : index
    %c0_0 = arith.constant 0 : index
    %0 = vector.load %arg1[%c0, %c0_0] : memref<32x128xf32, #tpu.memory_space<vmem>>, vector<32x128xf32>
    %c0_1 = arith.constant 0 : index
    %c0_2 = arith.constant 0 : index
    %1 = vector.load %arg3[%c0_1, %c0_2] : memref<1x128xf32, #tpu.memory_space<vmem>>, vector<1x128xf32>
    %2 = vector.broadcast %1 : vector<1x128xf32> to vector<32x128xf32>
    %3 = arith.mulf %0, %2 : vector<32x128xf32>
    %c0_3 = arith.constant 0 : index
    %c0_4 = arith.constant 0 : index
    %4 = vector.load %arg4[%c0_3, %c0_4] : memref<1x128xf32, #tpu.memory_space<vmem>>, vector<1x128xf32>
    %5 = vector.broadcast %4 : vector<1x128xf32> to vector<32x128xf32>
    %6 = arith.addf %3, %5 : vector<32x128xf32>
    %cst = arith.constant 0.000000e+00 : f32
    %7 = vector.broadcast %cst : f32 to vector<32x128xf32>
    %8 = arith.maximumf %6, %7 : vector<32x128xf32>
    %9 = arith.truncf %8 : vector<32x128xf32> to vector<32x128xbf16>
    %c0_5 = arith.constant 0 : index
    %c0_6 = arith.constant 0 : index
    %10 = vector.load %arg2[%c0_5, %c0_6] : memref<128x128xbf16, #tpu.memory_space<vmem>>, vector<128x128xbf16>
    %cst_7 = arith.constant dense<0.000000e+00> : vector<32x128xf32>
    %11 = tpu.matmul %9, %10, %cst_7 {dimension_numbers = #tpu.dot_dimension_numbers<[1], [0], [0], [1], [0, 0, 1, 1], [], []>} : vector<32x128xbf16>, vector<128x128xbf16>, vector<32x128xf32> -> vector<32x128xf32>
    %c0_8 = arith.constant 0 : index
    %c0_9 = arith.constant 0 : index
    %12 = vector.load %arg5[%c0_8, %c0_9] : memref<1x128xf32, #tpu.memory_space<vmem>>, vector<1x128xf32>
    %13 = vector.broadcast %12 : vector<1x128xf32> to vector<32x128xf32>
    %14 = arith.mulf %11, %13 : vector<32x128xf32>
    %c0_10 = arith.constant 0 : index
    %c0_11 = arith.constant 0 : index
    %15 = vector.load %arg6[%c0_10, %c0_11] : memref<1x128xf32, #tpu.memory_space<vmem>>, vector<1x128xf32>
    %16 = vector.broadcast %15 : vector<1x128xf32> to vector<32x128xf32>
    %17 = arith.addf %14, %16 : vector<32x128xf32>
    %cst_12 = arith.constant 0.000000e+00 : f32
    %18 = vector.broadcast %cst_12 : f32 to vector<32x128xf32>
    %19 = arith.maximumf %17, %18 : vector<32x128xf32>
    %20 = arith.truncf %19 : vector<32x128xf32> to vector<32x128xbf16>
    %c0_13 = arith.constant 0 : index
    %c0_14 = arith.constant 0 : index
    %21 = vector.load %arg7[%c0_13, %c0_14] : memref<32x128xbf16, #tpu.memory_space<vmem>>, vector<32x128xbf16>
    tpu.vector_store %arg7[%c0_13, %c0_14], %20 {strides = array<i32>} : memref<32x128xbf16, #tpu.memory_space<vmem>>, vector<32x128xbf16>,
    return
  }
  func.func @transform_0(%arg0: i32) -> (i32, i32) {
    %c0_i32 = arith.constant 0 : i32
    %c0_i32_0 = arith.constant 0 : i32
    return %arg0, %c0_i32 : i32, i32
  }
  func.func @transform_1(%arg0: i32) -> (i32, i32) {
    %c0_i32 = arith.constant 0 : i32
    %c0_i32_0 = arith.constant 0 : i32
    %c0_i32_1 = arith.constant 0 : i32
    return %c0_i32, %c0_i32_0 : i32, i32
  }
  func.func @transform_2(%arg0: i32) -> (i32, i32) {
    %c0_i32 = arith.constant 0 : i32
    %c0_i32_0 = arith.constant 0 : i32
    %c0_i32_1 = arith.constant 0 : i32
    return %c0_i32, %c0_i32_0 : i32, i32
  }
  func.func @transform_3(%arg0: i32) -> (i32, i32) {
    %c0_i32 = arith.constant 0 : i32
    %c0_i32_0 = arith.constant 0 : i32
    %c0_i32_1 = arith.constant 0 : i32
    return %c0_i32, %c0_i32_0 : i32, i32
  }
  func.func @transform_4(%arg0: i32) -> (i32, i32) {
    %c0_i32 = arith.constant 0 : i32
    %c0_i32_0 = arith.constant 0 : i32
    %c0_i32_1 = arith.constant 0 : i32
    return %c0_i32, %c0_i32_0 : i32, i32
  }
  func.func @transform_5(%arg0: i32) -> (i32, i32) {
    %c0_i32 = arith.constant 0 : i32
    %c0_i32_0 = arith.constant 0 : i32
    %c0_i32_1 = arith.constant 0 : i32
    return %c0_i32, %c0_i32_0 : i32, i32
  }
  func.func @transform_6(%arg0: i32) -> (i32, i32) {
    %c0_i32 = arith.constant 0 : i32
    %c0_i32_0 = arith.constant 0 : i32
    return %arg0, %c0_i32 : i32, i32
  }
}

module attributes {stable_mosaic.version = 11 : i64} {
  func.func @_pool_kernel(%arg0: i32, %arg1: memref<4x32x128xf32, #tpu.memory_space<vmem>>, %arg2: memref<32x128xf32, #tpu.memory_space<vmem>>) attributes {dimension_semantics = [#tpu.dimension_semantics<parallel>], iteration_bounds = array<i64: 1>, scalar_prefetch = 0 : i64, scratch_operands = 0 : i64, tpu.core_type = #tpu.core_type<tc>, window_params = [{transform_indices = @transform_0, window_bounds = array<i64: 4, 32, 128>}, {transform_indices = @transform_1, window_bounds = array<i64: 32, 128>}]} {
    %c0 = arith.constant 0 : index
    %c0_0 = arith.constant 0 : index
    %c0_1 = arith.constant 0 : index
    %0 = vector.load %arg1[%c0, %c0_0, %c0_1] : memref<4x32x128xf32, #tpu.memory_space<vmem>>, vector<1x32x128xf32>
    %1 = vector.shape_cast %0 : vector<1x32x128xf32> to vector<32x128xf32>
    %c1 = arith.constant 1 : index
    %c0_2 = arith.constant 0 : index
    %c0_3 = arith.constant 0 : index
    %2 = vector.load %arg1[%c1, %c0_2, %c0_3] : memref<4x32x128xf32, #tpu.memory_space<vmem>>, vector<1x32x128xf32>
    %3 = vector.shape_cast %2 : vector<1x32x128xf32> to vector<32x128xf32>
    %4 = arith.addf %1, %3 : vector<32x128xf32>
    %c2 = arith.constant 2 : index
    %c0_4 = arith.constant 0 : index
    %c0_5 = arith.constant 0 : index
    %5 = vector.load %arg1[%c2, %c0_4, %c0_5] : memref<4x32x128xf32, #tpu.memory_space<vmem>>, vector<1x32x128xf32>
    %6 = vector.shape_cast %5 : vector<1x32x128xf32> to vector<32x128xf32>
    %7 = arith.addf %4, %6 : vector<32x128xf32>
    %c3 = arith.constant 3 : index
    %c0_6 = arith.constant 0 : index
    %c0_7 = arith.constant 0 : index
    %8 = vector.load %arg1[%c3, %c0_6, %c0_7] : memref<4x32x128xf32, #tpu.memory_space<vmem>>, vector<1x32x128xf32>
    %9 = vector.shape_cast %8 : vector<1x32x128xf32> to vector<32x128xf32>
    %10 = arith.addf %7, %9 : vector<32x128xf32>
    %cst = arith.constant 2.500000e-01 : f32
    %11 = vector.broadcast %cst : f32 to vector<32x128xf32>
    %12 = arith.mulf %10, %11 : vector<32x128xf32>
    %c0_8 = arith.constant 0 : index
    %c0_9 = arith.constant 0 : index
    %13 = vector.load %arg2[%c0_8, %c0_9] : memref<32x128xf32, #tpu.memory_space<vmem>>, vector<32x128xf32>
    tpu.vector_store %arg2[%c0_8, %c0_9], %12 {strides = array<i32>} : memref<32x128xf32, #tpu.memory_space<vmem>>, vector<32x128xf32>,
    return
  }
  func.func @transform_0(%arg0: i32) -> (i32, i32, i32) {
    %c0_i32 = arith.constant 0 : i32
    %c0_i32_0 = arith.constant 0 : i32
    %c0_i32_1 = arith.constant 0 : i32
    return %c0_i32, %arg0, %c0_i32_0 : i32, i32, i32
  }
  func.func @transform_1(%arg0: i32) -> (i32, i32) {
    %c0_i32 = arith.constant 0 : i32
    %c0_i32_0 = arith.constant 0 : i32
    return %arg0, %c0_i32 : i32, i32
  }
}

module attributes {stable_mosaic.version = 11 : i64} {
  func.func @_fused_conv_kernel(%arg0: i32, %arg1: memref<32x256xbf16, #tpu.memory_space<vmem>>, %arg2: memref<256x128xbf16, #tpu.memory_space<vmem>>, %arg3: memref<1x128xf32, #tpu.memory_space<vmem>>, %arg4: memref<1x128xf32, #tpu.memory_space<vmem>>, %arg5: memref<32x128xf32, #tpu.memory_space<vmem>>, %arg6: memref<32x128xf32, #tpu.memory_space<vmem>>) attributes {dimension_semantics = [#tpu.dimension_semantics<parallel>], iteration_bounds = array<i64: 1>, scalar_prefetch = 0 : i64, scratch_operands = 0 : i64, tpu.core_type = #tpu.core_type<tc>, window_params = [{transform_indices = @transform_0, window_bounds = array<i64: 32, 256>}, {pipeline_mode = #tpu.pipeline_mode<synchronous>, transform_indices = @transform_1, window_bounds = array<i64: 256, 128>}, {pipeline_mode = #tpu.pipeline_mode<synchronous>, transform_indices = @transform_2, window_bounds = array<i64: 1, 128>}, {pipeline_mode = #tpu.pipeline_mode<synchronous>, transform_indices = @transform_3, window_bounds = array<i64: 1, 128>}, {transform_indices = @transform_4, window_bounds = array<i64: 32, 128>}, {transform_indices = @transform_5, window_bounds = array<i64: 32, 128>}]} {
    %c0 = arith.constant 0 : index
    %c0_0 = arith.constant 0 : index
    %0 = vector.load %arg1[%c0, %c0_0] : memref<32x256xbf16, #tpu.memory_space<vmem>>, vector<32x256xbf16>
    %c0_1 = arith.constant 0 : index
    %c0_2 = arith.constant 0 : index
    %1 = vector.load %arg2[%c0_1, %c0_2] : memref<256x128xbf16, #tpu.memory_space<vmem>>, vector<256x128xbf16>
    %cst = arith.constant dense<0.000000e+00> : vector<32x128xf32>
    %2 = tpu.matmul %0, %1, %cst {dimension_numbers = #tpu.dot_dimension_numbers<[1], [0], [0], [1], [0, 0, 1, 1], [], []>} : vector<32x256xbf16>, vector<256x128xbf16>, vector<32x128xf32> -> vector<32x128xf32>
    %c0_3 = arith.constant 0 : index
    %c0_4 = arith.constant 0 : index
    %3 = vector.load %arg5[%c0_3, %c0_4] : memref<32x128xf32, #tpu.memory_space<vmem>>, vector<32x128xf32>
    %4 = arith.addf %2, %3 : vector<32x128xf32>
    %c0_5 = arith.constant 0 : index
    %c0_6 = arith.constant 0 : index
    %5 = vector.load %arg3[%c0_5, %c0_6] : memref<1x128xf32, #tpu.memory_space<vmem>>, vector<1x128xf32>
    %6 = vector.broadcast %5 : vector<1x128xf32> to vector<32x128xf32>
    %7 = arith.mulf %4, %6 : vector<32x128xf32>
    %c0_7 = arith.constant 0 : index
    %c0_8 = arith.constant 0 : index
    %8 = vector.load %arg4[%c0_7, %c0_8] : memref<1x128xf32, #tpu.memory_space<vmem>>, vector<1x128xf32>
    %9 = vector.broadcast %8 : vector<1x128xf32> to vector<32x128xf32>
    %10 = arith.addf %7, %9 : vector<32x128xf32>
    %c0_9 = arith.constant 0 : index
    %c0_10 = arith.constant 0 : index
    %11 = vector.load %arg6[%c0_9, %c0_10] : memref<32x128xf32, #tpu.memory_space<vmem>>, vector<32x128xf32>
    tpu.vector_store %arg6[%c0_9, %c0_10], %10 {strides = array<i32>} : memref<32x128xf32, #tpu.memory_space<vmem>>, vector<32x128xf32>,
    return
  }
  func.func @transform_0(%arg0: i32) -> (i32, i32) {
    %c0_i32 = arith.constant 0 : i32
    %c0_i32_0 = arith.constant 0 : i32
    return %arg0, %c0_i32 : i32, i32
  }
  func.func @transform_1(%arg0: i32) -> (i32, i32) {
    %c0_i32 = arith.constant 0 : i32
    %c0_i32_0 = arith.constant 0 : i32
    %c0_i32_1 = arith.constant 0 : i32
    return %c0_i32, %c0_i32_0 : i32, i32
  }
  func.func @transform_2(%arg0: i32) -> (i32, i32) {
    %c0_i32 = arith.constant 0 : i32
    %c0_i32_0 = arith.constant 0 : i32
    %c0_i32_1 = arith.constant 0 : i32
    return %c0_i32, %c0_i32_0 : i32, i32
  }
  func.func @transform_3(%arg0: i32) -> (i32, i32) {
    %c0_i32 = arith.constant 0 : i32
    %c0_i32_0 = arith.constant 0 : i32
    %c0_i32_1 = arith.constant 0 : i32
    return %c0_i32, %c0_i32_0 : i32, i32
  }
  func.func @transform_4(%arg0: i32) -> (i32, i32) {
    %c0_i32 = arith.constant 0 : i32
    %c0_i32_0 = arith.constant 0 : i32
    return %arg0, %c0_i32 : i32, i32
  }
  func.func @transform_5(%arg0: i32) -> (i32, i32) {
    %c0_i32 = arith.constant 0 : i32
    %c0_i32_0 = arith.constant 0 : i32
    return %arg0, %c0_i32 : i32, i32
  }
}

</mosaic_0001>

<llo_original>
// kernel: densenet_forward.14
$region0: #{densenet_forward.14}
  #allocation0 [shape = 'u32[]', space=smem, size = 0x4, offset = 0x4, fixed_abs, tag = 'smem constant byte address 0x4 - core index']
  #allocation1 [shape = 'u32[72,128]{1,0:T(1,128)}', space=vmem, size = 0x9000, scoped, tag = 'internal scratch']
  %s0 = inlined_call_operand.vmem [shape: f32[128,128], index: 0, kind: input, shape index: {}]
  %s1 = inlined_call_operand.vmem [shape: bf16[128,128], index: 1, kind: input, shape index: {}]
  %s2 = inlined_call_operand.vmem [shape: f32[1,128], index: 2, kind: input, shape index: {}]
  %s3 = inlined_call_operand.vmem [shape: f32[1,128], index: 3, kind: input, shape index: {}]
  %s4 = inlined_call_operand.vmem [shape: f32[1,128], index: 4, kind: input, shape index: {}]
  %s5 = inlined_call_operand.vmem [shape: f32[1,128], index: 5, kind: input, shape index: {}]
  %s6 = inlined_call_operand.vmem [shape: bf16[128,128], index: 6, kind: output, shape index: {}]
  %s7 = sld [smem:[#allocation0]]
  $region34: #{densenet_forward.14} parent=0
    _
  %s9 = ssub.s32 1, %s7
  %s10 = scalar_select 0, %s9, %s7
  // Predicated region
  $region2: #{densenet_forward.14} parent=0 // pred_check
    _
  $region3: #{densenet_forward.14} parent=0 // pred_check_branch
    %12 = sbr.rel (0) target = $region5
  $region4: #{densenet_forward.14} parent=0 // pred_region
    _
  $region5: #{densenet_forward.14} parent=0 // pred_fallthru
    _
  // Predicated region
  $region6: #{densenet_forward.14} parent=0 // pred_check
    _
  $region7: #{densenet_forward.14} parent=0 // pred_check_branch
    %14 = sbr.rel (0) target = $region9
  $region8: #{densenet_forward.14} parent=0 // pred_region
    _
  $region9: #{densenet_forward.14} parent=0 // pred_fallthru
    _
  // Predicated region
  $region10: #{densenet_forward.14} parent=0 // pred_check
    _
  $region11: #{densenet_forward.14} parent=0 // pred_check_branch
    %16 = sbr.rel (0) target = $region13
  $region12: #{densenet_forward.14} parent=0 // pred_region
    _
  $region13: #{densenet_forward.14} parent=0 // pred_fallthru
    _
  // Predicated region
  $region14: #{densenet_forward.14} parent=0 // pred_check
    _
  $region15: #{densenet_forward.14} parent=0 // pred_check_branch
    %18 = sbr.rel (0) target = $region17
  $region16: #{densenet_forward.14} parent=0 // pred_region
    _
  $region17: #{densenet_forward.14} parent=0 // pred_fallthru
    _
  // Predicated region
  $region18: #{densenet_forward.14} parent=0 // pred_check
    _
  $region19: #{densenet_forward.14} parent=0 // pred_check_branch
    %20 = sbr.rel (0) target = $region21
  $region20: #{densenet_forward.14} parent=0 // pred_region
    _
  $region21: #{densenet_forward.14} parent=0 // pred_fallthru
    _
  // Predicated region
  $region22: #{densenet_forward.14} parent=0 // pred_check
    _
  $region23: #{densenet_forward.14} parent=0 // pred_check_branch
    %22 = sbr.rel (0) target = $region25
  $region24: #{densenet_forward.14} parent=0 // pred_region
    _
  $region25: #{densenet_forward.14} parent=0 // pred_fallthru
    _
  %v23 = vld [vmem:[%s0] sm:$0xff]
  %v24 = vld [vmem:[%s0 + $0x8] sm:$0xff]
  %v25 = vld [vmem:[%s0 + $0x10] sm:$0xff]
  %v26 = vld [vmem:[%s0 + $0x18] sm:$0xff]
  %v27 = vld [vmem:[%s0 + $0x20] sm:$0xff]
  %v28 = vld [vmem:[%s0 + $0x28] sm:$0xff]
  %v29 = vld [vmem:[%s0 + $0x30] sm:$0xff]
  %v30 = vld [vmem:[%s0 + $0x38] sm:$0xff]
  %v31 = vld [vmem:[%s0 + $0x40] sm:$0xff]
  %v32 = vld [vmem:[%s0 + $0x48] sm:$0xff]
  %v33 = vld [vmem:[%s0 + $0x50] sm:$0xff]
  %v34 = vld [vmem:[%s0 + $0x58] sm:$0xff]
  %v35 = vld [vmem:[%s0 + $0x60] sm:$0xff]
  %v36 = vld [vmem:[%s0 + $0x68] sm:$0xff]
  %v37 = vld [vmem:[%s0 + $0x70] sm:$0xff]
  %v38 = vld [vmem:[%s0 + $0x78] sm:$0xff]
  %v39 = vld [vmem:[%s2] sm:$0x1]
  %v41 = vperm.slane %v39, 0
  %v43 = vmul.f32 %v23, %v41
  %v44 = vmul.f32 %v24, %v41
  %v45 = vmul.f32 %v25, %v41
  %v46 = vmul.f32 %v26, %v41
  %v47 = vmul.f32 %v27, %v41
  %v48 = vmul.f32 %v28, %v41
  %v49 = vmul.f32 %v29, %v41
  %v50 = vmul.f32 %v30, %v41
  %v51 = vmul.f32 %v31, %v41
  %v52 = vmul.f32 %v32, %v41
  %v53 = vmul.f32 %v33, %v41
  %v54 = vmul.f32 %v34, %v41
  %v55 = vmul.f32 %v35, %v41
  %v56 = vmul.f32 %v36, %v41
  %v57 = vmul.f32 %v37, %v41
  %v58 = vmul.f32 %v38, %v41
  %v59 = vld [vmem:[%s3] sm:$0x1]
  %v61 = vperm.slane %v59, 0
  %v63 = vadd.f32 %v43, %v61
  %v64 = vadd.f32 %v44, %v61
  %v65 = vadd.f32 %v45, %v61
  %v66 = vadd.f32 %v46, %v61
  %v67 = vadd.f32 %v47, %v61
  %v68 = vadd.f32 %v48, %v61
  %v69 = vadd.f32 %v49, %v61
  %v70 = vadd.f32 %v50, %v61
  %v71 = vadd.f32 %v51, %v61
  %v72 = vadd.f32 %v52, %v61
  %v73 = vadd.f32 %v53, %v61
  %v74 = vadd.f32 %v54, %v61
  %v75 = vadd.f32 %v55, %v61
  %v76 = vadd.f32 %v56, %v61
  %v77 = vadd.f32 %v57, %v61
  %v78 = vadd.f32 %v58, %v61
  %v79 = vmax.f32 %v63, 0.0
  %v80 = vmax.f32 %v64, 0.0
  %v81 = vmax.f32 %v65, 0.0
  %v82 = vmax.f32 %v66, 0.0
  %v83 = vmax.f32 %v67, 0.0
  %v84 = vmax.f32 %v68, 0.0
  %v85 = vmax.f32 %v69, 0.0
  %v86 = vmax.f32 %v70, 0.0
  %v87 = vmax.f32 %v71, 0.0
  %v88 = vmax.f32 %v72, 0.0
  %v89 = vmax.f32 %v73, 0.0
  %v90 = vmax.f32 %v74, 0.0
  %v91 = vmax.f32 %v75, 0.0
  %v92 = vmax.f32 %v76, 0.0
  %v93 = vmax.f32 %v77, 0.0
  %v94 = vmax.f32 %v78, 0.0
  %v95 = vpack.c.bf16 %v80, %v79
  %v96 = vpack.c.bf16 %v82, %v81
  %v97 = vpack.c.bf16 %v84, %v83
  %v98 = vpack.c.bf16 %v86, %v85
  %v99 = vpack.c.bf16 %v88, %v87
  %v100 = vpack.c.bf16 %v90, %v89
  %v101 = vpack.c.bf16 %v92, %v91
  %v102 = vpack.c.bf16 %v94, %v93
  %v103 = vld [vmem:[%s1] sm:$0xf]
  %v104 = vld [vmem:[%s1 + $0x4] sm:$0xf]
  %v105 = vld [vmem:[%s1 + $0x8] sm:$0xf]
  %v106 = vld [vmem:[%s1 + $0xc] sm:$0xf]
  %v107 = vld [vmem:[%s1 + $0x10] sm:$0xf]
  %v108 = vld [vmem:[%s1 + $0x14] sm:$0xf]
  %v109 = vld [vmem:[%s1 + $0x18] sm:$0xf]
  %v110 = vld [vmem:[%s1 + $0x1c] sm:$0xf]
  %v111 = vld [vmem:[%s1 + $0x20] sm:$0xf]
  %v112 = vld [vmem:[%s1 + $0x24] sm:$0xf]
  %v113 = vld [vmem:[%s1 + $0x28] sm:$0xf]
  %v114 = vld [vmem:[%s1 + $0x2c] sm:$0xf]
  %v115 = vld [vmem:[%s1 + $0x30] sm:$0xf]
  %v116 = vld [vmem:[%s1 + $0x34] sm:$0xf]
  %v117 = vld [vmem:[%s1 + $0x38] sm:$0xf]
  %v118 = vld [vmem:[%s1 + $0x3c] sm:$0xf]
  %v135 = vunpack.c.l.b16 %v103
  %v136 = vunpack.c.l.b16 %v104
  %v137 = vunpack.c.l.b16 %v105
  %v138 = vunpack.c.l.b16 %v106
  %v139 = vunpack.c.l.b16 %v107
  %v140 = vunpack.c.l.b16 %v108
  %v141 = vunpack.c.l.b16 %v109
  %v142 = vunpack.c.l.b16 %v110
  %v143 = vunpack.c.l.b16 %v111
  %v144 = vunpack.c.l.b16 %v112
  %v145 = vunpack.c.l.b16 %v113
  %v146 = vunpack.c.l.b16 %v114
  %v147 = vunpack.c.l.b16 %v115
  %v148 = vunpack.c.l.b16 %v116
  %v149 = vunpack.c.l.b16 %v117
  %v150 = vunpack.c.l.b16 %v118
  %v151 = vpack.c.b16 %v136, %v135
  %v152 = vpack.c.b16 %v138, %v137
  %v153 = vpack.c.b16 %v140, %v139
  %v154 = vpack.c.b16 %v142, %v141
  %v155 = vpack.c.b16 %v144, %v143
  %v156 = vpack.c.b16 %v146, %v145
  %v157 = vpack.c.b16 %v148, %v147
  %v158 = vpack.c.b16 %v150, %v149
  %167 = vmatpush.bf16.msra.mxu0 %v158
  %168 = vmatpush.bf16.msra.mxu0 %v157
  %169 = vmatpush.bf16.msra.mxu0 %v156
  %170 = vmatpush.bf16.msra.mxu0 %v155
  %171 = vmatpush.bf16.msra.mxu0 %v154
  %172 = vmatpush.bf16.msra.mxu0 %v153
  %173 = vmatpush.bf16.msra.mxu0 %v152
  %174 = vmatpush.bf16.msra.mxu0 %v151
  %175 = vmatmul.bf16.gmra.mxu0 %v95
  %v176 = vpop.f32.mrf.mxu0
  %v177 = vadd.f32 0.0, %v176
  %v178 = vpop.f32.mrf.mxu0
  %v179 = vadd.f32 0.0, %v178
  %180 = vmatmul.bf16.gmra.mxu0 %v96
  %v181 = vpop.f32.mrf.mxu0
  %v182 = vadd.f32 0.0, %v181
  %v183 = vpop.f32.mrf.mxu0
  %v184 = vadd.f32 0.0, %v183
  %185 = vmatmul.bf16.gmra.mxu0 %v97
  %v186 = vpop.f32.mrf.mxu0
  %v187 = vadd.f32 0.0, %v186
  %v188 = vpop.f32.mrf.mxu0
  %v189 = vadd.f32 0.0, %v188
  %190 = vmatmul.bf16.gmra.mxu0 %v98
  %v191 = vpop.f32.mrf.mxu0
  %v192 = vadd.f32 0.0, %v191
  %v193 = vpop.f32.mrf.mxu0
  %v194 = vadd.f32 0.0, %v193
  %195 = vmatmul.bf16.gmra.mxu0 %v99
  %v196 = vpop.f32.mrf.mxu0
  %v197 = vadd.f32 0.0, %v196
  %v198 = vpop.f32.mrf.mxu0
  %v199 = vadd.f32 0.0, %v198
  %200 = vmatmul.bf16.gmra.mxu0 %v100
  %v201 = vpop.f32.mrf.mxu0
  %v202 = vadd.f32 0.0, %v201
  %v203 = vpop.f32.mrf.mxu0
  %v204 = vadd.f32 0.0, %v203
  %205 = vmatmul.bf16.gmra.mxu0 %v101
  %v206 = vpop.f32.mrf.mxu0
  %v207 = vadd.f32 0.0, %v206
  %v208 = vpop.f32.mrf.mxu0
  %v209 = vadd.f32 0.0, %v208
  %210 = vmatmul.bf16.gmra.mxu0 %v102
  %v211 = vpop.f32.mrf.mxu0
  %v212 = vadd.f32 0.0, %v211
  %v213 = vpop.f32.mrf.mxu0
  %v214 = vadd.f32 0.0, %v213
  %215 = vdwg.mxu0
  %v216 = vld [vmem:[%s4] sm:$0x1]
  %v218 = vperm.slane %v216, 0
  %v220 = vmul.f32 %v177, %v218
  %v221 = vmul.f32 %v179, %v218
  %v222 = vmul.f32 %v182, %v218
  %v223 = vmul.f32 %v184, %v218
  %v224 = vmul.f32 %v187, %v218
  %v225 = vmul.f32 %v189, %v218
  %v226 = vmul.f32 %v192, %v218
  %v227 = vmul.f32 %v194, %v218
  %v228 = vmul.f32 %v197, %v218
  %v229 = vmul.f32 %v199, %v218
  %v230 = vmul.f32 %v202, %v218
  %v231 = vmul.f32 %v204, %v218
  %v232 = vmul.f32 %v207, %v218
  %v233 = vmul.f32 %v209, %v218
  %v234 = vmul.f32 %v212, %v218
  %v235 = vmul.f32 %v214, %v218
  %v236 = vld [vmem:[%s5] sm:$0x1]
  %v238 = vperm.slane %v236, 0
  %v240 = vadd.f32 %v220, %v238
  %v241 = vadd.f32 %v221, %v238
  %v242 = vadd.f32 %v222, %v238
  %v243 = vadd.f32 %v223, %v238
  %v244 = vadd.f32 %v224, %v238
  %v245 = vadd.f32 %v225, %v238
  %v246 = vadd.f32 %v226, %v238
  %v247 = vadd.f32 %v227, %v238
  %v248 = vadd.f32 %v228, %v238
  %v249 = vadd.f32 %v229, %v238
  %v250 = vadd.f32 %v230, %v238
  %v251 = vadd.f32 %v231, %v238
  %v252 = vadd.f32 %v232, %v238
  %v253 = vadd.f32 %v233, %v238
  %v254 = vadd.f32 %v234, %v238
  %v255 = vadd.f32 %v235, %v238
  %v256 = vmax.f32 %v240, 0.0
  %v257 = vmax.f32 %v241, 0.0
  %v258 = vmax.f32 %v242, 0.0
  %v259 = vmax.f32 %v243, 0.0
  %v260 = vmax.f32 %v244, 0.0
  %v261 = vmax.f32 %v245, 0.0
  %v262 = vmax.f32 %v246, 0.0
  %v263 = vmax.f32 %v247, 0.0
  %v264 = vmax.f32 %v248, 0.0
  %v265 = vmax.f32 %v249, 0.0
  %v266 = vmax.f32 %v250, 0.0
  %v267 = vmax.f32 %v251, 0.0
  %v268 = vmax.f32 %v252, 0.0
  %v269 = vmax.f32 %v253, 0.0
  %v270 = vmax.f32 %v254, 0.0
  %v271 = vmax.f32 %v255, 0.0
  %v272 = vpack.c.bf16 %v256, %v256
  %v273 = vpack.c.bf16 %v257, %v257
  %v274 = vpack.c.bf16 %v258, %v258
  %v275 = vpack.c.bf16 %v259, %v259
  %v276 = vpack.c.bf16 %v260, %v260
  %v277 = vpack.c.bf16 %v261, %v261
  %v278 = vpack.c.bf16 %v262, %v262
  %v279 = vpack.c.bf16 %v263, %v263
  %v280 = vpack.c.bf16 %v264, %v264
  %v281 = vpack.c.bf16 %v265, %v265
  %v282 = vpack.c.bf16 %v266, %v266
  %v283 = vpack.c.bf16 %v267, %v267
  %v284 = vpack.c.bf16 %v268, %v268
  %v285 = vpack.c.bf16 %v269, %v269
  %v286 = vpack.c.bf16 %v270, %v270
  %v287 = vpack.c.bf16 %v271, %v271
  %288 = vst [vmem:[%s6] sm:$0xf] %v272
  %289 = vst [vmem:[%s6 + $0x4] sm:$0xf] %v273
  %290 = vst [vmem:[%s6 + $0x8] sm:$0xf] %v274
  %291 = vst [vmem:[%s6 + $0xc] sm:$0xf] %v275
  %292 = vst [vmem:[%s6 + $0x10] sm:$0xf] %v276
  %293 = vst [vmem:[%s6 + $0x14] sm:$0xf] %v277
  %294 = vst [vmem:[%s6 + $0x18] sm:$0xf] %v278
  %295 = vst [vmem:[%s6 + $0x1c] sm:$0xf] %v279
  %296 = vst [vmem:[%s6 + $0x20] sm:$0xf] %v280
  %297 = vst [vmem:[%s6 + $0x24] sm:$0xf] %v281
  %298 = vst [vmem:[%s6 + $0x28] sm:$0xf] %v282
  %299 = vst [vmem:[%s6 + $0x2c] sm:$0xf] %v283
  %300 = vst [vmem:[%s6 + $0x30] sm:$0xf] %v284
  %301 = vst [vmem:[%s6 + $0x34] sm:$0xf] %v285
  %302 = vst [vmem:[%s6 + $0x38] sm:$0xf] %v286
  %303 = vst [vmem:[%s6 + $0x3c] sm:$0xf] %v287
  // Predicated region
  $region26: #{densenet_forward.14} parent=0 // pred_check
    _
  $region27: #{densenet_forward.14} parent=0 // pred_check_branch
    %305 = sbr.rel (0) target = $region29
  $region28: #{densenet_forward.14} parent=0 // pred_region
    _
  $region29: #{densenet_forward.14} parent=0 // pred_fallthru
    _
  // Predicated region
  $region30: #{densenet_forward.14} parent=0 // pred_check
    _
  $region31: #{densenet_forward.14} parent=0 // pred_check_branch
    %307 = sbr.rel (0) target = $region33
  $region32: #{densenet_forward.14} parent=0 // pred_region
    _
  $region33: #{densenet_forward.14} parent=0 // pred_fallthru
    _

// kernel: densenet_forward.12
$region0: #{densenet_forward.12}
  #allocation0 [shape = 'u32[]', space=smem, size = 0x4, offset = 0x4, fixed_abs, tag = 'smem constant byte address 0x4 - core index']
  #allocation1 [shape = 'u32[72,128]{1,0:T(1,128)}', space=vmem, size = 0x9000, scoped, tag = 'internal scratch']
  %s0 = inlined_call_operand.vmem [shape: bf16[512,256], index: 0, kind: input, shape index: {}]
  %s1 = inlined_call_operand.vmem [shape: bf16[256,128], index: 1, kind: input, shape index: {}]
  %s2 = inlined_call_operand.vmem [shape: f32[1,128], index: 2, kind: input, shape index: {}]
  %s3 = inlined_call_operand.vmem [shape: f32[1,128], index: 3, kind: input, shape index: {}]
  %s4 = inlined_call_operand.vmem [shape: f32[512,128], index: 4, kind: output, shape index: {}]
  %s5 = sld [smem:[#allocation0]]
  $region26: #{densenet_forward.12} parent=0
    _
  %s7 = ssub.s32 1, %s5
  %s8 = scalar_select 0, %s7, %s5
  // Predicated region
  $region2: #{densenet_forward.12} parent=0 // pred_check
    _
  $region3: #{densenet_forward.12} parent=0 // pred_check_branch
    %10 = sbr.rel (0) target = $region5
  $region4: #{densenet_forward.12} parent=0 // pred_region
    _
  $region5: #{densenet_forward.12} parent=0 // pred_fallthru
    _
  // Predicated region
  $region6: #{densenet_forward.12} parent=0 // pred_check
    _
  $region7: #{densenet_forward.12} parent=0 // pred_check_branch
    %12 = sbr.rel (0) target = $region9
  $region8: #{densenet_forward.12} parent=0 // pred_region
    _
  $region9: #{densenet_forward.12} parent=0 // pred_fallthru
    _
  // Predicated region
  $region10: #{densenet_forward.12} parent=0 // pred_check
    _
  $region11: #{densenet_forward.12} parent=0 // pred_check_branch
    %14 = sbr.rel (0) target = $region13
  $region12: #{densenet_forward.12} parent=0 // pred_region
    _
  $region13: #{densenet_forward.12} parent=0 // pred_fallthru
    _
  // Predicated region
  $region14: #{densenet_forward.12} parent=0 // pred_check
    _
  $region15: #{densenet_forward.12} parent=0 // pred_check_branch
    %16 = sbr.rel (0) target = $region17
  $region16: #{densenet_forward.12} parent=0 // pred_region
    _
  $region17: #{densenet_forward.12} parent=0 // pred_fallthru
    _
  %v17 = vld [vmem:[%s0] sm:$0xff]
  %v18 = vld [vmem:[%s0 + $0x8] sm:$0xff]
  %v19 = vld [vmem:[%s0 + $0x10] sm:$0xff]
  %v20 = vld [vmem:[%s0 + $0x18] sm:$0xff]
  %v21 = vld [vmem:[%s0 + $0x20] sm:$0xff]
  %v22 = vld [vmem:[%s0 + $0x28] sm:$0xff]
  %v23 = vld [vmem:[%s0 + $0x30] sm:$0xff]
  %v24 = vld [vmem:[%s0 + $0x38] sm:$0xff]
  %v25 = vld [vmem:[%s0 + $0x40] sm:$0xff]
  %v26 = vld [vmem:[%s0 + $0x48] sm:$0xff]
  %v27 = vld [vmem:[%s0 + $0x50] sm:$0xff]
  %v28 = vld [vmem:[%s0 + $0x58] sm:$0xff]
  %v29 = vld [vmem:[%s0 + $0x60] sm:$0xff]
  %v30 = vld [vmem:[%s0 + $0x68] sm:$0xff]
  %v31 = vld [vmem:[%s0 + $0x70] sm:$0xff]
  %v32 = vld [vmem:[%s0 + $0x78] sm:$0xff]
  %v33 = vld [vmem:[%s0 + $0x80] sm:$0xff]
  %v34 = vld [vmem:[%s0 + $0x88] sm:$0xff]
  %v35 = vld [vmem:[%s0 + $0x90] sm:$0xff]
  %v36 = vld [vmem:[%s0 + $0x98] sm:$0xff]
  %v37 = vld [vmem:[%s0 + $0xa0] sm:$0xff]
  %v38 = vld [vmem:[%s0 + $0xa8] sm:$0xff]
  %v39 = vld [vmem:[%s0 + $0xb0] sm:$0xff]
  %v40 = vld [vmem:[%s0 + $0xb8] sm:$0xff]
  %v41 = vld [vmem:[%s0 + $0xc0] sm:$0xff]
  %v42 = vld [vmem:[%s0 + $0xc8] sm:$0xff]
  %v43 = vld [vmem:[%s0 + $0xd0] sm:$0xff]
  %v44 = vld [vmem:[%s0 + $0xd8] sm:$0xff]
  %v45 = vld [vmem:[%s0 + $0xe0] sm:$0xff]
  %v46 = vld [vmem:[%s0 + $0xe8] sm:$0xff]
  %v47 = vld [vmem:[%s0 + $0xf0] sm:$0xff]
  %v48 = vld [vmem:[%s0 + $0xf8] sm:$0xff]
  %v49 = vld [vmem:[%s0 + $0x100] sm:$0xff]
  %v50 = vld [vmem:[%s0 + $0x108] sm:$0xff]
  %v51 = vld [vmem:[%s0 + $0x110] sm:$0xff]
  %v52 = vld [vmem:[%s0 + $0x118] sm:$0xff]
  %v53 = vld [vmem:[%s0 + $0x120] sm:$0xff]
  %v54 = vld [vmem:[%s0 + $0x128] sm:$0xff]
  %v55 = vld [vmem:[%s0 + $0x130] sm:$0xff]
  %v56 = vld [vmem:[%s0 + $0x138] sm:$0xff]
  %v57 = vld [vmem:[%s0 + $0x140] sm:$0xff]
  %v58 = vld [vmem:[%s0 + $0x148] sm:$0xff]
  %v59 = vld [vmem:[%s0 + $0x150] sm:$0xff]
  %v60 = vld [vmem:[%s0 + $0x158] sm:$0xff]
  %v61 = vld [vmem:[%s0 + $0x160] sm:$0xff]
  %v62 = vld [vmem:[%s0 + $0x168] sm:$0xff]
  %v63 = vld [vmem:[%s0 + $0x170] sm:$0xff]
  %v64 = vld [vmem:[%s0 + $0x178] sm:$0xff]
  %v65 = vld [vmem:[%s0 + $0x180] sm:$0xff]
  %v66 = vld [vmem:[%s0 + $0x188] sm:$0xff]
  %v67 = vld [vmem:[%s0 + $0x190] sm:$0xff]
  %v68 = vld [vmem:[%s0 + $0x198] sm:$0xff]
  %v69 = vld [vmem:[%s0 + $0x1a0] sm:$0xff]
  %v70 = vld [vmem:[%s0 + $0x1a8] sm:$0xff]
  %v71 = vld [vmem:[%s0 + $0x1b0] sm:$0xff]
  %v72 = vld [vmem:[%s0 + $0x1b8] sm:$0xff]
  %v73 = vld [vmem:[%s0 + $0x1c0] sm:$0xff]
  %v74 = vld [vmem:[%s0 + $0x1c8] sm:$0xff]
  %v75 = vld [vmem:[%s0 + $0x1d0] sm:$0xff]
  %v76 = vld [vmem:[%s0 + $0x1d8] sm:$0xff]
  %v77 = vld [vmem:[%s0 + $0x1e0] sm:$0xff]
  %v78 = vld [vmem:[%s0 + $0x1e8] sm:$0xff]
  %v79 = vld [vmem:[%s0 + $0x1f0] sm:$0xff]
  %v80 = vld [vmem:[%s0 + $0x1f8] sm:$0xff]
  %v81 = vld [vmem:[%s1] sm:$0xf]
  %v82 = vld [vmem:[%s1 + $0x4] sm:$0xf]
  %v83 = vld [vmem:[%s1 + $0x8] sm:$0xf]
  %v84 = vld [vmem:[%s1 + $0xc] sm:$0xf]
  %v85 = vld [vmem:[%s1 + $0x10] sm:$0xf]
  %v86 = vld [vmem:[%s1 + $0x14] sm:$0xf]
  %v87 = vld [vmem:[%s1 + $0x18] sm:$0xf]
  %v88 = vld [vmem:[%s1 + $0x1c] sm:$0xf]
  %v89 = vld [vmem:[%s1 + $0x20] sm:$0xf]
  %v90 = vld [vmem:[%s1 + $0x24] sm:$0xf]
  %v91 = vld [vmem:[%s1 + $0x28] sm:$0xf]
  %v92 = vld [vmem:[%s1 + $0x2c] sm:$0xf]
  %v93 = vld [vmem:[%s1 + $0x30] sm:$0xf]
  %v94 = vld [vmem:[%s1 + $0x34] sm:$0xf]
  %v95 = vld [vmem:[%s1 + $0x38] sm:$0xf]
  %v96 = vld [vmem:[%s1 + $0x3c] sm:$0xf]
  %v97 = vld [vmem:[%s1 + $0x40] sm:$0xf]
  %v98 = vld [vmem:[%s1 + $0x44] sm:$0xf]
  %v99 = vld [vmem:[%s1 + $0x48] sm:$0xf]
  %v100 = vld [vmem:[%s1 + $0x4c] sm:$0xf]
  %v101 = vld [vmem:[%s1 + $0x50] sm:$0xf]
  %v102 = vld [vmem:[%s1 + $0x54] sm:$0xf]
  %v103 = vld [vmem:[%s1 + $0x58] sm:$0xf]
  %v104 = vld [vmem:[%s1 + $0x5c] sm:$0xf]
  %v105 = vld [vmem:[%s1 + $0x60] sm:$0xf]
  %v106 = vld [vmem:[%s1 + $0x64] sm:$0xf]
  %v107 = vld [vmem:[%s1 + $0x68] sm:$0xf]
  %v108 = vld [vmem:[%s1 + $0x6c] sm:$0xf]
  %v109 = vld [vmem:[%s1 + $0x70] sm:$0xf]
  %v110 = vld [vmem:[%s1 + $0x74] sm:$0xf]
  %v111 = vld [vmem:[%s1 + $0x78] sm:$0xf]
  %v112 = vld [vmem:[%s1 + $0x7c] sm:$0xf]
  %v177 = vunpack.c.l.b16 %v17
  %v178 = vunpack.c.h.b16 %v17
  %v179 = vunpack.c.l.b16 %v18
  %v180 = vunpack.c.h.b16 %v18
  %v181 = vunpack.c.l.b16 %v19
  %v182 = vunpack.c.h.b16 %v19
  %v183 = vunpack.c.l.b16 %v20
  %v184 = vunpack.c.h.b16 %v20
  %v185 = vunpack.c.l.b16 %v21
  %v186 = vunpack.c.h.b16 %v21
  %v187 = vunpack.c.l.b16 %v22
  %v188 = vunpack.c.h.b16 %v22
  %v189 = vunpack.c.l.b16 %v23
  %v190 = vunpack.c.h.b16 %v23
  %v191 = vunpack.c.l.b16 %v24
  %v192 = vunpack.c.h.b16 %v24
  %v193 = vunpack.c.l.b16 %v25
  %v194 = vunpack.c.h.b16 %v25
  %v195 = vunpack.c.l.b16 %v26
  %v196 = vunpack.c.h.b16 %v26
  %v197 = vunpack.c.l.b16 %v27
  %v198 = vunpack.c.h.b16 %v27
  %v199 = vunpack.c.l.b16 %v28
  %v200 = vunpack.c.h.b16 %v28
  %v201 = vunpack.c.l.b16 %v29
  %v202 = vunpack.c.h.b16 %v29
  %v203 = vunpack.c.l.b16 %v30
  %v204 = vunpack.c.h.b16 %v30
  %v205 = vunpack.c.l.b16 %v31
  %v206 = vunpack.c.h.b16 %v31
  %v207 = vunpack.c.l.b16 %v32
  %v208 = vunpack.c.h.b16 %v32
  %v209 = vunpack.c.l.b16 %v33
  %v210 = vunpack.c.h.b16 %v33
  %v211 = vunpack.c.l.b16 %v34
  %v212 = vunpack.c.h.b16 %v34
  %v213 = vunpack.c.l.b16 %v35
  %v214 = vunpack.c.h.b16 %v35
  %v215 = vunpack.c.l.b16 %v36
  %v216 = vunpack.c.h.b16 %v36
  %v217 = vunpack.c.l.b16 %v37
  %v218 = vunpack.c.h.b16 %v37
  %v219 = vunpack.c.l.b16 %v38
  %v220 = vunpack.c.h.b16 %v38
  %v221 = vunpack.c.l.b16 %v39
  %v222 = vunpack.c.h.b16 %v39
  %v223 = vunpack.c.l.b16 %v40
  %v224 = vunpack.c.h.b16 %v40
  %v225 = vunpack.c.l.b16 %v41
  %v226 = vunpack.c.h.b16 %v41
  %v227 = vunpack.c.l.b16 %v42
  %v228 = vunpack.c.h.b16 %v42
  %v229 = vunpack.c.l.b16 %v43
  %v230 = vunpack.c.h.b16 %v43
  %v231 = vunpack.c.l.b16 %v44
  %v232 = vunpack.c.h.b16 %v44
  %v233 = vunpack.c.l.b16 %v45
  %v234 = vunpack.c.h.b16 %v45
  %v235 = vunpack.c.l.b16 %v46
  %v236 = vunpack.c.h.b16 %v46
  %v237 = vunpack.c.l.b16 %v47
  %v238 = vunpack.c.h.b16 %v47
  %v239 = vunpack.c.l.b16 %v48
  %v240 = vunpack.c.h.b16 %v48
  %v241 = vunpack.c.l.b16 %v49
  %v242 = vunpack.c.h.b16 %v49
  %v243 = vunpack.c.l.b16 %v50
  %v244 = vunpack.c.h.b16 %v50
  %v245 = vunpack.c.l.b16 %v51
  %v246 = vunpack.c.h.b16 %v51
  %v247 = vunpack.c.l.b16 %v52
  %v248 = vunpack.c.h.b16 %v52
  %v249 = vunpack.c.l.b16 %v53
  %v250 = vunpack.c.h.b16 %v53
  %v251 = vunpack.c.l.b16 %v54
  %v252 = vunpack.c.h.b16 %v54
  %v253 = vunpack.c.l.b16 %v55
  %v254 = vunpack.c.h.b16 %v55
  %v255 = vunpack.c.l.b16 %v56
  %v256 = vunpack.c.h.b16 %v56
  %v257 = vunpack.c.l.b16 %v57
  %v258 = vunpack.c.h.b16 %v57
  %v259 = vunpack.c.l.b16 %v58
  %v260 = vunpack.c.h.b16 %v58
  %v261 = vunpack.c.l.b16 %v59
  %v262 = vunpack.c.h.b16 %v59
  %v263 = vunpack.c.l.b16 %v60
  %v264 = vunpack.c.h.b16 %v60
  %v265 = vunpack.c.l.b16 %v61
  %v266 = vunpack.c.h.b16 %v61
  %v267 = vunpack.c.l.b16 %v62
  %v268 = vunpack.c.h.b16 %v62
  %v269 = vunpack.c.l.b16 %v63
  %v270 = vunpack.c.h.b16 %v63
  %v271 = vunpack.c.l.b16 %v64
  %v272 = vunpack.c.h.b16 %v64
  %v273 = vunpack.c.l.b16 %v65
  %v274 = vunpack.c.h.b16 %v65
  %v275 = vunpack.c.l.b16 %v66
  %v276 = vunpack.c.h.b16 %v66
  %v277 = vunpack.c.l.b16 %v67
  %v278 = vunpack.c.h.b16 %v67
  %v279 = vunpack.c.l.b16 %v68
  %v280 = vunpack.c.h.b16 %v68
  %v281 = vunpack.c.l.b16 %v69
  %v282 = vunpack.c.h.b16 %v69
  %v283 = vunpack.c.l.b16 %v70
  %v284 = vunpack.c.h.b16 %v70
  %v285 = vunpack.c.l.b16 %v71
  %v286 = vunpack.c.h.b16 %v71
  %v287 = vunpack.c.l.b16 %v72
  %v288 = vunpack.c.h.b16 %v72
  %v289 = vunpack.c.l.b16 %v73
  %v290 = vunpack.c.h.b16 %v73
  %v291 = vunpack.c.l.b16 %v74
  %v292 = vunpack.c.h.b16 %v74
  %v293 = vunpack.c.l.b16 %v75
  %v294 = vunpack.c.h.b16 %v75
  %v295 = vunpack.c.l.b16 %v76
  %v296 = vunpack.c.h.b16 %v76
  %v297 = vunpack.c.l.b16 %v77
  %v298 = vunpack.c.h.b16 %v77
  %v299 = vunpack.c.l.b16 %v78
  %v300 = vunpack.c.h.b16 %v78
  %v301 = vunpack.c.l.b16 %v79
  %v302 = vunpack.c.h.b16 %v79
  %v303 = vunpack.c.l.b16 %v80
  %v304 = vunpack.c.h.b16 %v80
  %v305 = vpack.c.b16 %v179, %v177
  %v306 = vpack.c.b16 %v180, %v178
  %v307 = vpack.c.b16 %v183, %v181
  %v308 = vpack.c.b16 %v184, %v182
  %v309 = vpack.c.b16 %v187, %v185
  %v310 = vpack.c.b16 %v188, %v186
  %v311 = vpack.c.b16 %v191, %v189
  %v312 = vpack.c.b16 %v192, %v190
  %v313 = vpack.c.b16 %v195, %v193
  %v314 = vpack.c.b16 %v196, %v194
  %v315 = vpack.c.b16 %v199, %v197
  %v316 = vpack.c.b16 %v200, %v198
  %v317 = vpack.c.b16 %v203, %v201
  %v318 = vpack.c.b16 %v204, %v202
  %v319 = vpack.c.b16 %v207, %v205
  %v320 = vpack.c.b16 %v208, %v206
  %v321 = vpack.c.b16 %v211, %v209
  %v322 = vpack.c.b16 %v212, %v210
  %v323 = vpack.c.b16 %v215, %v213
  %v324 = vpack.c.b16 %v216, %v214
  %v325 = vpack.c.b16 %v219, %v217
  %v326 = vpack.c.b16 %v220, %v218
  %v327 = vpack.c.b16 %v223, %v221
  %v328 = vpack.c.b16 %v224, %v222
  %v329 = vpack.c.b16 %v227, %v225
  %v330 = vpack.c.b16 %v228, %v226
  %v331 = vpack.c.b16 %v231, %v229
  %v332 = vpack.c.b16 %v232, %v230
  %v333 = vpack.c.b16 %v235, %v233
  %v334 = vpack.c.b16 %v236, %v234
  %v335 = vpack.c.b16 %v239, %v237
  %v336 = vpack.c.b16 %v240, %v238
  %v337 = vpack.c.b16 %v243, %v241
  %v338 = vpack.c.b16 %v244, %v242
  %v339 = vpack.c.b16 %v247, %v245
  %v340 = vpack.c.b16 %v248, %v246
  %v341 = vpack.c.b16 %v251, %v249
  %v342 = vpack.c.b16 %v252, %v250
  %v343 = vpack.c.b16 %v255, %v253
  %v344 = vpack.c.b16 %v256, %v254
  %v345 = vpack.c.b16 %v259, %v257
  %v346 = vpack.c.b16 %v260, %v258
  %v347 = vpack.c.b16 %v263, %v261
  %v348 = vpack.c.b16 %v264, %v262
  %v349 = vpack.c.b16 %v267, %v265
  %v350 = vpack.c.b16 %v268, %v266
  %v351 = vpack.c.b16 %v271, %v269
  %v352 = vpack.c.b16 %v272, %v270
  %v353 = vpack.c.b16 %v275, %v273
  %v354 = vpack.c.b16 %v276, %v274
  %v355 = vpack.c.b16 %v279, %v277
  %v356 = vpack.c.b16 %v280, %v278
  %v357 = vpack.c.b16 %v283, %v281
  %v358 = vpack.c.b16 %v284, %v282
  %v359 = vpack.c.b16 %v287, %v285
  %v360 = vpack.c.b16 %v288, %v286
  %v361 = vpack.c.b16 %v291, %v289
  %v362 = vpack.c.b16 %v292, %v290
  %v363 = vpack.c.b16 %v295, %v293
  %v364 = vpack.c.b16 %v296, %v294
  %v365 = vpack.c.b16 %v299, %v297
  %v366 = vpack.c.b16 %v300, %v298
  %v367 = vpack.c.b16 %v303, %v301
  %v368 = vpack.c.b16 %v304, %v302
  %v465 = vunpack.c.l.b16 %v81
  %v466 = vunpack.c.l.b16 %v82
  %v467 = vunpack.c.l.b16 %v83
  %v468 = vunpack.c.l.b16 %v84
  %v469 = vunpack.c.l.b16 %v85
  %v470 = vunpack.c.l.b16 %v86
  %v471 = vunpack.c.l.b16 %v87
  %v472 = vunpack.c.l.b16 %v88
  %v473 = vunpack.c.l.b16 %v89
  %v474 = vunpack.c.l.b16 %v90
  %v475 = vunpack.c.l.b16 %v91
  %v476 = vunpack.c.l.b16 %v92
  %v477 = vunpack.c.l.b16 %v93
  %v478 = vunpack.c.l.b16 %v94
  %v479 = vunpack.c.l.b16 %v95
  %v480 = vunpack.c.l.b16 %v96
  %v481 = vunpack.c.l.b16 %v97
  %v482 = vunpack.c.l.b16 %v98
  %v483 = vunpack.c.l.b16 %v99
  %v484 = vunpack.c.l.b16 %v100
  %v485 = vunpack.c.l.b16 %v101
  %v486 = vunpack.c.l.b16 %v102
  %v487 = vunpack.c.l.b16 %v103
  %v488 = vunpack.c.l.b16 %v104
  %v489 = vunpack.c.l.b16 %v105
  %v490 = vunpack.c.l.b16 %v106
  %v491 = vunpack.c.l.b16 %v107
  %v492 = vunpack.c.l.b16 %v108
  %v493 = vunpack.c.l.b16 %v109
  %v494 = vunpack.c.l.b16 %v110
  %v495 = vunpack.c.l.b16 %v111
  %v496 = vunpack.c.l.b16 %v112
  %v497 = vpack.c.b16 %v466, %v465
  %v498 = vpack.c.b16 %v468, %v467
  %v499 = vpack.c.b16 %v470, %v469
  %v500 = vpack.c.b16 %v472, %v471
  %v501 = vpack.c.b16 %v474, %v473
  %v502 = vpack.c.b16 %v476, %v475
  %v503 = vpack.c.b16 %v478, %v477
  %v504 = vpack.c.b16 %v480, %v479
  %v505 = vpack.c.b16 %v482, %v481
  %v506 = vpack.c.b16 %v484, %v483
  %v507 = vpack.c.b16 %v486, %v485
  %v508 = vpack.c.b16 %v488, %v487
  %v509 = vpack.c.b16 %v490, %v489
  %v510 = vpack.c.b16 %v492, %v491
  %v511 = vpack.c.b16 %v494, %v493
  %v512 = vpack.c.b16 %v496, %v495
  %529 = vmatpush.bf16.msra.mxu0 %v504
  %530 = vmatpush.bf16.msra.mxu0 %v503
  %531 = vmatpush.bf16.msra.mxu0 %v502
  %532 = vmatpush.bf16.msra.mxu0 %v501
  %533 = vmatpush.bf16.msra.mxu0 %v500
  %534 = vmatpush.bf16.msra.mxu0 %v499
  %535 = vmatpush.bf16.msra.mxu0 %v498
  %536 = vmatpush.bf16.msra.mxu0 %v497
  %537 = vmatmul.bf16.gmra.mxu0 %v305
  %v538 = vpop.f32.mrf.mxu0
  %v539 = vadd.f32 0.0, %v538
  %v540 = vpop.f32.mrf.mxu0
  %v541 = vadd.f32 0.0, %v540
  %542 = vmatmul.bf16.gmra.mxu0 %v307
  %v543 = vpop.f32.mrf.mxu0
  %v544 = vadd.f32 0.0, %v543
  %v545 = vpop.f32.mrf.mxu0
  %v546 = vadd.f32 0.0, %v545
  %547 = vmatmul.bf16.gmra.mxu0 %v309
  %v548 = vpop.f32.mrf.mxu0
  %v549 = vadd.f32 0.0, %v548
  %v550 = vpop.f32.mrf.mxu0
  %v551 = vadd.f32 0.0, %v550
  %552 = vmatmul.bf16.gmra.mxu0 %v311
  %v553 = vpop.f32.mrf.mxu0
  %v554 = vadd.f32 0.0, %v553
  %v555 = vpop.f32.mrf.mxu0
  %v556 = vadd.f32 0.0, %v555
  %557 = vmatmul.bf16.gmra.mxu0 %v313
  %v558 = vpop.f32.mrf.mxu0
  %v559 = vadd.f32 0.0, %v558
  %v560 = vpop.f32.mrf.mxu0
  %v561 = vadd.f32 0.0, %v560
  %562 = vmatmul.bf16.gmra.mxu0 %v315
  %v563 = vpop.f32.mrf.mxu0
  %v564 = vadd.f32 0.0, %v563
  %v565 = vpop.f32.mrf.mxu0
  %v566 = vadd.f32 0.0, %v565
  %567 = vmatmul.bf16.gmra.mxu0 %v317
  %v568 = vpop.f32.mrf.mxu0
  %v569 = vadd.f32 0.0, %v568
  %v570 = vpop.f32.mrf.mxu0
  %v571 = vadd.f32 0.0, %v570
  %572 = vmatmul.bf16.gmra.mxu0 %v319
  %v573 = vpop.f32.mrf.mxu0
  %v574 = vadd.f32 0.0, %v573
  %v575 = vpop.f32.mrf.mxu0
  %v576 = vadd.f32 0.0, %v575
  %577 = vmatmul.bf16.gmra.mxu0 %v321
  %v578 = vpop.f32.mrf.mxu0
  %v579 = vadd.f32 0.0, %v578
  %v580 = vpop.f32.mrf.mxu0
  %v581 = vadd.f32 0.0, %v580
  %582 = vmatmul.bf16.gmra.mxu0 %v323
  %v583 = vpop.f32.mrf.mxu0
  %v584 = vadd.f32 0.0, %v583
  %v585 = vpop.f32.mrf.mxu0
  %v586 = vadd.f32 0.0, %v585
  %587 = vmatmul.bf16.gmra.mxu0 %v325
  %v588 = vpop.f32.mrf.mxu0
  %v589 = vadd.f32 0.0, %v588
  %v590 = vpop.f32.mrf.mxu0
  %v591 = vadd.f32 0.0, %v590
  %592 = vmatmul.bf16.gmra.mxu0 %v327
  %v593 = vpop.f32.mrf.mxu0
  %v594 = vadd.f32 0.0, %v593
  %v595 = vpop.f32.mrf.mxu0
  %v596 = vadd.f32 0.0, %v595
  %597 = vmatmul.bf16.gmra.mxu0 %v329
  %v598 = vpop.f32.mrf.mxu0
  %v599 = vadd.f32 0.0, %v598
  %v600 = vpop.f32.mrf.mxu0
  %v601 = vadd.f32 0.0, %v600
  %602 = vmatmul.bf16.gmra.mxu0 %v331
  %v603 = vpop.f32.mrf.mxu0
  %v604 = vadd.f32 0.0, %v603
  %v605 = vpop.f32.mrf.mxu0
  %v606 = vadd.f32 0.0, %v605
  %607 = vmatmul.bf16.gmra.mxu0 %v333
  %v608 = vpop.f32.mrf.mxu0
  %v609 = vadd.f32 0.0, %v608
  %v610 = vpop.f32.mrf.mxu0
  %v611 = vadd.f32 0.0, %v610
  %612 = vmatmul.bf16.gmra.mxu0 %v335
  %v613 = vpop.f32.mrf.mxu0
  %v614 = vadd.f32 0.0, %v613
  %v615 = vpop.f32.mrf.mxu0
  %v616 = vadd.f32 0.0, %v615
  %617 = vmatmul.bf16.gmra.mxu0 %v337
  %v618 = vpop.f32.mrf.mxu0
  %v619 = vadd.f32 0.0, %v618
  %v620 = vpop.f32.mrf.mxu0
  %v621 = vadd.f32 0.0, %v620
  %622 = vmatmul.bf16.gmra.mxu0 %v339
  %v623 = vpop.f32.mrf.mxu0
  %v624 = vadd.f32 0.0, %v623
  %v625 = vpop.f32.mrf.mxu0
  %v626 = vadd.f32 0.0, %v625
  %627 = vmatmul.bf16.gmra.mxu0 %v341
  %v628 = vpop.f32.mrf.mxu0
  %v629 = vadd.f32 0.0, %v628
  %v630 = vpop.f32.mrf.mxu0
  %v631 = vadd.f32 0.0, %v630
  %632 = vmatmul.bf16.gmra.mxu0 %v343
  %v633 = vpop.f32.mrf.mxu0
  %v634 = vadd.f32 0.0, %v633
  %v635 = vpop.f32.mrf.mxu0
  %v636 = vadd.f32 0.0, %v635
  %637 = vmatmul.bf16.gmra.mxu0 %v345
  %v638 = vpop.f32.mrf.mxu0
  %v639 = vadd.f32 0.0, %v638
  %v640 = vpop.f32.mrf.mxu0
  %v641 = vadd.f32 0.0, %v640
  %642 = vmatmul.bf16.gmra.mxu0 %v347
  %v643 = vpop.f32.mrf.mxu0
  %v644 = vadd.f32 0.0, %v643
  %v645 = vpop.f32.mrf.mxu0
  %v646 = vadd.f32 0.0, %v645
  %647 = vmatmul.bf16.gmra.mxu0 %v349
  %v648 = vpop.f32.mrf.mxu0
  %v649 = vadd.f32 0.0, %v648
  %v650 = vpop.f32.mrf.mxu0
  %v651 = vadd.f32 0.0, %v650
  %652 = vmatmul.bf16.gmra.mxu0 %v351
  %v653 = vpop.f32.mrf.mxu0
  %v654 = vadd.f32 0.0, %v653
  %v655 = vpop.f32.mrf.mxu0
  %v656 = vadd.f32 0.0, %v655
  %657 = vmatmul.bf16.gmra.mxu0 %v353
  %v658 = vpop.f32.mrf.mxu0
  %v659 = vadd.f32 0.0, %v658
  %v660 = vpop.f32.mrf.mxu0
  %v661 = vadd.f32 0.0, %v660
  %662 = vmatmul.bf16.gmra.mxu0 %v355
  %v663 = vpop.f32.mrf.mxu0
  %v664 = vadd.f32 0.0, %v663
  %v665 = vpop.f32.mrf.mxu0
  %v666 = vadd.f32 0.0, %v665
  %667 = vmatmul.bf16.gmra.mxu0 %v357
  %v668 = vpop.f32.mrf.mxu0
  %v669 = vadd.f32 0.0, %v668
  %v670 = vpop.f32.mrf.mxu0
  %v671 = vadd.f32 0.0, %v670
  %672 = vmatmul.bf16.gmra.mxu0 %v359
  %v673 = vpop.f32.mrf.mxu0
  %v674 = vadd.f32 0.0, %v673
  %v675 = vpop.f32.mrf.mxu0
  %v676 = vadd.f32 0.0, %v675
  %677 = vmatmul.bf16.gmra.mxu0 %v361
  %v678 = vpop.f32.mrf.mxu0
  %v679 = vadd.f32 0.0, %v678
  %v680 = vpop.f32.mrf.mxu0
  %v681 = vadd.f32 0.0, %v680
  %682 = vmatmul.bf16.gmra.mxu0 %v363
  %v683 = vpop.f32.mrf.mxu0
  %v684 = vadd.f32 0.0, %v683
  %v685 = vpop.f32.mrf.mxu0
  %v686 = vadd.f32 0.0, %v685
  %687 = vmatmul.bf16.gmra.mxu0 %v365
  %v688 = vpop.f32.mrf.mxu0
  %v689 = vadd.f32 0.0, %v688
  %v690 = vpop.f32.mrf.mxu0
  %v691 = vadd.f32 0.0, %v690
  %692 = vmatmul.bf16.gmra.mxu0 %v367
  %v693 = vpop.f32.mrf.mxu0
  %v694 = vadd.f32 0.0, %v693
  %v695 = vpop.f32.mrf.mxu0
  %v696 = vadd.f32 0.0, %v695
  %697 = vdwg.mxu0
  %698 = vmatpush.bf16.msra.mxu0 %v512
  %699 = vmatpush.bf16.msra.mxu0 %v511
  %700 = vmatpush.bf16.msra.mxu0 %v510
  %701 = vmatpush.bf16.msra.mxu0 %v509
  %702 = vmatpush.bf16.msra.mxu0 %v508
  %703 = vmatpush.bf16.msra.mxu0 %v507
  %704 = vmatpush.bf16.msra.mxu0 %v506
  %705 = vmatpush.bf16.msra.mxu0 %v505
  %706 = vmatmul.bf16.gmra.mxu0 %v306
  %v707 = vpop.f32.mrf.mxu0
  %v708 = vadd.f32 %v539, %v707
  %v709 = vpop.f32.mrf.mxu0
  %v710 = vadd.f32 %v541, %v709
  %711 = vmatmul.bf16.gmra.mxu0 %v308
  %v712 = vpop.f32.mrf.mxu0
  %v713 = vadd.f32 %v544, %v712
  %v714 = vpop.f32.mrf.mxu0
  %v715 = vadd.f32 %v546, %v714
  %716 = vmatmul.bf16.gmra.mxu0 %v310
  %v717 = vpop.f32.mrf.mxu0
  %v718 = vadd.f32 %v549, %v717
  %v719 = vpop.f32.mrf.mxu0
  %v720 = vadd.f32 %v551, %v719
  %721 = vmatmul.bf16.gmra.mxu0 %v312
  %v722 = vpop.f32.mrf.mxu0
  %v723 = vadd.f32 %v554, %v722
  %v724 = vpop.f32.mrf.mxu0
  %v725 = vadd.f32 %v556, %v724
  %726 = vmatmul.bf16.gmra.mxu0 %v314
  %v727 = vpop.f32.mrf.mxu0
  %v728 = vadd.f32 %v559, %v727
  %v729 = vpop.f32.mrf.mxu0
  %v730 = vadd.f32 %v561, %v729
  %731 = vmatmul.bf16.gmra.mxu0 %v316
  %v732 = vpop.f32.mrf.mxu0
  %v733 = vadd.f32 %v564, %v732
  %v734 = vpop.f32.mrf.mxu0
  %v735 = vadd.f32 %v566, %v734
  %736 = vmatmul.bf16.gmra.mxu0 %v318
  %v737 = vpop.f32.mrf.mxu0
  %v738 = vadd.f32 %v569, %v737
  %v739 = vpop.f32.mrf.mxu0
  %v740 = vadd.f32 %v571, %v739
  %741 = vmatmul.bf16.gmra.mxu0 %v320
  %v742 = vpop.f32.mrf.mxu0
  %v743 = vadd.f32 %v574, %v742
  %v744 = vpop.f32.mrf.mxu0
  %v745 = vadd.f32 %v576, %v744
  %746 = vmatmul.bf16.gmra.mxu0 %v322
  %v747 = vpop.f32.mrf.mxu0
  %v748 = vadd.f32 %v579, %v747
  %v749 = vpop.f32.mrf.mxu0
  %v750 = vadd.f32 %v581, %v749
  %751 = vmatmul.bf16.gmra.mxu0 %v324
  %v752 = vpop.f32.mrf.mxu0
  %v753 = vadd.f32 %v584, %v752
  %v754 = vpop.f32.mrf.mxu0
  %v755 = vadd.f32 %v586, %v754
  %756 = vmatmul.bf16.gmra.mxu0 %v326
  %v757 = vpop.f32.mrf.mxu0
  %v758 = vadd.f32 %v589, %v757
  %v759 = vpop.f32.mrf.mxu0
  %v760 = vadd.f32 %v591, %v759
  %761 = vmatmul.bf16.gmra.mxu0 %v328
  %v762 = vpop.f32.mrf.mxu0
  %v763 = vadd.f32 %v594, %v762
  %v764 = vpop.f32.mrf.mxu0
  %v765 = vadd.f32 %v596, %v764
  %766 = vmatmul.bf16.gmra.mxu0 %v330
  %v767 = vpop.f32.mrf.mxu0
  %v768 = vadd.f32 %v599, %v767
  %v769 = vpop.f32.mrf.mxu0
  %v770 = vadd.f32 %v601, %v769
  %771 = vmatmul.bf16.gmra.mxu0 %v332
  %v772 = vpop.f32.mrf.mxu0
  %v773 = vadd.f32 %v604, %v772
  %v774 = vpop.f32.mrf.mxu0
  %v775 = vadd.f32 %v606, %v774
  %776 = vmatmul.bf16.gmra.mxu0 %v334
  %v777 = vpop.f32.mrf.mxu0
  %v778 = vadd.f32 %v609, %v777
  %v779 = vpop.f32.mrf.mxu0
  %v780 = vadd.f32 %v611, %v779
  %781 = vmatmul.bf16.gmra.mxu0 %v336
  %v782 = vpop.f32.mrf.mxu0
  %v783 = vadd.f32 %v614, %v782
  %v784 = vpop.f32.mrf.mxu0
  %v785 = vadd.f32 %v616, %v784
  %786 = vmatmul.bf16.gmra.mxu0 %v338
  %v787 = vpop.f32.mrf.mxu0
  %v788 = vadd.f32 %v619, %v787
  %v789 = vpop.f32.mrf.mxu0
  %v790 = vadd.f32 %v621, %v789
  %791 = vmatmul.bf16.gmra.mxu0 %v340
  %v792 = vpop.f32.mrf.mxu0
  %v793 = vadd.f32 %v624, %v792
  %v794 = vpop.f32.mrf.mxu0
  %v795 = vadd.f32 %v626, %v794
  %796 = vmatmul.bf16.gmra.mxu0 %v342
  %v797 = vpop.f32.mrf.mxu0
  %v798 = vadd.f32 %v629, %v797
  %v799 = vpop.f32.mrf.mxu0
  %v800 = vadd.f32 %v631, %v799
  %801 = vmatmul.bf16.gmra.mxu0 %v344
  %v802 = vpop.f32.mrf.mxu0
  %v803 = vadd.f32 %v634, %v802
  %v804 = vpop.f32.mrf.mxu0
  %v805 = vadd.f32 %v636, %v804
  %806 = vmatmul.bf16.gmra.mxu0 %v346
  %v807 = vpop.f32.mrf.mxu0
  %v808 = vadd.f32 %v639, %v807
  %v809 = vpop.f32.mrf.mxu0
  %v810 = vadd.f32 %v641, %v809
  %811 = vmatmul.bf16.gmra.mxu0 %v348
  %v812 = vpop.f32.mrf.mxu0
  %v813 = vadd.f32 %v644, %v812
  %v814 = vpop.f32.mrf.mxu0
  %v815 = vadd.f32 %v646, %v814
  %816 = vmatmul.bf16.gmra.mxu0 %v350
  %v817 = vpop.f32.mrf.mxu0
  %v818 = vadd.f32 %v649, %v817
  %v819 = vpop.f32.mrf.mxu0
  %v820 = vadd.f32 %v651, %v819
  %821 = vmatmul.bf16.gmra.mxu0 %v352
  %v822 = vpop.f32.mrf.mxu0
  %v823 = vadd.f32 %v654, %v822
  %v824 = vpop.f32.mrf.mxu0
  %v825 = vadd.f32 %v656, %v824
  %826 = vmatmul.bf16.gmra.mxu0 %v354
  %v827 = vpop.f32.mrf.mxu0
  %v828 = vadd.f32 %v659, %v827
  %v829 = vpop.f32.mrf.mxu0
  %v830 = vadd.f32 %v661, %v829
  %831 = vmatmul.bf16.gmra.mxu0 %v356
  %v832 = vpop.f32.mrf.mxu0
  %v833 = vadd.f32 %v664, %v832
  %v834 = vpop.f32.mrf.mxu0
  %v835 = vadd.f32 %v666, %v834
  %836 = vmatmul.bf16.gmra.mxu0 %v358
  %v837 = vpop.f32.mrf.mxu0
  %v838 = vadd.f32 %v669, %v837
  %v839 = vpop.f32.mrf.mxu0
  %v840 = vadd.f32 %v671, %v839
  %841 = vmatmul.bf16.gmra.mxu0 %v360
  %v842 = vpop.f32.mrf.mxu0
  %v843 = vadd.f32 %v674, %v842
  %v844 = vpop.f32.mrf.mxu0
  %v845 = vadd.f32 %v676, %v844
  %846 = vmatmul.bf16.gmra.mxu0 %v362
  %v847 = vpop.f32.mrf.mxu0
  %v848 = vadd.f32 %v679, %v847
  %v849 = vpop.f32.mrf.mxu0
  %v850 = vadd.f32 %v681, %v849
  %851 = vmatmul.bf16.gmra.mxu0 %v364
  %v852 = vpop.f32.mrf.mxu0
  %v853 = vadd.f32 %v684, %v852
  %v854 = vpop.f32.mrf.mxu0
  %v855 = vadd.f32 %v686, %v854
  %856 = vmatmul.bf16.gmra.mxu0 %v366
  %v857 = vpop.f32.mrf.mxu0
  %v858 = vadd.f32 %v689, %v857
  %v859 = vpop.f32.mrf.mxu0
  %v860 = vadd.f32 %v691, %v859
  %861 = vmatmul.bf16.gmra.mxu0 %v368
  %v862 = vpop.f32.mrf.mxu0
  %v863 = vadd.f32 %v694, %v862
  %v864 = vpop.f32.mrf.mxu0
  %v865 = vadd.f32 %v696, %v864
  %866 = vdwg.mxu0
  %v867 = vld [vmem:[%s2] sm:$0x1]
  %v869 = vperm.slane %v867, 0
  %v871 = vmul.f32 %v708, %v869
  %v872 = vmul.f32 %v710, %v869
  %v873 = vmul.f32 %v713, %v869
  %v874 = vmul.f32 %v715, %v869
  %v875 = vmul.f32 %v718, %v869
  %v876 = vmul.f32 %v720, %v869
  %v877 = vmul.f32 %v723, %v869
  %v878 = vmul.f32 %v725, %v869
  %v879 = vmul.f32 %v728, %v869
  %v880 = vmul.f32 %v730, %v869
  %v881 = vmul.f32 %v733, %v869
  %v882 = vmul.f32 %v735, %v869
  %v883 = vmul.f32 %v738, %v869
  %v884 = vmul.f32 %v740, %v869
  %v885 = vmul.f32 %v743, %v869
  %v886 = vmul.f32 %v745, %v869
  %v887 = vmul.f32 %v748, %v869
  %v888 = vmul.f32 %v750, %v869
  %v889 = vmul.f32 %v753, %v869
  %v890 = vmul.f32 %v755, %v869
  %v891 = vmul.f32 %v758, %v869
  %v892 = vmul.f32 %v760, %v869
  %v893 = vmul.f32 %v763, %v869
  %v894 = vmul.f32 %v765, %v869
  %v895 = vmul.f32 %v768, %v869
  %v896 = vmul.f32 %v770, %v869
  %v897 = vmul.f32 %v773, %v869
  %v898 = vmul.f32 %v775, %v869
  %v899 = vmul.f32 %v778, %v869
  %v900 = vmul.f32 %v780, %v869
  %v901 = vmul.f32 %v783, %v869
  %v902 = vmul.f32 %v785, %v869
  %v903 = vmul.f32 %v788, %v869
  %v904 = vmul.f32 %v790, %v869
  %v905 = vmul.f32 %v793, %v869
  %v906 = vmul.f32 %v795, %v869
  %v907 = vmul.f32 %v798, %v869
  %v908 = vmul.f32 %v800, %v869
  %v909 = vmul.f32 %v803, %v869
  %v910 = vmul.f32 %v805, %v869
  %v911 = vmul.f32 %v808, %v869
  %v912 = vmul.f32 %v810, %v869
  %v913 = vmul.f32 %v813, %v869
  %v914 = vmul.f32 %v815, %v869
  %v915 = vmul.f32 %v818, %v869
  %v916 = vmul.f32 %v820, %v869
  %v917 = vmul.f32 %v823, %v869
  %v918 = vmul.f32 %v825, %v869
  %v919 = vmul.f32 %v828, %v869
  %v920 = vmul.f32 %v830, %v869
  %v921 = vmul.f32 %v833, %v869
  %v922 = vmul.f32 %v835, %v869
  %v923 = vmul.f32 %v838, %v869
  %v924 = vmul.f32 %v840, %v869
  %v925 = vmul.f32 %v843, %v869
  %v926 = vmul.f32 %v845, %v869
  %v927 = vmul.f32 %v848, %v869
  %v928 = vmul.f32 %v850, %v869
  %v929 = vmul.f32 %v853, %v869
  %v930 = vmul.f32 %v855, %v869
  %v931 = vmul.f32 %v858, %v869
  %v932 = vmul.f32 %v860, %v869
  %v933 = vmul.f32 %v863, %v869
  %v934 = vmul.f32 %v865, %v869
  %v935 = vld [vmem:[%s3] sm:$0x1]
  %v937 = vperm.slane %v935, 0
  %v939 = vadd.f32 %v871, %v937
  %v940 = vadd.f32 %v872, %v937
  %v941 = vadd.f32 %v873, %v937
  %v942 = vadd.f32 %v874, %v937
  %v943 = vadd.f32 %v875, %v937
  %v944 = vadd.f32 %v876, %v937
  %v945 = vadd.f32 %v877, %v937
  %v946 = vadd.f32 %v878, %v937
  %v947 = vadd.f32 %v879, %v937
  %v948 = vadd.f32 %v880, %v937
  %v949 = vadd.f32 %v881, %v937
  %v950 = vadd.f32 %v882, %v937
  %v951 = vadd.f32 %v883, %v937
  %v952 = vadd.f32 %v884, %v937
  %v953 = vadd.f32 %v885, %v937
  %v954 = vadd.f32 %v886, %v937
  %v955 = vadd.f32 %v887, %v937
  %v956 = vadd.f32 %v888, %v937
  %v957 = vadd.f32 %v889, %v937
  %v958 = vadd.f32 %v890, %v937
  %v959 = vadd.f32 %v891, %v937
  %v960 = vadd.f32 %v892, %v937
  %v961 = vadd.f32 %v893, %v937
  %v962 = vadd.f32 %v894, %v937
  %v963 = vadd.f32 %v895, %v937
  %v964 = vadd.f32 %v896, %v937
  %v965 = vadd.f32 %v897, %v937
  %v966 = vadd.f32 %v898, %v937
  %v967 = vadd.f32 %v899, %v937
  %v968 = vadd.f32 %v900, %v937
  %v969 = vadd.f32 %v901, %v937
  %v970 = vadd.f32 %v902, %v937
  %v971 = vadd.f32 %v903, %v937
  %v972 = vadd.f32 %v904, %v937
  %v973 = vadd.f32 %v905, %v937
  %v974 = vadd.f32 %v906, %v937
  %v975 = vadd.f32 %v907, %v937
  %v976 = vadd.f32 %v908, %v937
  %v977 = vadd.f32 %v909, %v937
  %v978 = vadd.f32 %v910, %v937
  %v979 = vadd.f32 %v911, %v937
  %v980 = vadd.f32 %v912, %v937
  %v981 = vadd.f32 %v913, %v937
  %v982 = vadd.f32 %v914, %v937
  %v983 = vadd.f32 %v915, %v937
  %v984 = vadd.f32 %v916, %v937
  %v985 = vadd.f32 %v917, %v937
  %v986 = vadd.f32 %v918, %v937
  %v987 = vadd.f32 %v919, %v937
  %v988 = vadd.f32 %v920, %v937
  %v989 = vadd.f32 %v921, %v937
  %v990 = vadd.f32 %v922, %v937
  %v991 = vadd.f32 %v923, %v937
  %v992 = vadd.f32 %v924, %v937
  %v993 = vadd.f32 %v925, %v937
  %v994 = vadd.f32 %v926, %v937
  %v995 = vadd.f32 %v927, %v937
  %v996 = vadd.f32 %v928, %v937
  %v997 = vadd.f32 %v929, %v937
  %v998 = vadd.f32 %v930, %v937
  %v999 = vadd.f32 %v931, %v937
  %v1000 = vadd.f32 %v932, %v937
  %v1001 = vadd.f32 %v933, %v937
  %v1002 = vadd.f32 %v934, %v937
  %v1003 = vmax.f32 %v939, 0.0
  %v1004 = vmax.f32 %v940, 0.0
  %v1005 = vmax.f32 %v941, 0.0
  %v1006 = vmax.f32 %v942, 0.0
  %v1007 = vmax.f32 %v943, 0.0
  %v1008 = vmax.f32 %v944, 0.0
  %v1009 = vmax.f32 %v945, 0.0
  %v1010 = vmax.f32 %v946, 0.0
  %v1011 = vmax.f32 %v947, 0.0
  %v1012 = vmax.f32 %v948, 0.0
  %v1013 = vmax.f32 %v949, 0.0
  %v1014 = vmax.f32 %v950, 0.0
  %v1015 = vmax.f32 %v951, 0.0
  %v1016 = vmax.f32 %v952, 0.0
  %v1017 = vmax.f32 %v953, 0.0
  %v1018 = vmax.f32 %v954, 0.0
  %v1019 = vmax.f32 %v955, 0.0
  %v1020 = vmax.f32 %v956, 0.0
  %v1021 = vmax.f32 %v957, 0.0
  %v1022 = vmax.f32 %v958, 0.0
  %v1023 = vmax.f32 %v959, 0.0
  %v1024 = vmax.f32 %v960, 0.0
  %v1025 = vmax.f32 %v961, 0.0
  %v1026 = vmax.f32 %v962, 0.0
  %v1027 = vmax.f32 %v963, 0.0
  %v1028 = vmax.f32 %v964, 0.0
  %v1029 = vmax.f32 %v965, 0.0
  %v1030 = vmax.f32 %v966, 0.0
  %v1031 = vmax.f32 %v967, 0.0
  %v1032 = vmax.f32 %v968, 0.0
  %v1033 = vmax.f32 %v969, 0.0
  %v1034 = vmax.f32 %v970, 0.0
  %v1035 = vmax.f32 %v971, 0.0
  %v1036 = vmax.f32 %v972, 0.0
  %v1037 = vmax.f32 %v973, 0.0
  %v1038 = vmax.f32 %v974, 0.0
  %v1039 = vmax.f32 %v975, 0.0
  %v1040 = vmax.f32 %v976, 0.0
  %v1041 = vmax.f32 %v977, 0.0
  %v1042 = vmax.f32 %v978, 0.0
  %v1043 = vmax.f32 %v979, 0.0
  %v1044 = vmax.f32 %v980, 0.0
  %v1045 = vmax.f32 %v981, 0.0
  %v1046 = vmax.f32 %v982, 0.0
  %v1047 = vmax.f32 %v983, 0.0
  %v1048 = vmax.f32 %v984, 0.0
  %v1049 = vmax.f32 %v985, 0.0
  %v1050 = vmax.f32 %v986, 0.0
  %v1051 = vmax.f32 %v987, 0.0
  %v1052 = vmax.f32 %v988, 0.0
  %v1053 = vmax.f32 %v989, 0.0
  %v1054 = vmax.f32 %v990, 0.0
  %v1055 = vmax.f32 %v991, 0.0
  %v1056 = vmax.f32 %v992, 0.0
  %v1057 = vmax.f32 %v993, 0.0
  %v1058 = vmax.f32 %v994, 0.0
  %v1059 = vmax.f32 %v995, 0.0
  %v1060 = vmax.f32 %v996, 0.0
  %v1061 = vmax.f32 %v997, 0.0
  %v1062 = vmax.f32 %v998, 0.0
  %v1063 = vmax.f32 %v999, 0.0
  %v1064 = vmax.f32 %v1000, 0.0
  %v1065 = vmax.f32 %v1001, 0.0
  %v1066 = vmax.f32 %v1002, 0.0
  %1067 = vst [vmem:[%s4] sm:$0xff] %v1003
  %1068 = vst [vmem:[%s4 + $0x8] sm:$0xff] %v1004
  %1069 = vst [vmem:[%s4 + $0x10] sm:$0xff] %v1005
  %1070 = vst [vmem:[%s4 + $0x18] sm:$0xff] %v1006
  %1071 = vst [vmem:[%s4 + $0x20] sm:$0xff] %v1007
  %1072 = vst [vmem:[%s4 + $0x28] sm:$0xff] %v1008
  %1073 = vst [vmem:[%s4 + $0x30] sm:$0xff] %v1009
  %1074 = vst [vmem:[%s4 + $0x38] sm:$0xff] %v1010
  %1075 = vst [vmem:[%s4 + $0x40] sm:$0xff] %v1011
  %1076 = vst [vmem:[%s4 + $0x48] sm:$0xff] %v1012
  %1077 = vst [vmem:[%s4 + $0x50] sm:$0xff] %v1013
  %1078 = vst [vmem:[%s4 + $0x58] sm:$0xff] %v1014
  %1079 = vst [vmem:[%s4 + $0x60] sm:$0xff] %v1015
  %1080 = vst [vmem:[%s4 + $0x68] sm:$0xff] %v1016
  %1081 = vst [vmem:[%s4 + $0x70] sm:$0xff] %v1017
  %1082 = vst [vmem:[%s4 + $0x78] sm:$0xff] %v1018
  %1083 = vst [vmem:[%s4 + $0x80] sm:$0xff] %v1019
  %1084 = vst [vmem:[%s4 + $0x88] sm:$0xff] %v1020
  %1085 = vst [vmem:[%s4 + $0x90] sm:$0xff] %v1021
  %1086 = vst [vmem:[%s4 + $0x98] sm:$0xff] %v1022
  %1087 = vst [vmem:[%s4 + $0xa0] sm:$0xff] %v1023
  %1088 = vst [vmem:[%s4 + $0xa8] sm:$0xff] %v1024
  %1089 = vst [vmem:[%s4 + $0xb0] sm:$0xff] %v1025
  %1090 = vst [vmem:[%s4 + $0xb8] sm:$0xff] %v1026
  %1091 = vst [vmem:[%s4 + $0xc0] sm:$0xff] %v1027
  %1092 = vst [vmem:[%s4 + $0xc8] sm:$0xff] %v1028
  %1093 = vst [vmem:[%s4 + $0xd0] sm:$0xff] %v1029
  %1094 = vst [vmem:[%s4 + $0xd8] sm:$0xff] %v1030
  %1095 = vst [vmem:[%s4 + $0xe0] sm:$0xff] %v1031
  %1096 = vst [vmem:[%s4 + $0xe8] sm:$0xff] %v1032
  %1097 = vst [vmem:[%s4 + $0xf0] sm:$0xff] %v1033
  %1098 = vst [vmem:[%s4 + $0xf8] sm:$0xff] %v1034
  %1099 = vst [vmem:[%s4 + $0x100] sm:$0xff] %v1035
  %1100 = vst [vmem:[%s4 + $0x108] sm:$0xff] %v1036
  %1101 = vst [vmem:[%s4 + $0x110] sm:$0xff] %v1037
  %1102 = vst [vmem:[%s4 + $0x118] sm:$0xff] %v1038
  %1103 = vst [vmem:[%s4 + $0x120] sm:$0xff] %v1039
  %1104 = vst [vmem:[%s4 + $0x128] sm:$0xff] %v1040
  %1105 = vst [vmem:[%s4 + $0x130] sm:$0xff] %v1041
  %1106 = vst [vmem:[%s4 + $0x138] sm:$0xff] %v1042
  %1107 = vst [vmem:[%s4 + $0x140] sm:$0xff] %v1043
  %1108 = vst [vmem:[%s4 + $0x148] sm:$0xff] %v1044
  %1109 = vst [vmem:[%s4 + $0x150] sm:$0xff] %v1045
  %1110 = vst [vmem:[%s4 + $0x158] sm:$0xff] %v1046
  %1111 = vst [vmem:[%s4 + $0x160] sm:$0xff] %v1047
  %1112 = vst [vmem:[%s4 + $0x168] sm:$0xff] %v1048
  %1113 = vst [vmem:[%s4 + $0x170] sm:$0xff] %v1049
  %1114 = vst [vmem:[%s4 + $0x178] sm:$0xff] %v1050
  %1115 = vst [vmem:[%s4 + $0x180] sm:$0xff] %v1051
  %1116 = vst [vmem:[%s4 + $0x188] sm:$0xff] %v1052
  %1117 = vst [vmem:[%s4 + $0x190] sm:$0xff] %v1053
  %1118 = vst [vmem:[%s4 + $0x198] sm:$0xff] %v1054
  %1119 = vst [vmem:[%s4 + $0x1a0] sm:$0xff] %v1055
  %1120 = vst [vmem:[%s4 + $0x1a8] sm:$0xff] %v1056
  %1121 = vst [vmem:[%s4 + $0x1b0] sm:$0xff] %v1057
  %1122 = vst [vmem:[%s4 + $0x1b8] sm:$0xff] %v1058
  %1123 = vst [vmem:[%s4 + $0x1c0] sm:$0xff] %v1059
  %1124 = vst [vmem:[%s4 + $0x1c8] sm:$0xff] %v1060
  %1125 = vst [vmem:[%s4 + $0x1d0] sm:$0xff] %v1061
  %1126 = vst [vmem:[%s4 + $0x1d8] sm:$0xff] %v1062
  %1127 = vst [vmem:[%s4 + $0x1e0] sm:$0xff] %v1063
  %1128 = vst [vmem:[%s4 + $0x1e8] sm:$0xff] %v1064
  %1129 = vst [vmem:[%s4 + $0x1f0] sm:$0xff] %v1065
  %1130 = vst [vmem:[%s4 + $0x1f8] sm:$0xff] %v1066
  // Predicated region
  $region18: #{densenet_forward.12} parent=0 // pred_check
    _
  $region19: #{densenet_forward.12} parent=0 // pred_check_branch
    %1132 = sbr.rel (0) target = $region21
  $region20: #{densenet_forward.12} parent=0 // pred_region
    _
  $region21: #{densenet_forward.12} parent=0 // pred_fallthru
    _
  // Predicated region
  $region22: #{densenet_forward.12} parent=0 // pred_check
    _
  $region23: #{densenet_forward.12} parent=0 // pred_check_branch
    %1134 = sbr.rel (0) target = $region25
  $region24: #{densenet_forward.12} parent=0 // pred_region
    _
  $region25: #{densenet_forward.12} parent=0 // pred_fallthru
    _

// kernel: densenet_forward.13
$region0: #{densenet_forward.13}
  #allocation0 [shape = 'u32[]', space=smem, size = 0x4, offset = 0x4, fixed_abs, tag = 'smem constant byte address 0x4 - core index']
  #allocation1 [shape = 'u32[72,128]{1,0:T(1,128)}', space=vmem, size = 0x9000, scoped, tag = 'internal scratch']
  %s0 = inlined_call_operand.vmem [shape: f32[9,128,128], index: 0, kind: input, shape index: {}]
  %s1 = inlined_call_operand.vmem [shape: f32[128,128], index: 1, kind: output, shape index: {}]
  %s2 = sld [smem:[#allocation0]]
  $region14: #{densenet_forward.13} parent=0
    _
  %s4 = ssub.s32 1, %s2
  %s5 = scalar_select 0, %s4, %s2
  // Predicated region
  $region2: #{densenet_forward.13} parent=0 // pred_check
    _
  $region3: #{densenet_forward.13} parent=0 // pred_check_branch
    %7 = sbr.rel (0) target = $region5
  $region4: #{densenet_forward.13} parent=0 // pred_region
    _
  $region5: #{densenet_forward.13} parent=0 // pred_fallthru
    _
  %v8 = vld [vmem:[%s0] sm:$0xff]
  %v9 = vld [vmem:[%s0 + $0x8] sm:$0xff]
  %v10 = vld [vmem:[%s0 + $0x10] sm:$0xff]
  %v11 = vld [vmem:[%s0 + $0x18] sm:$0xff]
  %v12 = vld [vmem:[%s0 + $0x20] sm:$0xff]
  %v13 = vld [vmem:[%s0 + $0x28] sm:$0xff]
  %v14 = vld [vmem:[%s0 + $0x30] sm:$0xff]
  %v15 = vld [vmem:[%s0 + $0x38] sm:$0xff]
  %v16 = vld [vmem:[%s0 + $0x40] sm:$0xff]
  %v17 = vld [vmem:[%s0 + $0x48] sm:$0xff]
  %v18 = vld [vmem:[%s0 + $0x50] sm:$0xff]
  %v19 = vld [vmem:[%s0 + $0x58] sm:$0xff]
  %v20 = vld [vmem:[%s0 + $0x60] sm:$0xff]
  %v21 = vld [vmem:[%s0 + $0x68] sm:$0xff]
  %v22 = vld [vmem:[%s0 + $0x70] sm:$0xff]
  %v23 = vld [vmem:[%s0 + $0x78] sm:$0xff]
  %s24 = scalar_lea.vmem %s0, 128
  %v25 = vld [vmem:[%s24] sm:$0xff]
  %v26 = vld [vmem:[%s24 + $0x8] sm:$0xff]
  %v27 = vld [vmem:[%s24 + $0x10] sm:$0xff]
  %v28 = vld [vmem:[%s24 + $0x18] sm:$0xff]
  %v29 = vld [vmem:[%s24 + $0x20] sm:$0xff]
  %v30 = vld [vmem:[%s24 + $0x28] sm:$0xff]
  %v31 = vld [vmem:[%s24 + $0x30] sm:$0xff]
  %v32 = vld [vmem:[%s24 + $0x38] sm:$0xff]
  %v33 = vld [vmem:[%s24 + $0x40] sm:$0xff]
  %v34 = vld [vmem:[%s24 + $0x48] sm:$0xff]
  %v35 = vld [vmem:[%s24 + $0x50] sm:$0xff]
  %v36 = vld [vmem:[%s24 + $0x58] sm:$0xff]
  %v37 = vld [vmem:[%s24 + $0x60] sm:$0xff]
  %v38 = vld [vmem:[%s24 + $0x68] sm:$0xff]
  %v39 = vld [vmem:[%s24 + $0x70] sm:$0xff]
  %v40 = vld [vmem:[%s24 + $0x78] sm:$0xff]
  %v41 = vmax.f32 %v8, %v25
  %v42 = vmax.f32 %v9, %v26
  %v43 = vmax.f32 %v10, %v27
  %v44 = vmax.f32 %v11, %v28
  %v45 = vmax.f32 %v12, %v29
  %v46 = vmax.f32 %v13, %v30
  %v47 = vmax.f32 %v14, %v31
  %v48 = vmax.f32 %v15, %v32
  %v49 = vmax.f32 %v16, %v33
  %v50 = vmax.f32 %v17, %v34
  %v51 = vmax.f32 %v18, %v35
  %v52 = vmax.f32 %v19, %v36
  %v53 = vmax.f32 %v20, %v37
  %v54 = vmax.f32 %v21, %v38
  %v55 = vmax.f32 %v22, %v39
  %v56 = vmax.f32 %v23, %v40
  %s57 = scalar_lea.vmem %s0, 256
  %v58 = vld [vmem:[%s57] sm:$0xff]
  %v59 = vld [vmem:[%s57 + $0x8] sm:$0xff]
  %v60 = vld [vmem:[%s57 + $0x10] sm:$0xff]
  %v61 = vld [vmem:[%s57 + $0x18] sm:$0xff]
  %v62 = vld [vmem:[%s57 + $0x20] sm:$0xff]
  %v63 = vld [vmem:[%s57 + $0x28] sm:$0xff]
  %v64 = vld [vmem:[%s57 + $0x30] sm:$0xff]
  %v65 = vld [vmem:[%s57 + $0x38] sm:$0xff]
  %v66 = vld [vmem:[%s57 + $0x40] sm:$0xff]
  %v67 = vld [vmem:[%s57 + $0x48] sm:$0xff]
  %v68 = vld [vmem:[%s57 + $0x50] sm:$0xff]
  %v69 = vld [vmem:[%s57 + $0x58] sm:$0xff]
  %v70 = vld [vmem:[%s57 + $0x60] sm:$0xff]
  %v71 = vld [vmem:[%s57 + $0x68] sm:$0xff]
  %v72 = vld [vmem:[%s57 + $0x70] sm:$0xff]
  %v73 = vld [vmem:[%s57 + $0x78] sm:$0xff]
  %v74 = vmax.f32 %v41, %v58
  %v75 = vmax.f32 %v42, %v59
  %v76 = vmax.f32 %v43, %v60
  %v77 = vmax.f32 %v44, %v61
  %v78 = vmax.f32 %v45, %v62
  %v79 = vmax.f32 %v46, %v63
  %v80 = vmax.f32 %v47, %v64
  %v81 = vmax.f32 %v48, %v65
  %v82 = vmax.f32 %v49, %v66
  %v83 = vmax.f32 %v50, %v67
  %v84 = vmax.f32 %v51, %v68
  %v85 = vmax.f32 %v52, %v69
  %v86 = vmax.f32 %v53, %v70
  %v87 = vmax.f32 %v54, %v71
  %v88 = vmax.f32 %v55, %v72
  %v89 = vmax.f32 %v56, %v73
  %s90 = scalar_lea.vmem %s0, 384
  %v91 = vld [vmem:[%s90] sm:$0xff]
  %v92 = vld [vmem:[%s90 + $0x8] sm:$0xff]
  %v93 = vld [vmem:[%s90 + $0x10] sm:$0xff]
  %v94 = vld [vmem:[%s90 + $0x18] sm:$0xff]
  %v95 = vld [vmem:[%s90 + $0x20] sm:$0xff]
  %v96 = vld [vmem:[%s90 + $0x28] sm:$0xff]
  %v97 = vld [vmem:[%s90 + $0x30] sm:$0xff]
  %v98 = vld [vmem:[%s90 + $0x38] sm:$0xff]
  %v99 = vld [vmem:[%s90 + $0x40] sm:$0xff]
  %v100 = vld [vmem:[%s90 + $0x48] sm:$0xff]
  %v101 = vld [vmem:[%s90 + $0x50] sm:$0xff]
  %v102 = vld [vmem:[%s90 + $0x58] sm:$0xff]
  %v103 = vld [vmem:[%s90 + $0x60] sm:$0xff]
  %v104 = vld [vmem:[%s90 + $0x68] sm:$0xff]
  %v105 = vld [vmem:[%s90 + $0x70] sm:$0xff]
  %v106 = vld [vmem:[%s90 + $0x78] sm:$0xff]
  %v107 = vmax.f32 %v74, %v91
  %v108 = vmax.f32 %v75, %v92
  %v109 = vmax.f32 %v76, %v93
  %v110 = vmax.f32 %v77, %v94
  %v111 = vmax.f32 %v78, %v95
  %v112 = vmax.f32 %v79, %v96
  %v113 = vmax.f32 %v80, %v97
  %v114 = vmax.f32 %v81, %v98
  %v115 = vmax.f32 %v82, %v99
  %v116 = vmax.f32 %v83, %v100
  %v117 = vmax.f32 %v84, %v101
  %v118 = vmax.f32 %v85, %v102
  %v119 = vmax.f32 %v86, %v103
  %v120 = vmax.f32 %v87, %v104
  %v121 = vmax.f32 %v88, %v105
  %v122 = vmax.f32 %v89, %v106
  %s123 = scalar_lea.vmem %s0, 512
  %v124 = vld [vmem:[%s123] sm:$0xff]
  %v125 = vld [vmem:[%s123 + $0x8] sm:$0xff]
  %v126 = vld [vmem:[%s123 + $0x10] sm:$0xff]
  %v127 = vld [vmem:[%s123 + $0x18] sm:$0xff]
  %v128 = vld [vmem:[%s123 + $0x20] sm:$0xff]
  %v129 = vld [vmem:[%s123 + $0x28] sm:$0xff]
  %v130 = vld [vmem:[%s123 + $0x30] sm:$0xff]
  %v131 = vld [vmem:[%s123 + $0x38] sm:$0xff]
  %v132 = vld [vmem:[%s123 + $0x40] sm:$0xff]
  %v133 = vld [vmem:[%s123 + $0x48] sm:$0xff]
  %v134 = vld [vmem:[%s123 + $0x50] sm:$0xff]
  %v135 = vld [vmem:[%s123 + $0x58] sm:$0xff]
  %v136 = vld [vmem:[%s123 + $0x60] sm:$0xff]
  %v137 = vld [vmem:[%s123 + $0x68] sm:$0xff]
  %v138 = vld [vmem:[%s123 + $0x70] sm:$0xff]
  %v139 = vld [vmem:[%s123 + $0x78] sm:$0xff]
  %v140 = vmax.f32 %v107, %v124
  %v141 = vmax.f32 %v108, %v125
  %v142 = vmax.f32 %v109, %v126
  %v143 = vmax.f32 %v110, %v127
  %v144 = vmax.f32 %v111, %v128
  %v145 = vmax.f32 %v112, %v129
  %v146 = vmax.f32 %v113, %v130
  %v147 = vmax.f32 %v114, %v131
  %v148 = vmax.f32 %v115, %v132
  %v149 = vmax.f32 %v116, %v133
  %v150 = vmax.f32 %v117, %v134
  %v151 = vmax.f32 %v118, %v135
  %v152 = vmax.f32 %v119, %v136
  %v153 = vmax.f32 %v120, %v137
  %v154 = vmax.f32 %v121, %v138
  %v155 = vmax.f32 %v122, %v139
  %s156 = scalar_lea.vmem %s0, 640
  %v157 = vld [vmem:[%s156] sm:$0xff]
  %v158 = vld [vmem:[%s156 + $0x8] sm:$0xff]
  %v159 = vld [vmem:[%s156 + $0x10] sm:$0xff]
  %v160 = vld [vmem:[%s156 + $0x18] sm:$0xff]
  %v161 = vld [vmem:[%s156 + $0x20] sm:$0xff]
  %v162 = vld [vmem:[%s156 + $0x28] sm:$0xff]
  %v163 = vld [vmem:[%s156 + $0x30] sm:$0xff]
  %v164 = vld [vmem:[%s156 + $0x38] sm:$0xff]
  %v165 = vld [vmem:[%s156 + $0x40] sm:$0xff]
  %v166 = vld [vmem:[%s156 + $0x48] sm:$0xff]
  %v167 = vld [vmem:[%s156 + $0x50] sm:$0xff]
  %v168 = vld [vmem:[%s156 + $0x58] sm:$0xff]
  %v169 = vld [vmem:[%s156 + $0x60] sm:$0xff]
  %v170 = vld [vmem:[%s156 + $0x68] sm:$0xff]
  %v171 = vld [vmem:[%s156 + $0x70] sm:$0xff]
  %v172 = vld [vmem:[%s156 + $0x78] sm:$0xff]
  %v173 = vmax.f32 %v140, %v157
  %v174 = vmax.f32 %v141, %v158
  %v175 = vmax.f32 %v142, %v159
  %v176 = vmax.f32 %v143, %v160
  %v177 = vmax.f32 %v144, %v161
  %v178 = vmax.f32 %v145, %v162
  %v179 = vmax.f32 %v146, %v163
  %v180 = vmax.f32 %v147, %v164
  %v181 = vmax.f32 %v148, %v165
  %v182 = vmax.f32 %v149, %v166
  %v183 = vmax.f32 %v150, %v167
  %v184 = vmax.f32 %v151, %v168
  %v185 = vmax.f32 %v152, %v169
  %v186 = vmax.f32 %v153, %v170
  %v187 = vmax.f32 %v154, %v171
  %v188 = vmax.f32 %v155, %v172
  %s189 = scalar_lea.vmem %s0, 768
  %v190 = vld [vmem:[%s189] sm:$0xff]
  %v191 = vld [vmem:[%s189 + $0x8] sm:$0xff]
  %v192 = vld [vmem:[%s189 + $0x10] sm:$0xff]
  %v193 = vld [vmem:[%s189 + $0x18] sm:$0xff]
  %v194 = vld [vmem:[%s189 + $0x20] sm:$0xff]
  %v195 = vld [vmem:[%s189 + $0x28] sm:$0xff]
  %v196 = vld [vmem:[%s189 + $0x30] sm:$0xff]
  %v197 = vld [vmem:[%s189 + $0x38] sm:$0xff]
  %v198 = vld [vmem:[%s189 + $0x40] sm:$0xff]
  %v199 = vld [vmem:[%s189 + $0x48] sm:$0xff]
  %v200 = vld [vmem:[%s189 + $0x50] sm:$0xff]
  %v201 = vld [vmem:[%s189 + $0x58] sm:$0xff]
  %v202 = vld [vmem:[%s189 + $0x60] sm:$0xff]
  %v203 = vld [vmem:[%s189 + $0x68] sm:$0xff]
  %v204 = vld [vmem:[%s189 + $0x70] sm:$0xff]
  %v205 = vld [vmem:[%s189 + $0x78] sm:$0xff]
  %v206 = vmax.f32 %v173, %v190
  %v207 = vmax.f32 %v174, %v191
  %v208 = vmax.f32 %v175, %v192
  %v209 = vmax.f32 %v176, %v193
  %v210 = vmax.f32 %v177, %v194
  %v211 = vmax.f32 %v178, %v195
  %v212 = vmax.f32 %v179, %v196
  %v213 = vmax.f32 %v180, %v197
  %v214 = vmax.f32 %v181, %v198
  %v215 = vmax.f32 %v182, %v199
  %v216 = vmax.f32 %v183, %v200
  %v217 = vmax.f32 %v184, %v201
  %v218 = vmax.f32 %v185, %v202
  %v219 = vmax.f32 %v186, %v203
  %v220 = vmax.f32 %v187, %v204
  %v221 = vmax.f32 %v188, %v205
  %s222 = scalar_lea.vmem %s0, 896
  %v223 = vld [vmem:[%s222] sm:$0xff]
  %v224 = vld [vmem:[%s222 + $0x8] sm:$0xff]
  %v225 = vld [vmem:[%s222 + $0x10] sm:$0xff]
  %v226 = vld [vmem:[%s222 + $0x18] sm:$0xff]
  %v227 = vld [vmem:[%s222 + $0x20] sm:$0xff]
  %v228 = vld [vmem:[%s222 + $0x28] sm:$0xff]
  %v229 = vld [vmem:[%s222 + $0x30] sm:$0xff]
  %v230 = vld [vmem:[%s222 + $0x38] sm:$0xff]
  %v231 = vld [vmem:[%s222 + $0x40] sm:$0xff]
  %v232 = vld [vmem:[%s222 + $0x48] sm:$0xff]
  %v233 = vld [vmem:[%s222 + $0x50] sm:$0xff]
  %v234 = vld [vmem:[%s222 + $0x58] sm:$0xff]
  %v235 = vld [vmem:[%s222 + $0x60] sm:$0xff]
  %v236 = vld [vmem:[%s222 + $0x68] sm:$0xff]
  %v237 = vld [vmem:[%s222 + $0x70] sm:$0xff]
  %v238 = vld [vmem:[%s222 + $0x78] sm:$0xff]
  %v239 = vmax.f32 %v206, %v223
  %v240 = vmax.f32 %v207, %v224
  %v241 = vmax.f32 %v208, %v225
  %v242 = vmax.f32 %v209, %v226
  %v243 = vmax.f32 %v210, %v227
  %v244 = vmax.f32 %v211, %v228
  %v245 = vmax.f32 %v212, %v229
  %v246 = vmax.f32 %v213, %v230
  %v247 = vmax.f32 %v214, %v231
  %v248 = vmax.f32 %v215, %v232
  %v249 = vmax.f32 %v216, %v233
  %v250 = vmax.f32 %v217, %v234
  %v251 = vmax.f32 %v218, %v235
  %v252 = vmax.f32 %v219, %v236
  %v253 = vmax.f32 %v220, %v237
  %v254 = vmax.f32 %v221, %v238
  %s255 = scalar_lea.vmem %s0, 1024
  %v256 = vld [vmem:[%s255] sm:$0xff]
  %v257 = vld [vmem:[%s255 + $0x8] sm:$0xff]
  %v258 = vld [vmem:[%s255 + $0x10] sm:$0xff]
  %v259 = vld [vmem:[%s255 + $0x18] sm:$0xff]
  %v260 = vld [vmem:[%s255 + $0x20] sm:$0xff]
  %v261 = vld [vmem:[%s255 + $0x28] sm:$0xff]
  %v262 = vld [vmem:[%s255 + $0x30] sm:$0xff]
  %v263 = vld [vmem:[%s255 + $0x38] sm:$0xff]
  %v264 = vld [vmem:[%s255 + $0x40] sm:$0xff]
  %v265 = vld [vmem:[%s255 + $0x48] sm:$0xff]
  %v266 = vld [vmem:[%s255 + $0x50] sm:$0xff]
  %v267 = vld [vmem:[%s255 + $0x58] sm:$0xff]
  %v268 = vld [vmem:[%s255 + $0x60] sm:$0xff]
  %v269 = vld [vmem:[%s255 + $0x68] sm:$0xff]
  %v270 = vld [vmem:[%s255 + $0x70] sm:$0xff]
  %v271 = vld [vmem:[%s255 + $0x78] sm:$0xff]
  %v272 = vmax.f32 %v239, %v256
  %v273 = vmax.f32 %v240, %v257
  %v274 = vmax.f32 %v241, %v258
  %v275 = vmax.f32 %v242, %v259
  %v276 = vmax.f32 %v243, %v260
  %v277 = vmax.f32 %v244, %v261
  %v278 = vmax.f32 %v245, %v262
  %v279 = vmax.f32 %v246, %v263
  %v280 = vmax.f32 %v247, %v264
  %v281 = vmax.f32 %v248, %v265
  %v282 = vmax.f32 %v249, %v266
  %v283 = vmax.f32 %v250, %v267
  %v284 = vmax.f32 %v251, %v268
  %v285 = vmax.f32 %v252, %v269
  %v286 = vmax.f32 %v253, %v270
  %v287 = vmax.f32 %v254, %v271
  %288 = vst [vmem:[%s1] sm:$0xff] %v272
  %289 = vst [vmem:[%s1 + $0x8] sm:$0xff] %v273
  %290 = vst [vmem:[%s1 + $0x10] sm:$0xff] %v274
  %291 = vst [vmem:[%s1 + $0x18] sm:$0xff] %v275
  %292 = vst [vmem:[%s1 + $0x20] sm:$0xff] %v276
  %293 = vst [vmem:[%s1 + $0x28] sm:$0xff] %v277
  %294 = vst [vmem:[%s1 + $0x30] sm:$0xff] %v278
  %295 = vst [vmem:[%s1 + $0x38] sm:$0xff] %v279
  %296 = vst [vmem:[%s1 + $0x40] sm:$0xff] %v280
  %297 = vst [vmem:[%s1 + $0x48] sm:$0xff] %v281
  %298 = vst [vmem:[%s1 + $0x50] sm:$0xff] %v282
  %299 = vst [vmem:[%s1 + $0x58] sm:$0xff] %v283
  %300 = vst [vmem:[%s1 + $0x60] sm:$0xff] %v284
  %301 = vst [vmem:[%s1 + $0x68] sm:$0xff] %v285
  %302 = vst [vmem:[%s1 + $0x70] sm:$0xff] %v286
  %303 = vst [vmem:[%s1 + $0x78] sm:$0xff] %v287
  // Predicated region
  $region6: #{densenet_forward.13} parent=0 // pred_check
    _
  $region7: #{densenet_forward.13} parent=0 // pred_check_branch
    %305 = sbr.rel (0) target = $region9
  $region8: #{densenet_forward.13} parent=0 // pred_region
    _
  $region9: #{densenet_forward.13} parent=0 // pred_fallthru
    _
  // Predicated region
  $region10: #{densenet_forward.13} parent=0 // pred_check
    _
  $region11: #{densenet_forward.13} parent=0 // pred_check_branch
    %307 = sbr.rel (0) target = $region13
  $region12: #{densenet_forward.13} parent=0 // pred_region
    _
  $region13: #{densenet_forward.13} parent=0 // pred_fallthru
    _

// kernel: densenet_forward.18
$region0: #{densenet_forward.18}
  #allocation0 [shape = 'u32[]', space=smem, size = 0x4, offset = 0x4, fixed_abs, tag = 'smem constant byte address 0x4 - core index']
  #allocation1 [shape = 'u32[72,128]{1,0:T(1,128)}', space=vmem, size = 0x9000, scoped, tag = 'internal scratch']
  %s0 = inlined_call_operand.vmem [shape: f32[128,128], index: 0, kind: input, shape index: {}]
  %s1 = inlined_call_operand.vmem [shape: bf16[128,128], index: 1, kind: input, shape index: {}]
  %s2 = inlined_call_operand.vmem [shape: f32[1,128], index: 2, kind: input, shape index: {}]
  %s3 = inlined_call_operand.vmem [shape: f32[1,128], index: 3, kind: input, shape index: {}]
  %s4 = inlined_call_operand.vmem [shape: f32[1,128], index: 4, kind: input, shape index: {}]
  %s5 = inlined_call_operand.vmem [shape: f32[1,128], index: 5, kind: input, shape index: {}]
  %s6 = inlined_call_operand.vmem [shape: f32[128,128], index: 6, kind: output, shape index: {}]
  %s7 = sld [smem:[#allocation0]]
  $region34: #{densenet_forward.18} parent=0
    _
  %s9 = ssub.s32 1, %s7
  %s10 = scalar_select 0, %s9, %s7
  // Predicated region
  $region2: #{densenet_forward.18} parent=0 // pred_check
    _
  $region3: #{densenet_forward.18} parent=0 // pred_check_branch
    %12 = sbr.rel (0) target = $region5
  $region4: #{densenet_forward.18} parent=0 // pred_region
    _
  $region5: #{densenet_forward.18} parent=0 // pred_fallthru
    _
  // Predicated region
  $region6: #{densenet_forward.18} parent=0 // pred_check
    _
  $region7: #{densenet_forward.18} parent=0 // pred_check_branch
    %14 = sbr.rel (0) target = $region9
  $region8: #{densenet_forward.18} parent=0 // pred_region
    _
  $region9: #{densenet_forward.18} parent=0 // pred_fallthru
    _
  // Predicated region
  $region10: #{densenet_forward.18} parent=0 // pred_check
    _
  $region11: #{densenet_forward.18} parent=0 // pred_check_branch
    %16 = sbr.rel (0) target = $region13
  $region12: #{densenet_forward.18} parent=0 // pred_region
    _
  $region13: #{densenet_forward.18} parent=0 // pred_fallthru
    _
  // Predicated region
  $region14: #{densenet_forward.18} parent=0 // pred_check
    _
  $region15: #{densenet_forward.18} parent=0 // pred_check_branch
    %18 = sbr.rel (0) target = $region17
  $region16: #{densenet_forward.18} parent=0 // pred_region
    _
  $region17: #{densenet_forward.18} parent=0 // pred_fallthru
    _
  // Predicated region
  $region18: #{densenet_forward.18} parent=0 // pred_check
    _
  $region19: #{densenet_forward.18} parent=0 // pred_check_branch
    %20 = sbr.rel (0) target = $region21
  $region20: #{densenet_forward.18} parent=0 // pred_region
    _
  $region21: #{densenet_forward.18} parent=0 // pred_fallthru
    _
  // Predicated region
  $region22: #{densenet_forward.18} parent=0 // pred_check
    _
  $region23: #{densenet_forward.18} parent=0 // pred_check_branch
    %22 = sbr.rel (0) target = $region25
  $region24: #{densenet_forward.18} parent=0 // pred_region
    _
  $region25: #{densenet_forward.18} parent=0 // pred_fallthru
    _
  %v23 = vld [vmem:[%s0] sm:$0xff]
  %v24 = vld [vmem:[%s0 + $0x8] sm:$0xff]
  %v25 = vld [vmem:[%s0 + $0x10] sm:$0xff]
  %v26 = vld [vmem:[%s0 + $0x18] sm:$0xff]
  %v27 = vld [vmem:[%s0 + $0x20] sm:$0xff]
  %v28 = vld [vmem:[%s0 + $0x28] sm:$0xff]
  %v29 = vld [vmem:[%s0 + $0x30] sm:$0xff]
  %v30 = vld [vmem:[%s0 + $0x38] sm:$0xff]
  %v31 = vld [vmem:[%s0 + $0x40] sm:$0xff]
  %v32 = vld [vmem:[%s0 + $0x48] sm:$0xff]
  %v33 = vld [vmem:[%s0 + $0x50] sm:$0xff]
  %v34 = vld [vmem:[%s0 + $0x58] sm:$0xff]
  %v35 = vld [vmem:[%s0 + $0x60] sm:$0xff]
  %v36 = vld [vmem:[%s0 + $0x68] sm:$0xff]
  %v37 = vld [vmem:[%s0 + $0x70] sm:$0xff]
  %v38 = vld [vmem:[%s0 + $0x78] sm:$0xff]
  %v39 = vld [vmem:[%s2] sm:$0x1]
  %v41 = vperm.slane %v39, 0
  %v43 = vmul.f32 %v23, %v41
  %v44 = vmul.f32 %v24, %v41
  %v45 = vmul.f32 %v25, %v41
  %v46 = vmul.f32 %v26, %v41
  %v47 = vmul.f32 %v27, %v41
  %v48 = vmul.f32 %v28, %v41
  %v49 = vmul.f32 %v29, %v41
  %v50 = vmul.f32 %v30, %v41
  %v51 = vmul.f32 %v31, %v41
  %v52 = vmul.f32 %v32, %v41
  %v53 = vmul.f32 %v33, %v41
  %v54 = vmul.f32 %v34, %v41
  %v55 = vmul.f32 %v35, %v41
  %v56 = vmul.f32 %v36, %v41
  %v57 = vmul.f32 %v37, %v41
  %v58 = vmul.f32 %v38, %v41
  %v59 = vld [vmem:[%s3] sm:$0x1]
  %v61 = vperm.slane %v59, 0
  %v63 = vadd.f32 %v43, %v61
  %v64 = vadd.f32 %v44, %v61
  %v65 = vadd.f32 %v45, %v61
  %v66 = vadd.f32 %v46, %v61
  %v67 = vadd.f32 %v47, %v61
  %v68 = vadd.f32 %v48, %v61
  %v69 = vadd.f32 %v49, %v61
  %v70 = vadd.f32 %v50, %v61
  %v71 = vadd.f32 %v51, %v61
  %v72 = vadd.f32 %v52, %v61
  %v73 = vadd.f32 %v53, %v61
  %v74 = vadd.f32 %v54, %v61
  %v75 = vadd.f32 %v55, %v61
  %v76 = vadd.f32 %v56, %v61
  %v77 = vadd.f32 %v57, %v61
  %v78 = vadd.f32 %v58, %v61
  %v79 = vmax.f32 %v63, 0.0
  %v80 = vmax.f32 %v64, 0.0
  %v81 = vmax.f32 %v65, 0.0
  %v82 = vmax.f32 %v66, 0.0
  %v83 = vmax.f32 %v67, 0.0
  %v84 = vmax.f32 %v68, 0.0
  %v85 = vmax.f32 %v69, 0.0
  %v86 = vmax.f32 %v70, 0.0
  %v87 = vmax.f32 %v71, 0.0
  %v88 = vmax.f32 %v72, 0.0
  %v89 = vmax.f32 %v73, 0.0
  %v90 = vmax.f32 %v74, 0.0
  %v91 = vmax.f32 %v75, 0.0
  %v92 = vmax.f32 %v76, 0.0
  %v93 = vmax.f32 %v77, 0.0
  %v94 = vmax.f32 %v78, 0.0
  %v95 = vpack.c.bf16 %v80, %v79
  %v96 = vpack.c.bf16 %v82, %v81
  %v97 = vpack.c.bf16 %v84, %v83
  %v98 = vpack.c.bf16 %v86, %v85
  %v99 = vpack.c.bf16 %v88, %v87
  %v100 = vpack.c.bf16 %v90, %v89
  %v101 = vpack.c.bf16 %v92, %v91
  %v102 = vpack.c.bf16 %v94, %v93
  %v103 = vld [vmem:[%s1] sm:$0xf]
  %v104 = vld [vmem:[%s1 + $0x4] sm:$0xf]
  %v105 = vld [vmem:[%s1 + $0x8] sm:$0xf]
  %v106 = vld [vmem:[%s1 + $0xc] sm:$0xf]
  %v107 = vld [vmem:[%s1 + $0x10] sm:$0xf]
  %v108 = vld [vmem:[%s1 + $0x14] sm:$0xf]
  %v109 = vld [vmem:[%s1 + $0x18] sm:$0xf]
  %v110 = vld [vmem:[%s1 + $0x1c] sm:$0xf]
  %v111 = vld [vmem:[%s1 + $0x20] sm:$0xf]
  %v112 = vld [vmem:[%s1 + $0x24] sm:$0xf]
  %v113 = vld [vmem:[%s1 + $0x28] sm:$0xf]
  %v114 = vld [vmem:[%s1 + $0x2c] sm:$0xf]
  %v115 = vld [vmem:[%s1 + $0x30] sm:$0xf]
  %v116 = vld [vmem:[%s1 + $0x34] sm:$0xf]
  %v117 = vld [vmem:[%s1 + $0x38] sm:$0xf]
  %v118 = vld [vmem:[%s1 + $0x3c] sm:$0xf]
  %v135 = vunpack.c.l.b16 %v103
  %v136 = vunpack.c.l.b16 %v104
  %v137 = vunpack.c.l.b16 %v105
  %v138 = vunpack.c.l.b16 %v106
  %v139 = vunpack.c.l.b16 %v107
  %v140 = vunpack.c.l.b16 %v108
  %v141 = vunpack.c.l.b16 %v109
  %v142 = vunpack.c.l.b16 %v110
  %v143 = vunpack.c.l.b16 %v111
  %v144 = vunpack.c.l.b16 %v112
  %v145 = vunpack.c.l.b16 %v113
  %v146 = vunpack.c.l.b16 %v114
  %v147 = vunpack.c.l.b16 %v115
  %v148 = vunpack.c.l.b16 %v116
  %v149 = vunpack.c.l.b16 %v117
  %v150 = vunpack.c.l.b16 %v118
  %v151 = vpack.c.b16 %v136, %v135
  %v152 = vpack.c.b16 %v138, %v137
  %v153 = vpack.c.b16 %v140, %v139
  %v154 = vpack.c.b16 %v142, %v141
  %v155 = vpack.c.b16 %v144, %v143
  %v156 = vpack.c.b16 %v146, %v145
  %v157 = vpack.c.b16 %v148, %v147
  %v158 = vpack.c.b16 %v150, %v149
  %167 = vmatpush.bf16.msra.mxu0 %v158
  %168 = vmatpush.bf16.msra.mxu0 %v157
  %169 = vmatpush.bf16.msra.mxu0 %v156
  %170 = vmatpush.bf16.msra.mxu0 %v155
  %171 = vmatpush.bf16.msra.mxu0 %v154
  %172 = vmatpush.bf16.msra.mxu0 %v153
  %173 = vmatpush.bf16.msra.mxu0 %v152
  %174 = vmatpush.bf16.msra.mxu0 %v151
  %175 = vmatmul.bf16.gmra.mxu0 %v95
  %v176 = vpop.f32.mrf.mxu0
  %v177 = vadd.f32 0.0, %v176
  %v178 = vpop.f32.mrf.mxu0
  %v179 = vadd.f32 0.0, %v178
  %180 = vmatmul.bf16.gmra.mxu0 %v96
  %v181 = vpop.f32.mrf.mxu0
  %v182 = vadd.f32 0.0, %v181
  %v183 = vpop.f32.mrf.mxu0
  %v184 = vadd.f32 0.0, %v183
  %185 = vmatmul.bf16.gmra.mxu0 %v97
  %v186 = vpop.f32.mrf.mxu0
  %v187 = vadd.f32 0.0, %v186
  %v188 = vpop.f32.mrf.mxu0
  %v189 = vadd.f32 0.0, %v188
  %190 = vmatmul.bf16.gmra.mxu0 %v98
  %v191 = vpop.f32.mrf.mxu0
  %v192 = vadd.f32 0.0, %v191
  %v193 = vpop.f32.mrf.mxu0
  %v194 = vadd.f32 0.0, %v193
  %195 = vmatmul.bf16.gmra.mxu0 %v99
  %v196 = vpop.f32.mrf.mxu0
  %v197 = vadd.f32 0.0, %v196
  %v198 = vpop.f32.mrf.mxu0
  %v199 = vadd.f32 0.0, %v198
  %200 = vmatmul.bf16.gmra.mxu0 %v100
  %v201 = vpop.f32.mrf.mxu0
  %v202 = vadd.f32 0.0, %v201
  %v203 = vpop.f32.mrf.mxu0
  %v204 = vadd.f32 0.0, %v203
  %205 = vmatmul.bf16.gmra.mxu0 %v101
  %v206 = vpop.f32.mrf.mxu0
  %v207 = vadd.f32 0.0, %v206
  %v208 = vpop.f32.mrf.mxu0
  %v209 = vadd.f32 0.0, %v208
  %210 = vmatmul.bf16.gmra.mxu0 %v102
  %v211 = vpop.f32.mrf.mxu0
  %v212 = vadd.f32 0.0, %v211
  %v213 = vpop.f32.mrf.mxu0
  %v214 = vadd.f32 0.0, %v213
  %215 = vdwg.mxu0
  %v216 = vld [vmem:[%s4] sm:$0x1]
  %v218 = vperm.slane %v216, 0
  %v220 = vmul.f32 %v177, %v218
  %v221 = vmul.f32 %v179, %v218
  %v222 = vmul.f32 %v182, %v218
  %v223 = vmul.f32 %v184, %v218
  %v224 = vmul.f32 %v187, %v218
  %v225 = vmul.f32 %v189, %v218
  %v226 = vmul.f32 %v192, %v218
  %v227 = vmul.f32 %v194, %v218
  %v228 = vmul.f32 %v197, %v218
  %v229 = vmul.f32 %v199, %v218
  %v230 = vmul.f32 %v202, %v218
  %v231 = vmul.f32 %v204, %v218
  %v232 = vmul.f32 %v207, %v218
  %v233 = vmul.f32 %v209, %v218
  %v234 = vmul.f32 %v212, %v218
  %v235 = vmul.f32 %v214, %v218
  %v236 = vld [vmem:[%s5] sm:$0x1]
  %v238 = vperm.slane %v236, 0
  %v240 = vadd.f32 %v220, %v238
  %v241 = vadd.f32 %v221, %v238
  %v242 = vadd.f32 %v222, %v238
  %v243 = vadd.f32 %v223, %v238
  %v244 = vadd.f32 %v224, %v238
  %v245 = vadd.f32 %v225, %v238
  %v246 = vadd.f32 %v226, %v238
  %v247 = vadd.f32 %v227, %v238
  %v248 = vadd.f32 %v228, %v238
  %v249 = vadd.f32 %v229, %v238
  %v250 = vadd.f32 %v230, %v238
  %v251 = vadd.f32 %v231, %v238
  %v252 = vadd.f32 %v232, %v238
  %v253 = vadd.f32 %v233, %v238
  %v254 = vadd.f32 %v234, %v238
  %v255 = vadd.f32 %v235, %v238
  %256 = vst [vmem:[%s6] sm:$0xff] %v240
  %257 = vst [vmem:[%s6 + $0x8] sm:$0xff] %v241
  %258 = vst [vmem:[%s6 + $0x10] sm:$0xff] %v242
  %259 = vst [vmem:[%s6 + $0x18] sm:$0xff] %v243
  %260 = vst [vmem:[%s6 + $0x20] sm:$0xff] %v244
  %261 = vst [vmem:[%s6 + $0x28] sm:$0xff] %v245
  %262 = vst [vmem:[%s6 + $0x30] sm:$0xff] %v246
  %263 = vst [vmem:[%s6 + $0x38] sm:$0xff] %v247
  %264 = vst [vmem:[%s6 + $0x40] sm:$0xff] %v248
  %265 = vst [vmem:[%s6 + $0x48] sm:$0xff] %v249
  %266 = vst [vmem:[%s6 + $0x50] sm:$0xff] %v250
  %267 = vst [vmem:[%s6 + $0x58] sm:$0xff] %v251
  %268 = vst [vmem:[%s6 + $0x60] sm:$0xff] %v252
  %269 = vst [vmem:[%s6 + $0x68] sm:$0xff] %v253
  %270 = vst [vmem:[%s6 + $0x70] sm:$0xff] %v254
  %271 = vst [vmem:[%s6 + $0x78] sm:$0xff] %v255
  // Predicated region
  $region26: #{densenet_forward.18} parent=0 // pred_check
    _
  $region27: #{densenet_forward.18} parent=0 // pred_check_branch
    %273 = sbr.rel (0) target = $region29
  $region28: #{densenet_forward.18} parent=0 // pred_region
    _
  $region29: #{densenet_forward.18} parent=0 // pred_fallthru
    _
  // Predicated region
  $region30: #{densenet_forward.18} parent=0 // pred_check
    _
  $region31: #{densenet_forward.18} parent=0 // pred_check_branch
    %275 = sbr.rel (0) target = $region33
  $region32: #{densenet_forward.18} parent=0 // pred_region
    _
  $region33: #{densenet_forward.18} parent=0 // pred_fallthru
    _

// kernel: densenet_forward.15
$region0: #{densenet_forward.15}
  #allocation0 [shape = 'u32[]', space=smem, size = 0x4, offset = 0x4, fixed_abs, tag = 'smem constant byte address 0x4 - core index']
  #allocation1 [shape = 'u32[72,128]{1,0:T(1,128)}', space=vmem, size = 0x9000, scoped, tag = 'internal scratch']
  %s0 = inlined_call_operand.vmem [shape: bf16[128,256], index: 0, kind: input, shape index: {}]
  %s1 = inlined_call_operand.vmem [shape: bf16[256,128], index: 1, kind: input, shape index: {}]
  %s2 = inlined_call_operand.vmem [shape: f32[1,128], index: 2, kind: input, shape index: {}]
  %s3 = inlined_call_operand.vmem [shape: f32[1,128], index: 3, kind: input, shape index: {}]
  %s4 = inlined_call_operand.vmem [shape: f32[128,128], index: 4, kind: input, shape index: {}, may-alias: {4,5}]
  %s5 = inlined_call_operand.vmem [shape: f32[128,128], index: 5, kind: output, shape index: {}, may-alias: {4,5}]
  %s6 = sld [smem:[#allocation0]]
  $region30: #{densenet_forward.15} parent=0
    _
  %s8 = ssub.s32 1, %s6
  %s9 = scalar_select 0, %s8, %s6
  // Predicated region
  $region2: #{densenet_forward.15} parent=0 // pred_check
    _
  $region3: #{densenet_forward.15} parent=0 // pred_check_branch
    %11 = sbr.rel (0) target = $region5
  $region4: #{densenet_forward.15} parent=0 // pred_region
    _
  $region5: #{densenet_forward.15} parent=0 // pred_fallthru
    _
  // Predicated region
  $region6: #{densenet_forward.15} parent=0 // pred_check
    _
  $region7: #{densenet_forward.15} parent=0 // pred_check_branch
    %13 = sbr.rel (0) target = $region9
  $region8: #{densenet_forward.15} parent=0 // pred_region
    _
  $region9: #{densenet_forward.15} parent=0 // pred_fallthru
    _
  // Predicated region
  $region10: #{densenet_forward.15} parent=0 // pred_check
    _
  $region11: #{densenet_forward.15} parent=0 // pred_check_branch
    %15 = sbr.rel (0) target = $region13
  $region12: #{densenet_forward.15} parent=0 // pred_region
    _
  $region13: #{densenet_forward.15} parent=0 // pred_fallthru
    _
  // Predicated region
  $region14: #{densenet_forward.15} parent=0 // pred_check
    _
  $region15: #{densenet_forward.15} parent=0 // pred_check_branch
    %17 = sbr.rel (0) target = $region17
  $region16: #{densenet_forward.15} parent=0 // pred_region
    _
  $region17: #{densenet_forward.15} parent=0 // pred_fallthru
    _
  // Predicated region
  $region18: #{densenet_forward.15} parent=0 // pred_check
    _
  $region19: #{densenet_forward.15} parent=0 // pred_check_branch
    %19 = sbr.rel (0) target = $region21
  $region20: #{densenet_forward.15} parent=0 // pred_region
    _
  $region21: #{densenet_forward.15} parent=0 // pred_fallthru
    _
  %v20 = vld [vmem:[%s0] sm:$0xff]
  %v21 = vld [vmem:[%s0 + $0x8] sm:$0xff]
  %v22 = vld [vmem:[%s0 + $0x10] sm:$0xff]
  %v23 = vld [vmem:[%s0 + $0x18] sm:$0xff]
  %v24 = vld [vmem:[%s0 + $0x20] sm:$0xff]
  %v25 = vld [vmem:[%s0 + $0x28] sm:$0xff]
  %v26 = vld [vmem:[%s0 + $0x30] sm:$0xff]
  %v27 = vld [vmem:[%s0 + $0x38] sm:$0xff]
  %v28 = vld [vmem:[%s0 + $0x40] sm:$0xff]
  %v29 = vld [vmem:[%s0 + $0x48] sm:$0xff]
  %v30 = vld [vmem:[%s0 + $0x50] sm:$0xff]
  %v31 = vld [vmem:[%s0 + $0x58] sm:$0xff]
  %v32 = vld [vmem:[%s0 + $0x60] sm:$0xff]
  %v33 = vld [vmem:[%s0 + $0x68] sm:$0xff]
  %v34 = vld [vmem:[%s0 + $0x70] sm:$0xff]
  %v35 = vld [vmem:[%s0 + $0x78] sm:$0xff]
  %v36 = vld [vmem:[%s1] sm:$0xf]
  %v37 = vld [vmem:[%s1 + $0x4] sm:$0xf]
  %v38 = vld [vmem:[%s1 + $0x8] sm:$0xf]
  %v39 = vld [vmem:[%s1 + $0xc] sm:$0xf]
  %v40 = vld [vmem:[%s1 + $0x10] sm:$0xf]
  %v41 = vld [vmem:[%s1 + $0x14] sm:$0xf]
  %v42 = vld [vmem:[%s1 + $0x18] sm:$0xf]
  %v43 = vld [vmem:[%s1 + $0x1c] sm:$0xf]
  %v44 = vld [vmem:[%s1 + $0x20] sm:$0xf]
  %v45 = vld [vmem:[%s1 + $0x24] sm:$0xf]
  %v46 = vld [vmem:[%s1 + $0x28] sm:$0xf]
  %v47 = vld [vmem:[%s1 + $0x2c] sm:$0xf]
  %v48 = vld [vmem:[%s1 + $0x30] sm:$0xf]
  %v49 = vld [vmem:[%s1 + $0x34] sm:$0xf]
  %v50 = vld [vmem:[%s1 + $0x38] sm:$0xf]
  %v51 = vld [vmem:[%s1 + $0x3c] sm:$0xf]
  %v52 = vld [vmem:[%s1 + $0x40] sm:$0xf]
  %v53 = vld [vmem:[%s1 + $0x44] sm:$0xf]
  %v54 = vld [vmem:[%s1 + $0x48] sm:$0xf]
  %v55 = vld [vmem:[%s1 + $0x4c] sm:$0xf]
  %v56 = vld [vmem:[%s1 + $0x50] sm:$0xf]
  %v57 = vld [vmem:[%s1 + $0x54] sm:$0xf]
  %v58 = vld [vmem:[%s1 + $0x58] sm:$0xf]
  %v59 = vld [vmem:[%s1 + $0x5c] sm:$0xf]
  %v60 = vld [vmem:[%s1 + $0x60] sm:$0xf]
  %v61 = vld [vmem:[%s1 + $0x64] sm:$0xf]
  %v62 = vld [vmem:[%s1 + $0x68] sm:$0xf]
  %v63 = vld [vmem:[%s1 + $0x6c] sm:$0xf]
  %v64 = vld [vmem:[%s1 + $0x70] sm:$0xf]
  %v65 = vld [vmem:[%s1 + $0x74] sm:$0xf]
  %v66 = vld [vmem:[%s1 + $0x78] sm:$0xf]
  %v67 = vld [vmem:[%s1 + $0x7c] sm:$0xf]
  %v68 = vld [vmem:[%s4] sm:$0xff]
  %v69 = vld [vmem:[%s4 + $0x8] sm:$0xff]
  %v70 = vld [vmem:[%s4 + $0x10] sm:$0xff]
  %v71 = vld [vmem:[%s4 + $0x18] sm:$0xff]
  %v72 = vld [vmem:[%s4 + $0x20] sm:$0xff]
  %v73 = vld [vmem:[%s4 + $0x28] sm:$0xff]
  %v74 = vld [vmem:[%s4 + $0x30] sm:$0xff]
  %v75 = vld [vmem:[%s4 + $0x38] sm:$0xff]
  %v76 = vld [vmem:[%s4 + $0x40] sm:$0xff]
  %v77 = vld [vmem:[%s4 + $0x48] sm:$0xff]
  %v78 = vld [vmem:[%s4 + $0x50] sm:$0xff]
  %v79 = vld [vmem:[%s4 + $0x58] sm:$0xff]
  %v80 = vld [vmem:[%s4 + $0x60] sm:$0xff]
  %v81 = vld [vmem:[%s4 + $0x68] sm:$0xff]
  %v82 = vld [vmem:[%s4 + $0x70] sm:$0xff]
  %v83 = vld [vmem:[%s4 + $0x78] sm:$0xff]
  %v100 = vunpack.c.l.b16 %v20
  %v101 = vunpack.c.h.b16 %v20
  %v102 = vunpack.c.l.b16 %v21
  %v103 = vunpack.c.h.b16 %v21
  %v104 = vunpack.c.l.b16 %v22
  %v105 = vunpack.c.h.b16 %v22
  %v106 = vunpack.c.l.b16 %v23
  %v107 = vunpack.c.h.b16 %v23
  %v108 = vunpack.c.l.b16 %v24
  %v109 = vunpack.c.h.b16 %v24
  %v110 = vunpack.c.l.b16 %v25
  %v111 = vunpack.c.h.b16 %v25
  %v112 = vunpack.c.l.b16 %v26
  %v113 = vunpack.c.h.b16 %v26
  %v114 = vunpack.c.l.b16 %v27
  %v115 = vunpack.c.h.b16 %v27
  %v116 = vunpack.c.l.b16 %v28
  %v117 = vunpack.c.h.b16 %v28
  %v118 = vunpack.c.l.b16 %v29
  %v119 = vunpack.c.h.b16 %v29
  %v120 = vunpack.c.l.b16 %v30
  %v121 = vunpack.c.h.b16 %v30
  %v122 = vunpack.c.l.b16 %v31
  %v123 = vunpack.c.h.b16 %v31
  %v124 = vunpack.c.l.b16 %v32
  %v125 = vunpack.c.h.b16 %v32
  %v126 = vunpack.c.l.b16 %v33
  %v127 = vunpack.c.h.b16 %v33
  %v128 = vunpack.c.l.b16 %v34
  %v129 = vunpack.c.h.b16 %v34
  %v130 = vunpack.c.l.b16 %v35
  %v131 = vunpack.c.h.b16 %v35
  %v132 = vpack.c.b16 %v102, %v100
  %v133 = vpack.c.b16 %v103, %v101
  %v134 = vpack.c.b16 %v106, %v104
  %v135 = vpack.c.b16 %v107, %v105
  %v136 = vpack.c.b16 %v110, %v108
  %v137 = vpack.c.b16 %v111, %v109
  %v138 = vpack.c.b16 %v114, %v112
  %v139 = vpack.c.b16 %v115, %v113
  %v140 = vpack.c.b16 %v118, %v116
  %v141 = vpack.c.b16 %v119, %v117
  %v142 = vpack.c.b16 %v122, %v120
  %v143 = vpack.c.b16 %v123, %v121
  %v144 = vpack.c.b16 %v126, %v124
  %v145 = vpack.c.b16 %v127, %v125
  %v146 = vpack.c.b16 %v130, %v128
  %v147 = vpack.c.b16 %v131, %v129
  %v196 = vunpack.c.l.b16 %v36
  %v197 = vunpack.c.l.b16 %v37
  %v198 = vunpack.c.l.b16 %v38
  %v199 = vunpack.c.l.b16 %v39
  %v200 = vunpack.c.l.b16 %v40
  %v201 = vunpack.c.l.b16 %v41
  %v202 = vunpack.c.l.b16 %v42
  %v203 = vunpack.c.l.b16 %v43
  %v204 = vunpack.c.l.b16 %v44
  %v205 = vunpack.c.l.b16 %v45
  %v206 = vunpack.c.l.b16 %v46
  %v207 = vunpack.c.l.b16 %v47
  %v208 = vunpack.c.l.b16 %v48
  %v209 = vunpack.c.l.b16 %v49
  %v210 = vunpack.c.l.b16 %v50
  %v211 = vunpack.c.l.b16 %v51
  %v212 = vunpack.c.l.b16 %v52
  %v213 = vunpack.c.l.b16 %v53
  %v214 = vunpack.c.l.b16 %v54
  %v215 = vunpack.c.l.b16 %v55
  %v216 = vunpack.c.l.b16 %v56
  %v217 = vunpack.c.l.b16 %v57
  %v218 = vunpack.c.l.b16 %v58
  %v219 = vunpack.c.l.b16 %v59
  %v220 = vunpack.c.l.b16 %v60
  %v221 = vunpack.c.l.b16 %v61
  %v222 = vunpack.c.l.b16 %v62
  %v223 = vunpack.c.l.b16 %v63
  %v224 = vunpack.c.l.b16 %v64
  %v225 = vunpack.c.l.b16 %v65
  %v226 = vunpack.c.l.b16 %v66
  %v227 = vunpack.c.l.b16 %v67
  %v228 = vpack.c.b16 %v197, %v196
  %v229 = vpack.c.b16 %v199, %v198
  %v230 = vpack.c.b16 %v201, %v200
  %v231 = vpack.c.b16 %v203, %v202
  %v232 = vpack.c.b16 %v205, %v204
  %v233 = vpack.c.b16 %v207, %v206
  %v234 = vpack.c.b16 %v209, %v208
  %v235 = vpack.c.b16 %v211, %v210
  %v236 = vpack.c.b16 %v213, %v212
  %v237 = vpack.c.b16 %v215, %v214
  %v238 = vpack.c.b16 %v217, %v216
  %v239 = vpack.c.b16 %v219, %v218
  %v240 = vpack.c.b16 %v221, %v220
  %v241 = vpack.c.b16 %v223, %v222
  %v242 = vpack.c.b16 %v225, %v224
  %v243 = vpack.c.b16 %v227, %v226
  %260 = vmatpush.bf16.msra.mxu0 %v235
  %261 = vmatpush.bf16.msra.mxu0 %v234
  %262 = vmatpush.bf16.msra.mxu0 %v233
  %263 = vmatpush.bf16.msra.mxu0 %v232
  %264 = vmatpush.bf16.msra.mxu0 %v231
  %265 = vmatpush.bf16.msra.mxu0 %v230
  %266 = vmatpush.bf16.msra.mxu0 %v229
  %267 = vmatpush.bf16.msra.mxu0 %v228
  %268 = vmatmul.bf16.gmra.mxu0 %v132
  %v269 = vpop.f32.mrf.mxu0
  %v270 = vadd.f32 %v68, %v269
  %v271 = vpop.f32.mrf.mxu0
  %v272 = vadd.f32 %v69, %v271
  %273 = vmatmul.bf16.gmra.mxu0 %v134
  %v274 = vpop.f32.mrf.mxu0
  %v275 = vadd.f32 %v70, %v274
  %v276 = vpop.f32.mrf.mxu0
  %v277 = vadd.f32 %v71, %v276
  %278 = vmatmul.bf16.gmra.mxu0 %v136
  %v279 = vpop.f32.mrf.mxu0
  %v280 = vadd.f32 %v72, %v279
  %v281 = vpop.f32.mrf.mxu0
  %v282 = vadd.f32 %v73, %v281
  %283 = vmatmul.bf16.gmra.mxu0 %v138
  %v284 = vpop.f32.mrf.mxu0
  %v285 = vadd.f32 %v74, %v284
  %v286 = vpop.f32.mrf.mxu0
  %v287 = vadd.f32 %v75, %v286
  %288 = vmatmul.bf16.gmra.mxu0 %v140
  %v289 = vpop.f32.mrf.mxu0
  %v290 = vadd.f32 %v76, %v289
  %v291 = vpop.f32.mrf.mxu0
  %v292 = vadd.f32 %v77, %v291
  %293 = vmatmul.bf16.gmra.mxu0 %v142
  %v294 = vpop.f32.mrf.mxu0
  %v295 = vadd.f32 %v78, %v294
  %v296 = vpop.f32.mrf.mxu0
  %v297 = vadd.f32 %v79, %v296
  %298 = vmatmul.bf16.gmra.mxu0 %v144
  %v299 = vpop.f32.mrf.mxu0
  %v300 = vadd.f32 %v80, %v299
  %v301 = vpop.f32.mrf.mxu0
  %v302 = vadd.f32 %v81, %v301
  %303 = vmatmul.bf16.gmra.mxu0 %v146
  %v304 = vpop.f32.mrf.mxu0
  %v305 = vadd.f32 %v82, %v304
  %v306 = vpop.f32.mrf.mxu0
  %v307 = vadd.f32 %v83, %v306
  %308 = vdwg.mxu0
  %309 = vmatpush.bf16.msra.mxu0 %v243
  %310 = vmatpush.bf16.msra.mxu0 %v242
  %311 = vmatpush.bf16.msra.mxu0 %v241
  %312 = vmatpush.bf16.msra.mxu0 %v240
  %313 = vmatpush.bf16.msra.mxu0 %v239
  %314 = vmatpush.bf16.msra.mxu0 %v238
  %315 = vmatpush.bf16.msra.mxu0 %v237
  %316 = vmatpush.bf16.msra.mxu0 %v236
  %317 = vmatmul.bf16.gmra.mxu0 %v133
  %v318 = vpop.f32.mrf.mxu0
  %v319 = vadd.f32 %v270, %v318
  %v320 = vpop.f32.mrf.mxu0
  %v321 = vadd.f32 %v272, %v320
  %322 = vmatmul.bf16.gmra.mxu0 %v135
  %v323 = vpop.f32.mrf.mxu0
  %v324 = vadd.f32 %v275, %v323
  %v325 = vpop.f32.mrf.mxu0
  %v326 = vadd.f32 %v277, %v325
  %327 = vmatmul.bf16.gmra.mxu0 %v137
  %v328 = vpop.f32.mrf.mxu0
  %v329 = vadd.f32 %v280, %v328
  %v330 = vpop.f32.mrf.mxu0
  %v331 = vadd.f32 %v282, %v330
  %332 = vmatmul.bf16.gmra.mxu0 %v139
  %v333 = vpop.f32.mrf.mxu0
  %v334 = vadd.f32 %v285, %v333
  %v335 = vpop.f32.mrf.mxu0
  %v336 = vadd.f32 %v287, %v335
  %337 = vmatmul.bf16.gmra.mxu0 %v141
  %v338 = vpop.f32.mrf.mxu0
  %v339 = vadd.f32 %v290, %v338
  %v340 = vpop.f32.mrf.mxu0
  %v341 = vadd.f32 %v292, %v340
  %342 = vmatmul.bf16.gmra.mxu0 %v143
  %v343 = vpop.f32.mrf.mxu0
  %v344 = vadd.f32 %v295, %v343
  %v345 = vpop.f32.mrf.mxu0
  %v346 = vadd.f32 %v297, %v345
  %347 = vmatmul.bf16.gmra.mxu0 %v145
  %v348 = vpop.f32.mrf.mxu0
  %v349 = vadd.f32 %v300, %v348
  %v350 = vpop.f32.mrf.mxu0
  %v351 = vadd.f32 %v302, %v350
  %352 = vmatmul.bf16.gmra.mxu0 %v147
  %v353 = vpop.f32.mrf.mxu0
  %v354 = vadd.f32 %v305, %v353
  %v355 = vpop.f32.mrf.mxu0
  %v356 = vadd.f32 %v307, %v355
  %357 = vdwg.mxu0
  %v358 = vld [vmem:[%s2] sm:$0x1]
  %v360 = vperm.slane %v358, 0
  %v362 = vmul.f32 %v319, %v360
  %v363 = vmul.f32 %v321, %v360
  %v364 = vmul.f32 %v324, %v360
  %v365 = vmul.f32 %v326, %v360
  %v366 = vmul.f32 %v329, %v360
  %v367 = vmul.f32 %v331, %v360
  %v368 = vmul.f32 %v334, %v360
  %v369 = vmul.f32 %v336, %v360
  %v370 = vmul.f32 %v339, %v360
  %v371 = vmul.f32 %v341, %v360
  %v372 = vmul.f32 %v344, %v360
  %v373 = vmul.f32 %v346, %v360
  %v374 = vmul.f32 %v349, %v360
  %v375 = vmul.f32 %v351, %v360
  %v376 = vmul.f32 %v354, %v360
  %v377 = vmul.f32 %v356, %v360
  %v378 = vld [vmem:[%s3] sm:$0x1]
  %v380 = vperm.slane %v378, 0
  %v382 = vadd.f32 %v362, %v380
  %v383 = vadd.f32 %v363, %v380
  %v384 = vadd.f32 %v364, %v380
  %v385 = vadd.f32 %v365, %v380
  %v386 = vadd.f32 %v366, %v380
  %v387 = vadd.f32 %v367, %v380
  %v388 = vadd.f32 %v368, %v380
  %v389 = vadd.f32 %v369, %v380
  %v390 = vadd.f32 %v370, %v380
  %v391 = vadd.f32 %v371, %v380
  %v392 = vadd.f32 %v372, %v380
  %v393 = vadd.f32 %v373, %v380
  %v394 = vadd.f32 %v374, %v380
  %v395 = vadd.f32 %v375, %v380
  %v396 = vadd.f32 %v376, %v380
  %v397 = vadd.f32 %v377, %v380
  %398 = vst [vmem:[%s5] sm:$0xff] %v382
  %399 = vst [vmem:[%s5 + $0x8] sm:$0xff] %v383
  %400 = vst [vmem:[%s5 + $0x10] sm:$0xff] %v384
  %401 = vst [vmem:[%s5 + $0x18] sm:$0xff] %v385
  %402 = vst [vmem:[%s5 + $0x20] sm:$0xff] %v386
  %403 = vst [vmem:[%s5 + $0x28] sm:$0xff] %v387
  %404 = vst [vmem:[%s5 + $0x30] sm:$0xff] %v388
  %405 = vst [vmem:[%s5 + $0x38] sm:$0xff] %v389
  %406 = vst [vmem:[%s5 + $0x40] sm:$0xff] %v390
  %407 = vst [vmem:[%s5 + $0x48] sm:$0xff] %v391
  %408 = vst [vmem:[%s5 + $0x50] sm:$0xff] %v392
  %409 = vst [vmem:[%s5 + $0x58] sm:$0xff] %v393
  %410 = vst [vmem:[%s5 + $0x60] sm:$0xff] %v394
  %411 = vst [vmem:[%s5 + $0x68] sm:$0xff] %v395
  %412 = vst [vmem:[%s5 + $0x70] sm:$0xff] %v396
  %413 = vst [vmem:[%s5 + $0x78] sm:$0xff] %v397
  // Predicated region
  $region22: #{densenet_forward.15} parent=0 // pred_check
    _
  $region23: #{densenet_forward.15} parent=0 // pred_check_branch
    %415 = sbr.rel (0) target = $region25
  $region24: #{densenet_forward.15} parent=0 // pred_region
    _
  $region25: #{densenet_forward.15} parent=0 // pred_fallthru
    _
  // Predicated region
  $region26: #{densenet_forward.15} parent=0 // pred_check
    _
  $region27: #{densenet_forward.15} parent=0 // pred_check_branch
    %417 = sbr.rel (0) target = $region29
  $region28: #{densenet_forward.15} parent=0 // pred_region
    _
  $region29: #{densenet_forward.15} parent=0 // pred_fallthru
    _

// kernel: densenet_forward.19
$region0: #{densenet_forward.19}
  #allocation0 [shape = 'u32[]', space=smem, size = 0x4, offset = 0x4, fixed_abs, tag = 'smem constant byte address 0x4 - core index']
  #allocation1 [shape = 'u32[72,128]{1,0:T(1,128)}', space=vmem, size = 0x9000, scoped, tag = 'internal scratch']
  %s0 = inlined_call_operand.vmem [shape: f32[4,32,128], index: 0, kind: input, shape index: {}]
  %s1 = inlined_call_operand.vmem [shape: f32[32,128], index: 1, kind: output, shape index: {}]
  %s2 = sld [smem:[#allocation0]]
  $region14: #{densenet_forward.19} parent=0
    _
  %s4 = ssub.s32 1, %s2
  %s5 = scalar_select 0, %s4, %s2
  // Predicated region
  $region2: #{densenet_forward.19} parent=0 // pred_check
    _
  $region3: #{densenet_forward.19} parent=0 // pred_check_branch
    %7 = sbr.rel (0) target = $region5
  $region4: #{densenet_forward.19} parent=0 // pred_region
    _
  $region5: #{densenet_forward.19} parent=0 // pred_fallthru
    _
  %v8 = vld [vmem:[%s0] sm:$0xff]
  %v9 = vld [vmem:[%s0 + $0x8] sm:$0xff]
  %v10 = vld [vmem:[%s0 + $0x10] sm:$0xff]
  %v11 = vld [vmem:[%s0 + $0x18] sm:$0xff]
  %s12 = scalar_lea.vmem %s0, 32
  %v13 = vld [vmem:[%s12] sm:$0xff]
  %v14 = vld [vmem:[%s12 + $0x8] sm:$0xff]
  %v15 = vld [vmem:[%s12 + $0x10] sm:$0xff]
  %v16 = vld [vmem:[%s12 + $0x18] sm:$0xff]
  %v17 = vadd.f32 %v8, %v13
  %v18 = vadd.f32 %v9, %v14
  %v19 = vadd.f32 %v10, %v15
  %v20 = vadd.f32 %v11, %v16
  %s21 = scalar_lea.vmem %s0, 64
  %v22 = vld [vmem:[%s21] sm:$0xff]
  %v23 = vld [vmem:[%s21 + $0x8] sm:$0xff]
  %v24 = vld [vmem:[%s21 + $0x10] sm:$0xff]
  %v25 = vld [vmem:[%s21 + $0x18] sm:$0xff]
  %v26 = vadd.f32 %v17, %v22
  %v27 = vadd.f32 %v18, %v23
  %v28 = vadd.f32 %v19, %v24
  %v29 = vadd.f32 %v20, %v25
  %s30 = scalar_lea.vmem %s0, 96
  %v31 = vld [vmem:[%s30] sm:$0xff]
  %v32 = vld [vmem:[%s30 + $0x8] sm:$0xff]
  %v33 = vld [vmem:[%s30 + $0x10] sm:$0xff]
  %v34 = vld [vmem:[%s30 + $0x18] sm:$0xff]
  %v35 = vadd.f32 %v26, %v31
  %v36 = vadd.f32 %v27, %v32
  %v37 = vadd.f32 %v28, %v33
  %v38 = vadd.f32 %v29, %v34
  %v39 = vmul.f32 %v35, 0.25
  %v40 = vmul.f32 %v36, 0.25
  %v41 = vmul.f32 %v37, 0.25
  %v42 = vmul.f32 %v38, 0.25
  %43 = vst [vmem:[%s1] sm:$0xff] %v39
  %44 = vst [vmem:[%s1 + $0x8] sm:$0xff] %v40
  %45 = vst [vmem:[%s1 + $0x10] sm:$0xff] %v41
  %46 = vst [vmem:[%s1 + $0x18] sm:$0xff] %v42
  // Predicated region
  $region6: #{densenet_forward.19} parent=0 // pred_check
    _
  $region7: #{densenet_forward.19} parent=0 // pred_check_branch
    %48 = sbr.rel (0) target = $region9
  $region8: #{densenet_forward.19} parent=0 // pred_region
    _
  $region9: #{densenet_forward.19} parent=0 // pred_fallthru
    _
  // Predicated region
  $region10: #{densenet_forward.19} parent=0 // pred_check
    _
  $region11: #{densenet_forward.19} parent=0 // pred_check_branch
    %50 = sbr.rel (0) target = $region13
  $region12: #{densenet_forward.19} parent=0 // pred_region
    _
  $region13: #{densenet_forward.19} parent=0 // pred_fallthru
    _

// kernel: densenet_forward.20
$region0: #{densenet_forward.20}
  #allocation0 [shape = 'u32[]', space=smem, size = 0x4, offset = 0x4, fixed_abs, tag = 'smem constant byte address 0x4 - core index']
  #allocation1 [shape = 'u32[72,128]{1,0:T(1,128)}', space=vmem, size = 0x9000, scoped, tag = 'internal scratch']
  %s0 = inlined_call_operand.vmem [shape: f32[32,128], index: 0, kind: input, shape index: {}]
  %s1 = inlined_call_operand.vmem [shape: bf16[128,128], index: 1, kind: input, shape index: {}]
  %s2 = inlined_call_operand.vmem [shape: f32[1,128], index: 2, kind: input, shape index: {}]
  %s3 = inlined_call_operand.vmem [shape: f32[1,128], index: 3, kind: input, shape index: {}]
  %s4 = inlined_call_operand.vmem [shape: f32[1,128], index: 4, kind: input, shape index: {}]
  %s5 = inlined_call_operand.vmem [shape: f32[1,128], index: 5, kind: input, shape index: {}]
  %s6 = inlined_call_operand.vmem [shape: bf16[32,128], index: 6, kind: output, shape index: {}]
  %s7 = sld [smem:[#allocation0]]
  $region34: #{densenet_forward.20} parent=0
    _
  %s9 = ssub.s32 1, %s7
  %s10 = scalar_select 0, %s9, %s7
  // Predicated region
  $region2: #{densenet_forward.20} parent=0 // pred_check
    _
  $region3: #{densenet_forward.20} parent=0 // pred_check_branch
    %12 = sbr.rel (0) target = $region5
  $region4: #{densenet_forward.20} parent=0 // pred_region
    _
  $region5: #{densenet_forward.20} parent=0 // pred_fallthru
    _
  // Predicated region
  $region6: #{densenet_forward.20} parent=0 // pred_check
    _
  $region7: #{densenet_forward.20} parent=0 // pred_check_branch
    %14 = sbr.rel (0) target = $region9
  $region8: #{densenet_forward.20} parent=0 // pred_region
    _
  $region9: #{densenet_forward.20} parent=0 // pred_fallthru
    _
  // Predicated region
  $region10: #{densenet_forward.20} parent=0 // pred_check
    _
  $region11: #{densenet_forward.20} parent=0 // pred_check_branch
    %16 = sbr.rel (0) target = $region13
  $region12: #{densenet_forward.20} parent=0 // pred_region
    _
  $region13: #{densenet_forward.20} parent=0 // pred_fallthru
    _
  // Predicated region
  $region14: #{densenet_forward.20} parent=0 // pred_check
    _
  $region15: #{densenet_forward.20} parent=0 // pred_check_branch
    %18 = sbr.rel (0) target = $region17
  $region16: #{densenet_forward.20} parent=0 // pred_region
    _
  $region17: #{densenet_forward.20} parent=0 // pred_fallthru
    _
  // Predicated region
  $region18: #{densenet_forward.20} parent=0 // pred_check
    _
  $region19: #{densenet_forward.20} parent=0 // pred_check_branch
    %20 = sbr.rel (0) target = $region21
  $region20: #{densenet_forward.20} parent=0 // pred_region
    _
  $region21: #{densenet_forward.20} parent=0 // pred_fallthru
    _
  // Predicated region
  $region22: #{densenet_forward.20} parent=0 // pred_check
    _
  $region23: #{densenet_forward.20} parent=0 // pred_check_branch
    %22 = sbr.rel (0) target = $region25
  $region24: #{densenet_forward.20} parent=0 // pred_region
    _
  $region25: #{densenet_forward.20} parent=0 // pred_fallthru
    _
  %v23 = vld [vmem:[%s0] sm:$0xff]
  %v24 = vld [vmem:[%s0 + $0x8] sm:$0xff]
  %v25 = vld [vmem:[%s0 + $0x10] sm:$0xff]
  %v26 = vld [vmem:[%s0 + $0x18] sm:$0xff]
  %v27 = vld [vmem:[%s2] sm:$0x1]
  %v29 = vperm.slane %v27, 0
  %v31 = vmul.f32 %v23, %v29
  %v32 = vmul.f32 %v24, %v29
  %v33 = vmul.f32 %v25, %v29
  %v34 = vmul.f32 %v26, %v29
  %v35 = vld [vmem:[%s3] sm:$0x1]
  %v37 = vperm.slane %v35, 0
  %v39 = vadd.f32 %v31, %v37
  %v40 = vadd.f32 %v32, %v37
  %v41 = vadd.f32 %v33, %v37
  %v42 = vadd.f32 %v34, %v37
  %v43 = vmax.f32 %v39, 0.0
  %v44 = vmax.f32 %v40, 0.0
  %v45 = vmax.f32 %v41, 0.0
  %v46 = vmax.f32 %v42, 0.0
  %v47 = vpack.c.bf16 %v44, %v43
  %v48 = vpack.c.bf16 %v46, %v45
  %v49 = vld [vmem:[%s1] sm:$0xf]
  %v50 = vld [vmem:[%s1 + $0x4] sm:$0xf]
  %v51 = vld [vmem:[%s1 + $0x8] sm:$0xf]
  %v52 = vld [vmem:[%s1 + $0xc] sm:$0xf]
  %v53 = vld [vmem:[%s1 + $0x10] sm:$0xf]
  %v54 = vld [vmem:[%s1 + $0x14] sm:$0xf]
  %v55 = vld [vmem:[%s1 + $0x18] sm:$0xf]
  %v56 = vld [vmem:[%s1 + $0x1c] sm:$0xf]
  %v57 = vld [vmem:[%s1 + $0x20] sm:$0xf]
  %v58 = vld [vmem:[%s1 + $0x24] sm:$0xf]
  %v59 = vld [vmem:[%s1 + $0x28] sm:$0xf]
  %v60 = vld [vmem:[%s1 + $0x2c] sm:$0xf]
  %v61 = vld [vmem:[%s1 + $0x30] sm:$0xf]
  %v62 = vld [vmem:[%s1 + $0x34] sm:$0xf]
  %v63 = vld [vmem:[%s1 + $0x38] sm:$0xf]
  %v64 = vld [vmem:[%s1 + $0x3c] sm:$0xf]
  %v81 = vunpack.c.l.b16 %v49
  %v82 = vunpack.c.l.b16 %v50
  %v83 = vunpack.c.l.b16 %v51
  %v84 = vunpack.c.l.b16 %v52
  %v85 = vunpack.c.l.b16 %v53
  %v86 = vunpack.c.l.b16 %v54
  %v87 = vunpack.c.l.b16 %v55
  %v88 = vunpack.c.l.b16 %v56
  %v89 = vunpack.c.l.b16 %v57
  %v90 = vunpack.c.l.b16 %v58
  %v91 = vunpack.c.l.b16 %v59
  %v92 = vunpack.c.l.b16 %v60
  %v93 = vunpack.c.l.b16 %v61
  %v94 = vunpack.c.l.b16 %v62
  %v95 = vunpack.c.l.b16 %v63
  %v96 = vunpack.c.l.b16 %v64
  %v97 = vpack.c.b16 %v82, %v81
  %v98 = vpack.c.b16 %v84, %v83
  %v99 = vpack.c.b16 %v86, %v85
  %v100 = vpack.c.b16 %v88, %v87
  %v101 = vpack.c.b16 %v90, %v89
  %v102 = vpack.c.b16 %v92, %v91
  %v103 = vpack.c.b16 %v94, %v93
  %v104 = vpack.c.b16 %v96, %v95
  %113 = vmatpush.bf16.msra.mxu0 %v104
  %114 = vmatpush.bf16.msra.mxu0 %v103
  %115 = vmatpush.bf16.msra.mxu0 %v102
  %116 = vmatpush.bf16.msra.mxu0 %v101
  %117 = vmatpush.bf16.msra.mxu0 %v100
  %118 = vmatpush.bf16.msra.mxu0 %v99
  %119 = vmatpush.bf16.msra.mxu0 %v98
  %120 = vmatpush.bf16.msra.mxu0 %v97
  %121 = vmatmul.bf16.gmra.mxu0 %v47
  %v122 = vpop.f32.mrf.mxu0
  %v123 = vadd.f32 0.0, %v122
  %v124 = vpop.f32.mrf.mxu0
  %v125 = vadd.f32 0.0, %v124
  %126 = vmatmul.bf16.gmra.mxu0 %v48
  %v127 = vpop.f32.mrf.mxu0
  %v128 = vadd.f32 0.0, %v127
  %v129 = vpop.f32.mrf.mxu0
  %v130 = vadd.f32 0.0, %v129
  %131 = vdwg.mxu0
  %v132 = vld [vmem:[%s4] sm:$0x1]
  %v134 = vperm.slane %v132, 0
  %v136 = vmul.f32 %v123, %v134
  %v137 = vmul.f32 %v125, %v134
  %v138 = vmul.f32 %v128, %v134
  %v139 = vmul.f32 %v130, %v134
  %v140 = vld [vmem:[%s5] sm:$0x1]
  %v142 = vperm.slane %v140, 0
  %v144 = vadd.f32 %v136, %v142
  %v145 = vadd.f32 %v137, %v142
  %v146 = vadd.f32 %v138, %v142
  %v147 = vadd.f32 %v139, %v142
  %v148 = vmax.f32 %v144, 0.0
  %v149 = vmax.f32 %v145, 0.0
  %v150 = vmax.f32 %v146, 0.0
  %v151 = vmax.f32 %v147, 0.0
  %v152 = vpack.c.bf16 %v148, %v148
  %v153 = vpack.c.bf16 %v149, %v149
  %v154 = vpack.c.bf16 %v150, %v150
  %v155 = vpack.c.bf16 %v151, %v151
  %156 = vst [vmem:[%s6] sm:$0xf] %v152
  %157 = vst [vmem:[%s6 + $0x4] sm:$0xf] %v153
  %158 = vst [vmem:[%s6 + $0x8] sm:$0xf] %v154
  %159 = vst [vmem:[%s6 + $0xc] sm:$0xf] %v155
  // Predicated region
  $region26: #{densenet_forward.20} parent=0 // pred_check
    _
  $region27: #{densenet_forward.20} parent=0 // pred_check_branch
    %161 = sbr.rel (0) target = $region29
  $region28: #{densenet_forward.20} parent=0 // pred_region
    _
  $region29: #{densenet_forward.20} parent=0 // pred_fallthru
    _
  // Predicated region
  $region30: #{densenet_forward.20} parent=0 // pred_check
    _
  $region31: #{densenet_forward.20} parent=0 // pred_check_branch
    %163 = sbr.rel (0) target = $region33
  $region32: #{densenet_forward.20} parent=0 // pred_region
    _
  $region33: #{densenet_forward.20} parent=0 // pred_fallthru
    _

// kernel: densenet_forward.21
$region0: #{densenet_forward.21}
  #allocation0 [shape = 'u32[]', space=smem, size = 0x4, offset = 0x4, fixed_abs, tag = 'smem constant byte address 0x4 - core index']
  #allocation1 [shape = 'u32[72,128]{1,0:T(1,128)}', space=vmem, size = 0x9000, scoped, tag = 'internal scratch']
  %s0 = inlined_call_operand.vmem [shape: bf16[32,256], index: 0, kind: input, shape index: {}]
  %s1 = inlined_call_operand.vmem [shape: bf16[256,128], index: 1, kind: input, shape index: {}]
  %s2 = inlined_call_operand.vmem [shape: f32[1,128], index: 2, kind: input, shape index: {}]
  %s3 = inlined_call_operand.vmem [shape: f32[1,128], index: 3, kind: input, shape index: {}]
  %s4 = inlined_call_operand.vmem [shape: f32[32,128], index: 4, kind: input, shape index: {}, may-alias: {4,5}]
  %s5 = inlined_call_operand.vmem [shape: f32[32,128], index: 5, kind: output, shape index: {}, may-alias: {4,5}]
  %s6 = sld [smem:[#allocation0]]
  $region30: #{densenet_forward.21} parent=0
    _
  %s8 = ssub.s32 1, %s6
  %s9 = scalar_select 0, %s8, %s6
  // Predicated region
  $region2: #{densenet_forward.21} parent=0 // pred_check
    _
  $region3: #{densenet_forward.21} parent=0 // pred_check_branch
    %11 = sbr.rel (0) target = $region5
  $region4: #{densenet_forward.21} parent=0 // pred_region
    _
  $region5: #{densenet_forward.21} parent=0 // pred_fallthru
    _
  // Predicated region
  $region6: #{densenet_forward.21} parent=0 // pred_check
    _
  $region7: #{densenet_forward.21} parent=0 // pred_check_branch
    %13 = sbr.rel (0) target = $region9
  $region8: #{densenet_forward.21} parent=0 // pred_region
    _
  $region9: #{densenet_forward.21} parent=0 // pred_fallthru
    _
  // Predicated region
  $region10: #{densenet_forward.21} parent=0 // pred_check
    _
  $region11: #{densenet_forward.21} parent=0 // pred_check_branch
    %15 = sbr.rel (0) target = $region13
  $region12: #{densenet_forward.21} parent=0 // pred_region
    _
  $region13: #{densenet_forward.21} parent=0 // pred_fallthru
    _
  // Predicated region
  $region14: #{densenet_forward.21} parent=0 // pred_check
    _
  $region15: #{densenet_forward.21} parent=0 // pred_check_branch
    %17 = sbr.rel (0) target = $region17
  $region16: #{densenet_forward.21} parent=0 // pred_region
    _
  $region17: #{densenet_forward.21} parent=0 // pred_fallthru
    _
  // Predicated region
  $region18: #{densenet_forward.21} parent=0 // pred_check
    _
  $region19: #{densenet_forward.21} parent=0 // pred_check_branch
    %19 = sbr.rel (0) target = $region21
  $region20: #{densenet_forward.21} parent=0 // pred_region
    _
  $region21: #{densenet_forward.21} parent=0 // pred_fallthru
    _
  %v20 = vld [vmem:[%s0] sm:$0xff]
  %v21 = vld [vmem:[%s0 + $0x8] sm:$0xff]
  %v22 = vld [vmem:[%s0 + $0x10] sm:$0xff]
  %v23 = vld [vmem:[%s0 + $0x18] sm:$0xff]
  %v24 = vld [vmem:[%s1] sm:$0xf]
  %v25 = vld [vmem:[%s1 + $0x4] sm:$0xf]
  %v26 = vld [vmem:[%s1 + $0x8] sm:$0xf]
  %v27 = vld [vmem:[%s1 + $0xc] sm:$0xf]
  %v28 = vld [vmem:[%s1 + $0x10] sm:$0xf]
  %v29 = vld [vmem:[%s1 + $0x14] sm:$0xf]
  %v30 = vld [vmem:[%s1 + $0x18] sm:$0xf]
  %v31 = vld [vmem:[%s1 + $0x1c] sm:$0xf]
  %v32 = vld [vmem:[%s1 + $0x20] sm:$0xf]
  %v33 = vld [vmem:[%s1 + $0x24] sm:$0xf]
  %v34 = vld [vmem:[%s1 + $0x28] sm:$0xf]
  %v35 = vld [vmem:[%s1 + $0x2c] sm:$0xf]
  %v36 = vld [vmem:[%s1 + $0x30] sm:$0xf]
  %v37 = vld [vmem:[%s1 + $0x34] sm:$0xf]
  %v38 = vld [vmem:[%s1 + $0x38] sm:$0xf]
  %v39 = vld [vmem:[%s1 + $0x3c] sm:$0xf]
  %v40 = vld [vmem:[%s1 + $0x40] sm:$0xf]
  %v41 = vld [vmem:[%s1 + $0x44] sm:$0xf]
  %v42 = vld [vmem:[%s1 + $0x48] sm:$0xf]
  %v43 = vld [vmem:[%s1 + $0x4c] sm:$0xf]
  %v44 = vld [vmem:[%s1 + $0x50] sm:$0xf]
  %v45 = vld [vmem:[%s1 + $0x54] sm:$0xf]
  %v46 = vld [vmem:[%s1 + $0x58] sm:$0xf]
  %v47 = vld [vmem:[%s1 + $0x5c] sm:$0xf]
  %v48 = vld [vmem:[%s1 + $0x60] sm:$0xf]
  %v49 = vld [vmem:[%s1 + $0x64] sm:$0xf]
  %v50 = vld [vmem:[%s1 + $0x68] sm:$0xf]
  %v51 = vld [vmem:[%s1 + $0x6c] sm:$0xf]
  %v52 = vld [vmem:[%s1 + $0x70] sm:$0xf]
  %v53 = vld [vmem:[%s1 + $0x74] sm:$0xf]
  %v54 = vld [vmem:[%s1 + $0x78] sm:$0xf]
  %v55 = vld [vmem:[%s1 + $0x7c] sm:$0xf]
  %v56 = vld [vmem:[%s4] sm:$0xff]
  %v57 = vld [vmem:[%s4 + $0x8] sm:$0xff]
  %v58 = vld [vmem:[%s4 + $0x10] sm:$0xff]
  %v59 = vld [vmem:[%s4 + $0x18] sm:$0xff]
  %v64 = vunpack.c.l.b16 %v20
  %v65 = vunpack.c.h.b16 %v20
  %v66 = vunpack.c.l.b16 %v21
  %v67 = vunpack.c.h.b16 %v21
  %v68 = vunpack.c.l.b16 %v22
  %v69 = vunpack.c.h.b16 %v22
  %v70 = vunpack.c.l.b16 %v23
  %v71 = vunpack.c.h.b16 %v23
  %v72 = vpack.c.b16 %v66, %v64
  %v73 = vpack.c.b16 %v67, %v65
  %v74 = vpack.c.b16 %v70, %v68
  %v75 = vpack.c.b16 %v71, %v69
  %v112 = vunpack.c.l.b16 %v24
  %v113 = vunpack.c.l.b16 %v25
  %v114 = vunpack.c.l.b16 %v26
  %v115 = vunpack.c.l.b16 %v27
  %v116 = vunpack.c.l.b16 %v28
  %v117 = vunpack.c.l.b16 %v29
  %v118 = vunpack.c.l.b16 %v30
  %v119 = vunpack.c.l.b16 %v31
  %v120 = vunpack.c.l.b16 %v32
  %v121 = vunpack.c.l.b16 %v33
  %v122 = vunpack.c.l.b16 %v34
  %v123 = vunpack.c.l.b16 %v35
  %v124 = vunpack.c.l.b16 %v36
  %v125 = vunpack.c.l.b16 %v37
  %v126 = vunpack.c.l.b16 %v38
  %v127 = vunpack.c.l.b16 %v39
  %v128 = vunpack.c.l.b16 %v40
  %v129 = vunpack.c.l.b16 %v41
  %v130 = vunpack.c.l.b16 %v42
  %v131 = vunpack.c.l.b16 %v43
  %v132 = vunpack.c.l.b16 %v44
  %v133 = vunpack.c.l.b16 %v45
  %v134 = vunpack.c.l.b16 %v46
  %v135 = vunpack.c.l.b16 %v47
  %v136 = vunpack.c.l.b16 %v48
  %v137 = vunpack.c.l.b16 %v49
  %v138 = vunpack.c.l.b16 %v50
  %v139 = vunpack.c.l.b16 %v51
  %v140 = vunpack.c.l.b16 %v52
  %v141 = vunpack.c.l.b16 %v53
  %v142 = vunpack.c.l.b16 %v54
  %v143 = vunpack.c.l.b16 %v55
  %v144 = vpack.c.b16 %v113, %v112
  %v145 = vpack.c.b16 %v115, %v114
  %v146 = vpack.c.b16 %v117, %v116
  %v147 = vpack.c.b16 %v119, %v118
  %v148 = vpack.c.b16 %v121, %v120
  %v149 = vpack.c.b16 %v123, %v122
  %v150 = vpack.c.b16 %v125, %v124
  %v151 = vpack.c.b16 %v127, %v126
  %v152 = vpack.c.b16 %v129, %v128
  %v153 = vpack.c.b16 %v131, %v130
  %v154 = vpack.c.b16 %v133, %v132
  %v155 = vpack.c.b16 %v135, %v134
  %v156 = vpack.c.b16 %v137, %v136
  %v157 = vpack.c.b16 %v139, %v138
  %v158 = vpack.c.b16 %v141, %v140
  %v159 = vpack.c.b16 %v143, %v142
  %176 = vmatpush.bf16.msra.mxu0 %v151
  %177 = vmatpush.bf16.msra.mxu0 %v150
  %178 = vmatpush.bf16.msra.mxu0 %v149
  %179 = vmatpush.bf16.msra.mxu0 %v148
  %180 = vmatpush.bf16.msra.mxu0 %v147
  %181 = vmatpush.bf16.msra.mxu0 %v146
  %182 = vmatpush.bf16.msra.mxu0 %v145
  %183 = vmatpush.bf16.msra.mxu0 %v144
  %184 = vmatmul.bf16.gmra.mxu0 %v72
  %v185 = vpop.f32.mrf.mxu0
  %v186 = vadd.f32 %v56, %v185
  %v187 = vpop.f32.mrf.mxu0
  %v188 = vadd.f32 %v57, %v187
  %189 = vmatmul.bf16.gmra.mxu0 %v74
  %v190 = vpop.f32.mrf.mxu0
  %v191 = vadd.f32 %v58, %v190
  %v192 = vpop.f32.mrf.mxu0
  %v193 = vadd.f32 %v59, %v192
  %194 = vdwg.mxu0
  %195 = vmatpush.bf16.msra.mxu0 %v159
  %196 = vmatpush.bf16.msra.mxu0 %v158
  %197 = vmatpush.bf16.msra.mxu0 %v157
  %198 = vmatpush.bf16.msra.mxu0 %v156
  %199 = vmatpush.bf16.msra.mxu0 %v155
  %200 = vmatpush.bf16.msra.mxu0 %v154
  %201 = vmatpush.bf16.msra.mxu0 %v153
  %202 = vmatpush.bf16.msra.mxu0 %v152
  %203 = vmatmul.bf16.gmra.mxu0 %v73
  %v204 = vpop.f32.mrf.mxu0
  %v205 = vadd.f32 %v186, %v204
  %v206 = vpop.f32.mrf.mxu0
  %v207 = vadd.f32 %v188, %v206
  %208 = vmatmul.bf16.gmra.mxu0 %v75
  %v209 = vpop.f32.mrf.mxu0
  %v210 = vadd.f32 %v191, %v209
  %v211 = vpop.f32.mrf.mxu0
  %v212 = vadd.f32 %v193, %v211
  %213 = vdwg.mxu0
  %v214 = vld [vmem:[%s2] sm:$0x1]
  %v216 = vperm.slane %v214, 0
  %v218 = vmul.f32 %v205, %v216
  %v219 = vmul.f32 %v207, %v216
  %v220 = vmul.f32 %v210, %v216
  %v221 = vmul.f32 %v212, %v216
  %v222 = vld [vmem:[%s3] sm:$0x1]
  %v224 = vperm.slane %v222, 0
  %v226 = vadd.f32 %v218, %v224
  %v227 = vadd.f32 %v219, %v224
  %v228 = vadd.f32 %v220, %v224
  %v229 = vadd.f32 %v221, %v224
  %230 = vst [vmem:[%s5] sm:$0xff] %v226
  %231 = vst [vmem:[%s5 + $0x8] sm:$0xff] %v227
  %232 = vst [vmem:[%s5 + $0x10] sm:$0xff] %v228
  %233 = vst [vmem:[%s5 + $0x18] sm:$0xff] %v229
  // Predicated region
  $region22: #{densenet_forward.21} parent=0 // pred_check
    _
  $region23: #{densenet_forward.21} parent=0 // pred_check_branch
    %235 = sbr.rel (0) target = $region25
  $region24: #{densenet_forward.21} parent=0 // pred_region
    _
  $region25: #{densenet_forward.21} parent=0 // pred_fallthru
    _
  // Predicated region
  $region26: #{densenet_forward.21} parent=0 // pred_check
    _
  $region27: #{densenet_forward.21} parent=0 // pred_check_branch
    %237 = sbr.rel (0) target = $region29
  $region28: #{densenet_forward.21} parent=0 // pred_region
    _
  $region29: #{densenet_forward.21} parent=0 // pred_fallthru
    _

</llo_original>
